<compile_context>
chip_gen: v6e
topology: v6e:2x2x1
jax: 0.10.0
libtpu: 0.0.40
codegen_flags: <defaults>
</compile_context>

<pallas_src>
import functools

import jax
import jax.numpy as jnp
from jax.experimental import pallas as pl
from jax.experimental.pallas import tpu as pltpu

EPS = 1e-3   # BatchNorm1d epsilon in the module


def _vmem_limit_bytes():
    # Per-generation VMEM budget (review: 48 MiB is too much of v7x's 64 MiB
    # physical VMEM). The fused kernels' working sets are only a few MiB, so
    # min(32 MiB, capacity/2) is ample everywhere and leaves headroom for the
    # surrounding XLA program.
    try:
        cap = int(getattr(pltpu.get_tpu_info(), "vmem_capacity_bytes",
                          128 * 1024 * 1024))
    except Exception:
        cap = 128 * 1024 * 1024
    return min(32 * 1024 * 1024, cap // 2)


VMEM_LIMIT = _vmem_limit_bytes()


def _sigmoid(x):
    return 1.0 / (1.0 + jnp.exp(-x))


# ----------------------------------------------------------------------------
# LSTM block (single layer, unbatched input: seq_len = batch dim of x)
# ----------------------------------------------------------------------------
def _lstm_kernel(x_ref, wih_ref, whh_ref, b_ref, out_ref, xg_ref, *, hidden, unroll):
    T = x_ref.shape[0]
    H = hidden
    # Input projection for all timesteps hoisted out of the recurrence:
    # one (T, D) @ (D, 4H) MXU matmul (+ bias) instead of 4 per-gate matmuls.
    xg_ref[...] = (jnp.dot(x_ref[...], wih_ref[...],
                           preferred_element_type=jnp.float32) + b_ref[...])
    whh = whh_ref[...]                                   # (H, 4H), resident across loop

    def step(t, carry):
        h, c = carry                                     # (1, H) each
        # Single fused recurrent matmul per step: (1, H) @ (H, 4H).
        g = xg_ref[pl.ds(t, 1), :] + jnp.dot(h, whh,
                                             preferred_element_type=jnp.float32)
        i_g = _sigmoid(g[:, 0:H])                        # gate order: i, f, g, o
        f_g = _sigmoid(g[:, H:2 * H])
        g_g = jnp.tanh(g[:, 2 * H:3 * H])
        o_g = _sigmoid(g[:, 3 * H:4 * H])
        c_n = f_g * c + i_g * g_g
        h_n = o_g * jnp.tanh(c_n)
        out_ref[pl.ds(t, 1), :] = h_n
        return h_n, c_n

    zero = jnp.zeros((1, H), jnp.float32)
    jax.lax.fori_loop(0, T, step, (zero, zero), unroll=unroll)


def lstm_forward(x, Wih, Whh, bih, bhh):
    """Single-layer LSTM over an unbatched (T, D) sequence. Returns (T, H)."""
    T, _ = x.shape
    H = Whh.shape[1]
    # PyTorch stacked (4H, *) weights -> concatenated (D, 4H) / (H, 4H) operands
    # (gate order [i, f, g, o] along lanes), so each step is ONE recurrent matmul.
    wih = jnp.transpose(Wih, (1, 0)).astype(jnp.float32)      # (D, 4H)
    whh = jnp.transpose(Whh, (1, 0)).astype(jnp.float32)      # (H, 4H)
    b = (bih + bhh).reshape(1, 4 * H).astype(jnp.float32)
    kernel = functools.partial(_lstm_kernel, hidden=H, unroll=bool(T <= 128))
    return pl.pallas_call(
        kernel,
        out_shape=jax.ShapeDtypeStruct((T, H), jnp.float32),
        scratch_shapes=[pltpu.VMEM((T, 4 * H), jnp.float32)],
        compiler_params=pltpu.CompilerParams(vmem_limit_bytes=VMEM_LIMIT),
    )(x.astype(jnp.float32), wih, whh, b)


# ----------------------------------------------------------------------------
# FCN branch: 3x (Conv1d -> train-mode BatchNorm1d -> ReLU) + global avg pool,
# fused into a single kernel (everything stays in VMEM).
# ----------------------------------------------------------------------------
def _fcn_fused_kernel(cols1_ref, w1_ref, w2_ref, w3_ref,
                      g1_ref, be1_ref, g2_ref, be2_ref, g3_ref, be3_ref,
                      m1_ref, m2_ref, m3_ref, pool_ref,
                      pooled_ref, h1_ref, h2_ref, *, counts, eps):
    cnt1, cnt2, cnt3 = counts

    def bn_relu(conv, mask, count, gamma, beta):
        # Train-mode BatchNorm over the valid rows only (mask excludes the
        # cross-sample garbage rows of the flattened layout).  Exact centered
        # variance, folded into one scale/shift, then ReLU; garbage rows are
        # zeroed so they never pollute downstream matmuls or statistics.
        inv_n = 1.0 / count
        mean = jnp.sum(conv * mask, axis=0, keepdims=True) * inv_n
        cen = (conv - mean) * mask
        var = jnp.sum(cen * cen, axis=0, keepdims=True) * inv_n
        scale = gamma * jax.lax.rsqrt(var + eps)
        shift = beta - mean * scale
        return jnp.maximum(conv * scale + shift, 0.0) * mask

    # Block 1: Conv1d(1 -> C1, K1) as a single im2col matmul (conv bias folded
    # away; it is cancelled exactly by train-mode BN mean subtraction).
    conv1 = jnp.dot(cols1_ref[...], w1_ref[...], preferred_element_type=jnp.float32)
    h1_ref[...] = bn_relu(conv1, m1_ref[...], cnt1, g1_ref[...], be1_ref[...])

    # Block 2: Conv1d(C1 -> C2, K2) as K2 shifted (R2, C1) @ (C1, C2) MXU dots
    # accumulated in f32 -- the im2col expansion never exists, not even in VMEM.
    K2 = w2_ref.shape[0]
    R2 = h2_ref.shape[0]
    conv2 = jnp.dot(h1_ref[pl.ds(0, R2), :], w2_ref[0],
                    preferred_element_type=jnp.float32)
    for k in range(1, K2):
        conv2 = conv2 + jnp.dot(h1_ref[pl.ds(k, R2), :], w2_ref[k],
                                preferred_element_type=jnp.float32)
    h2_ref[...] = bn_relu(conv2, m2_ref[...], cnt2, g2_ref[...], be2_ref[...])

    # Block 3: Conv1d(C2 -> C3, K3), same shifted-dot scheme.
    K3 = w3_ref.shape[0]
    R3 = m3_ref.shape[0]
    conv3 = jnp.dot(h2_ref[pl.ds(0, R3), :], w3_ref[0],
                    preferred_element_type=jnp.float32)
    for k in range(1, K3):
        conv3 = conv3 + jnp.dot(h2_ref[pl.ds(k, R3), :], w3_ref[k],
                                preferred_element_type=jnp.float32)
    h3 = bn_relu(conv3, m3_ref[...], cnt3, g3_ref[...], be3_ref[...])

    # Global average pool over each sample's valid positions, fused here as one
    # (N, R3) @ (R3, C3) matmul against a precomputed selection matrix.
    pooled_ref[...] = jnp.dot(pool_ref[...], h3, preferred_element_type=jnp.float32)


def fcn_forward(x, fcn_params, eps=EPS):
    """Full FCN branch in ONE Pallas kernel.

    x: (N, L0).  Returns pooled features (N, C3) float32.
    Activations use a flattened channels-last (N*L0, C) layout: row r = n*L0+l;
    rows whose in-sample offset exceeds the current valid length are masked.
    Conv biases are omitted (cancelled exactly by train-mode BatchNorm).
    """
    (w1, _b1, g1, be1), (w2, _b2, g2, be2), (w3, _b3, g3, be3) = fcn_params
    N, L0 = x.shape
    C1, _, K1 = w1.shape
    C2, _, K2 = w2.shape
    C3, _, K3 = w3.shape
    L1 = L0 - K1 + 1
    L2 = L1 - K2 + 1
    L3 = L2 - K3 + 1
    R0 = N * L0
    R1 = R0 - K1 + 1
    R2 = R1 - K2 + 1
    R3 = R2 - K3 + 1

    # TODO(synk): inputs whose (N*L0, 128) f32 working set exceeds VMEM need a
    # row-tiled multi-pass variant (grid over row tiles, partial BN statistics,
    # bf16 wrapper-cast matmul operands); unnecessary at this model's sizes.

    # Block-1 im2col built in the wrapper: C_in == 1, so this only expands the
    # tiny raw input (N*L0 floats) by K1 -- negligible HBM bytes.
    xf = x.reshape(R0).astype(jnp.float32)
    cols1 = jnp.stack([xf[k:k + R1] for k in range(K1)], axis=1)            # (R1, K1)

    # Conv weights in channels-last im2col layout (per-tap (C_in, C_out)).
    w1m = jnp.transpose(w1, (2, 1, 0)).reshape(K1, C1).astype(jnp.float32)  # (K1, C1)
    w2m = jnp.transpose(w2, (2, 1, 0)).astype(jnp.float32)                  # (K2, C1, C2)
    w3m = jnp.transpose(w3, (2, 1, 0)).astype(jnp.float32)                  # (K3, C2, C3)

    # Validity masks (one per block) and the average-pool selection matrix,
    # all tiny and built once in the wrapper.
    def valid_mask(rows, length):
        return ((jnp.arange(rows) % L0) < length).astype(jnp.float32).reshape(rows, 1)

    m1 = valid_mask(R1, L1)
    m2 = valid_mask(R2, L2)
    m3 = valid_mask(R3, L3)

    r = jnp.arange(R3)
    pool = ((r[None, :] // L0 == jnp.arange(N)[:, None]) &
            ((r[None, :] % L0) < L3)).astype(jnp.float32) / float(L3)       # (N, R3)

    kernel = functools.partial(
        _fcn_fused_kernel,
        counts=(float(N * L1), float(N * L2), float(N * L3)),
        eps=eps)
    return pl.pallas_call(
        kernel,
        out_shape=jax.ShapeDtypeStruct((N, C3), jnp.float32),
        scratch_shapes=[pltpu.VMEM((R1, C1), jnp.float32),
                        pltpu.VMEM((R2, C2), jnp.float32)],
        compiler_params=pltpu.CompilerParams(vmem_limit_bytes=VMEM_LIMIT),
    )(cols1, w1m, w2m, w3m,
      g1.reshape(1, C1).astype(jnp.float32), be1.reshape(1, C1).astype(jnp.float32),
      g2.reshape(1, C2).astype(jnp.float32), be2.reshape(1, C2).astype(jnp.float32),
      g3.reshape(1, C3).astype(jnp.float32), be3.reshape(1, C3).astype(jnp.float32),
      m1, m2, m3, pool)


# ----------------------------------------------------------------------------
# Head: concat(lstm, fcn_pooled) + Linear(128, 1), fused
# ----------------------------------------------------------------------------
def _head_kernel(pooled_ref, lstm_ref, wl_ref, wf_ref, b_ref, out_ref):
    out_ref[...] = (jnp.sum(lstm_ref[...] * wl_ref[...], axis=1, keepdims=True)
                    + jnp.sum(pooled_ref[...] * wf_ref[...], axis=1, keepdims=True)
                    + b_ref[...])


def head_forward(pooled, lstm_out, linear_w, linear_b):
    N, C3 = pooled.shape
    H = lstm_out.shape[1]
    wl = linear_w[0, :H].reshape(1, H).astype(jnp.float32)     # cat order: [lstm, fcn]
    wf = linear_w[0, H:].reshape(1, C3).astype(jnp.float32)
    b = linear_b.reshape(1, 1).astype(jnp.float32)
    out = pl.pallas_call(
        _head_kernel,
        out_shape=jax.ShapeDtypeStruct((N, 1), jnp.float32),
        compiler_params=pltpu.CompilerParams(vmem_limit_bytes=VMEM_LIMIT),
    )(pooled.astype(jnp.float32), lstm_out.astype(jnp.float32), wl, wf, b)
    return out[:, 0]                                           # matches y.squeeze()


# ----------------------------------------------------------------------------
# Full LSTMFCN forward (Pallas path)
# ----------------------------------------------------------------------------
def lstmfcn_forward(x, lstm_params, fcn_params, linear_w, linear_b):
    Wih, Whh, bih, bhh = lstm_params
    # The two branches are independent until the head: keep them as separate
    # pallas_calls so XLA (and the two v7x TensorCores) can overlap the fully
    # serial LSTM recurrence with the FCN convolution stack.
    lstm_out = lstm_forward(x, Wih, Whh, bih, bhh)             # (N, 64)
    # TODO(synk): Dropout(p=0.8) after the LSTM is the identity here (inference
    # semantics); train-mode dropout would need pltpu.prng_seed/prng_random_bits.
    pooled = fcn_forward(x, fcn_params)                        # (N, 64)
    return head_forward(pooled, lstm_out, linear_w, linear_b)  # (N,)


# ----------------------------------------------------------------------------
# Pure-JAX reference matching the PyTorch module (training-mode BN, eval dropout)
# ----------------------------------------------------------------------------
def _conv_bn_relu_ref(x_ncl, weight, bias, gamma, beta, eps=EPS):
    N, C_in, L = x_ncl.shape
    C_out, _, K = weight.shape
    L_out = L - K + 1
    cols = jnp.stack([x_ncl[:, :, k:k + L_out] for k in range(K)], axis=-1)
    conv = jnp.einsum('nclk,ock->nol', cols, weight) + bias[None, :, None]
    mean = conv.mean(axis=(0, 2), keepdims=True)
    var = ((conv - mean) ** 2).mean(axis=(0, 2), keepdims=True)
    y = (conv - mean) / jnp.sqrt(var + eps) * gamma[None, :, None] + beta[None, :, None]
    return jnp.maximum(y, 0.0)


def reference_forward(x, lstm_params, fcn_params, linear_w, linear_b):
    Wih, Whh, bih, bhh = lstm_params
    T, _ = x.shape
    H = Whh.shape[1]
    h = jnp.zeros((H,), jnp.float32)
    c = jnp.zeros((H,), jnp.float32)
    outs = []
    for t in range(T):
        g = Wih @ x[t] + bih + Whh @ h + bhh
        i = _sigmoid(g[0:H]); f = _sigmoid(g[H:2 * H])
        gg = jnp.tanh(g[2 * H:3 * H]); o = _sigmoid(g[3 * H:4 * H])
        c = f * c + i * gg
        h = o * jnp.tanh(c)
        outs.append(h)
    x1 = jnp.stack(outs, axis=0)                               # dropout = identity

    z = x[:, None, :]                                          # (N, 1, dim) NCL
    for (w, b, gmm, bta) in fcn_params:
        z = _conv_bn_relu_ref(z, w, b, gmm, bta)
    pooled = jnp.mean(z, axis=2)                               # (N, 64)
    feat = jnp.concatenate([x1, pooled], axis=1)               # (N, 128)
    return feat @ linear_w[0] + linear_b[0]                    # (N,)


if __name__ == "__main__":
    # Small shapes consistent with LSTMFCN: x is (batch, dim); channel widths /
    # hidden size are fixed by the module (64/128/64, lstm_hs=64, Linear(128,1)).
    N, DIM = 8, 16
    H_LSTM = 64
    CHANNELS = [1, 64, 128, 64]
    KERNELS = [5, 3, 2]

    keys = jax.random.split(jax.random.PRNGKey(0), 20)
    x = jax.random.normal(keys[0], (N, DIM), jnp.float32)

    kb = 1.0 / (H_LSTM ** 0.5)
    Wih = jax.random.uniform(keys[1], (4 * H_LSTM, DIM), minval=-kb, maxval=kb)
    Whh = jax.random.uniform(keys[2], (4 * H_LSTM, H_LSTM), minval=-kb, maxval=kb)
    bih = jax.random.uniform(keys[3], (4 * H_LSTM,), minval=-kb, maxval=kb)
    bhh = jax.random.uniform(keys[4], (4 * H_LSTM,), minval=-kb, maxval=kb)
    lstm_params = (Wih, Whh, bih, bhh)

    fcn_params = []
    ki = 5
    for cin, cout, K in zip(CHANNELS[:-1], CHANNELS[1:], KERNELS):
        bound = 1.0 / ((cin * K) ** 0.5)
        w = jax.random.uniform(keys[ki], (cout, cin, K), minval=-bound, maxval=bound); ki += 1
        b = jax.random.uniform(keys[ki], (cout,), minval=-bound, maxval=bound); ki += 1
        gmm = 1.0 + 0.1 * jax.random.normal(keys[ki], (cout,)); ki += 1
        bta = 0.1 * jax.random.normal(keys[ki], (cout,)); ki += 1
        fcn_params.append((w, b, gmm, bta))

    lb = 1.0 / (128.0 ** 0.5)
    Wlin = jax.random.uniform(keys[ki], (1, 128), minval=-lb, maxval=lb); ki += 1
    blin = jax.random.uniform(keys[ki], (1,), minval=-lb, maxval=lb)

    fwd = jax.jit(functools.partial(
        lstmfcn_forward, lstm_params=lstm_params, fcn_params=fcn_params,
        linear_w=Wlin, linear_b=blin))
    out = jax.block_until_ready(fwd(x))

    ref = jax.block_until_ready(
        reference_forward(x, lstm_params, fcn_params, Wlin, blin))

    assert out.shape == (N,)
    assert jnp.allclose(out, ref, atol=2e-3, rtol=2e-3), \
        f"max abs err {jnp.max(jnp.abs(out - ref))}"
    print("KERNEL_OK")
</pallas_src>

<mosaic_0001>
module attributes {stable_mosaic.version = 11 : i64} {
  func.func @_head_kernel(%arg0: memref<8x64xf32, #tpu.memory_space<vmem>>, %arg1: memref<8x64xf32, #tpu.memory_space<vmem>>, %arg2: memref<1x64xf32, #tpu.memory_space<vmem>>, %arg3: memref<1x64xf32, #tpu.memory_space<vmem>>, %arg4: memref<1x1xf32, #tpu.memory_space<vmem>>, %arg5: memref<8x1xf32, #tpu.memory_space<vmem>>) attributes {dimension_semantics = [], scalar_prefetch = 0 : i64, scratch_operands = 0 : i64, tpu.core_type = #tpu.core_type<tc>} {
    %c0 = arith.constant 0 : index
    %c0_0 = arith.constant 0 : index
    %0 = vector.load %arg1[%c0, %c0_0] : memref<8x64xf32, #tpu.memory_space<vmem>>, vector<8x64xf32>
    %c0_1 = arith.constant 0 : index
    %c0_2 = arith.constant 0 : index
    %1 = vector.load %arg2[%c0_1, %c0_2] : memref<1x64xf32, #tpu.memory_space<vmem>>, vector<1x64xf32>
    %2 = vector.broadcast %1 : vector<1x64xf32> to vector<8x64xf32>
    %3 = arith.mulf %0, %2 : vector<8x64xf32>
    %cst = arith.constant dense<0.000000e+00> : vector<8xf32>
    %4 = vector.multi_reduction <add>, %3, %cst [1] : vector<8x64xf32> to vector<8xf32>
    %5 = vector.shape_cast %4 : vector<8xf32> to vector<8x1xf32>
    %c0_3 = arith.constant 0 : index
    %c0_4 = arith.constant 0 : index
    %6 = vector.load %arg0[%c0_3, %c0_4] : memref<8x64xf32, #tpu.memory_space<vmem>>, vector<8x64xf32>
    %c0_5 = arith.constant 0 : index
    %c0_6 = arith.constant 0 : index
    %7 = vector.load %arg3[%c0_5, %c0_6] : memref<1x64xf32, #tpu.memory_space<vmem>>, vector<1x64xf32>
    %8 = vector.broadcast %7 : vector<1x64xf32> to vector<8x64xf32>
    %9 = arith.mulf %6, %8 : vector<8x64xf32>
    %cst_7 = arith.constant dense<0.000000e+00> : vector<8xf32>
    %10 = vector.multi_reduction <add>, %9, %cst_7 [1] : vector<8x64xf32> to vector<8xf32>
    %11 = vector.shape_cast %10 : vector<8xf32> to vector<8x1xf32>
    %12 = arith.addf %5, %11 : vector<8x1xf32>
    %c0_8 = arith.constant 0 : index
    %c0_9 = arith.constant 0 : index
    %13 = vector.load %arg4[%c0_8, %c0_9] : memref<1x1xf32, #tpu.memory_space<vmem>>, vector<1x1xf32>
    %14 = vector.broadcast %13 : vector<1x1xf32> to vector<8x1xf32>
    %15 = arith.addf %12, %14 : vector<8x1xf32>
    %c0_10 = arith.constant 0 : index
    %c0_11 = arith.constant 0 : index
    %16 = vector.load %arg5[%c0_10, %c0_11] : memref<8x1xf32, #tpu.memory_space<vmem>>, vector<8x1xf32>
    tpu.vector_store %arg5[%c0_10, %c0_11], %15 {strides = array<i32>} : memref<8x1xf32, #tpu.memory_space<vmem>>, vector<8x1xf32>,
    return
  }
}

module attributes {stable_mosaic.version = 11 : i64} {
  func.func @_fcn_fused_kernel(%arg0: memref<124x5xf32, #tpu.memory_space<vmem>>, %arg1: memref<5x64xf32, #tpu.memory_space<vmem>>, %arg2: memref<3x64x128xf32, #tpu.memory_space<vmem>>, %arg3: memref<2x128x64xf32, #tpu.memory_space<vmem>>, %arg4: memref<1x64xf32, #tpu.memory_space<vmem>>, %arg5: memref<1x64xf32, #tpu.memory_space<vmem>>, %arg6: memref<1x128xf32, #tpu.memory_space<vmem>>, %arg7: memref<1x128xf32, #tpu.memory_space<vmem>>, %arg8: memref<1x64xf32, #tpu.memory_space<vmem>>, %arg9: memref<1x64xf32, #tpu.memory_space<vmem>>, %arg10: memref<124x1xf32, #tpu.memory_space<vmem>>, %arg11: memref<122x1xf32, #tpu.memory_space<vmem>>, %arg12: memref<121x1xf32, #tpu.memory_space<vmem>>, %arg13: memref<8x121xf32, #tpu.memory_space<vmem>>, %arg14: memref<8x64xf32, #tpu.memory_space<vmem>>, %arg15: memref<124x64xf32, #tpu.memory_space<vmem>>, %arg16: memref<122x128xf32, #tpu.memory_space<vmem>>) attributes {dimension_semantics = [], scalar_prefetch = 0 : i64, scratch_operands = 2 : i64, tpu.core_type = #tpu.core_type<tc>} {
    %c0 = arith.constant 0 : index
    %c0_0 = arith.constant 0 : index
    %0 = vector.load %arg0[%c0, %c0_0] : memref<124x5xf32, #tpu.memory_space<vmem>>, vector<124x5xf32>
    %c0_1 = arith.constant 0 : index
    %c0_2 = arith.constant 0 : index
    %1 = vector.load %arg1[%c0_1, %c0_2] : memref<5x64xf32, #tpu.memory_space<vmem>>, vector<5x64xf32>
    %cst = arith.constant dense<0.000000e+00> : vector<124x64xf32>
    %2 = tpu.matmul %0, %1, %cst {dimension_numbers = #tpu.dot_dimension_numbers<[1], [0], [0], [1], [0, 0, 1, 1], [], []>} : vector<124x5xf32>, vector<5x64xf32>, vector<124x64xf32> -> vector<124x64xf32>
    %c0_3 = arith.constant 0 : index
    %c0_4 = arith.constant 0 : index
    %3 = vector.load %arg10[%c0_3, %c0_4] : memref<124x1xf32, #tpu.memory_space<vmem>>, vector<124x1xf32>
    %c0_5 = arith.constant 0 : index
    %c0_6 = arith.constant 0 : index
    %4 = vector.load %arg4[%c0_5, %c0_6] : memref<1x64xf32, #tpu.memory_space<vmem>>, vector<1x64xf32>
    %c0_7 = arith.constant 0 : index
    %c0_8 = arith.constant 0 : index
    %5 = vector.load %arg5[%c0_7, %c0_8] : memref<1x64xf32, #tpu.memory_space<vmem>>, vector<1x64xf32>
    %6 = vector.broadcast %3 : vector<124x1xf32> to vector<124x64xf32>
    %7 = arith.mulf %2, %6 : vector<124x64xf32>
    %cst_9 = arith.constant dense<0.000000e+00> : vector<64xf32>
    %8 = vector.multi_reduction <add>, %7, %cst_9 [0] : vector<124x64xf32> to vector<64xf32>
    %9 = vector.shape_cast %8 : vector<64xf32> to vector<1x64xf32>
    %cst_10 = arith.constant 0.010416667 : f32
    %10 = vector.broadcast %cst_10 : f32 to vector<1x64xf32>
    %11 = arith.mulf %9, %10 : vector<1x64xf32>
    %12 = vector.broadcast %11 : vector<1x64xf32> to vector<124x64xf32>
    %13 = arith.subf %2, %12 : vector<124x64xf32>
    %14 = vector.broadcast %3 : vector<124x1xf32> to vector<124x64xf32>
    %15 = arith.mulf %13, %14 : vector<124x64xf32>
    %16 = arith.mulf %15, %15 : vector<124x64xf32>
    %cst_11 = arith.constant dense<0.000000e+00> : vector<64xf32>
    %17 = vector.multi_reduction <add>, %16, %cst_11 [0] : vector<124x64xf32> to vector<64xf32>
    %18 = vector.shape_cast %17 : vector<64xf32> to vector<1x64xf32>
    %cst_12 = arith.constant 0.010416667 : f32
    %19 = vector.broadcast %cst_12 : f32 to vector<1x64xf32>
    %20 = arith.mulf %18, %19 : vector<1x64xf32>
    %cst_13 = arith.constant 1.000000e-03 : f32
    %21 = vector.broadcast %cst_13 : f32 to vector<1x64xf32>
    %22 = arith.addf %20, %21 : vector<1x64xf32>
    %23 = math.rsqrt %22 : vector<1x64xf32>
    %24 = arith.mulf %4, %23 : vector<1x64xf32>
    %25 = arith.mulf %11, %24 : vector<1x64xf32>
    %26 = arith.subf %5, %25 : vector<1x64xf32>
    %27 = vector.broadcast %24 : vector<1x64xf32> to vector<124x64xf32>
    %28 = arith.mulf %2, %27 : vector<124x64xf32>
    %29 = vector.broadcast %26 : vector<1x64xf32> to vector<124x64xf32>
    %30 = arith.addf %28, %29 : vector<124x64xf32>
    %cst_14 = arith.constant 0.000000e+00 : f32
    %31 = vector.broadcast %cst_14 : f32 to vector<124x64xf32>
    %32 = arith.maximumf %30, %31 : vector<124x64xf32>
    %33 = vector.broadcast %3 : vector<124x1xf32> to vector<124x64xf32>
    %34 = arith.mulf %32, %33 : vector<124x64xf32>
    %c0_15 = arith.constant 0 : index
    %c0_16 = arith.constant 0 : index
    %35 = vector.load %arg15[%c0_15, %c0_16] : memref<124x64xf32, #tpu.memory_space<vmem>>, vector<124x64xf32>
    tpu.vector_store %arg15[%c0_15, %c0_16], %34 {strides = array<i32>} : memref<124x64xf32, #tpu.memory_space<vmem>>, vector<124x64xf32>,
    %c0_17 = arith.constant 0 : index
    %c0_18 = arith.constant 0 : index
    %36 = vector.load %arg15[%c0_17, %c0_18] : memref<124x64xf32, #tpu.memory_space<vmem>>, vector<122x64xf32>
    %c0_19 = arith.constant 0 : index
    %c0_20 = arith.constant 0 : index
    %c0_21 = arith.constant 0 : index
    %37 = vector.load %arg2[%c0_19, %c0_20, %c0_21] : memref<3x64x128xf32, #tpu.memory_space<vmem>>, vector<1x64x128xf32>
    %38 = vector.shape_cast %37 : vector<1x64x128xf32> to vector<64x128xf32>
    %cst_22 = arith.constant dense<0.000000e+00> : vector<122x128xf32>
    %39 = tpu.matmul %36, %38, %cst_22 {dimension_numbers = #tpu.dot_dimension_numbers<[1], [0], [0], [1], [0, 0, 1, 1], [], []>} : vector<122x64xf32>, vector<64x128xf32>, vector<122x128xf32> -> vector<122x128xf32>
    %c1 = arith.constant 1 : index
    %c0_23 = arith.constant 0 : index
    %40 = vector.load %arg15[%c1, %c0_23] : memref<124x64xf32, #tpu.memory_space<vmem>>, vector<122x64xf32>
    %c1_24 = arith.constant 1 : index
    %c0_25 = arith.constant 0 : index
    %c0_26 = arith.constant 0 : index
    %41 = vector.load %arg2[%c1_24, %c0_25, %c0_26] : memref<3x64x128xf32, #tpu.memory_space<vmem>>, vector<1x64x128xf32>
    %42 = vector.shape_cast %41 : vector<1x64x128xf32> to vector<64x128xf32>
    %cst_27 = arith.constant dense<0.000000e+00> : vector<122x128xf32>
    %43 = tpu.matmul %40, %42, %cst_27 {dimension_numbers = #tpu.dot_dimension_numbers<[1], [0], [0], [1], [0, 0, 1, 1], [], []>} : vector<122x64xf32>, vector<64x128xf32>, vector<122x128xf32> -> vector<122x128xf32>
    %44 = arith.addf %39, %43 : vector<122x128xf32>
    %c2 = arith.constant 2 : index
    %c0_28 = arith.constant 0 : index
    %45 = vector.load %arg15[%c2, %c0_28] : memref<124x64xf32, #tpu.memory_space<vmem>>, vector<122x64xf32>
    %c2_29 = arith.constant 2 : index
    %c0_30 = arith.constant 0 : index
    %c0_31 = arith.constant 0 : index
    %46 = vector.load %arg2[%c2_29, %c0_30, %c0_31] : memref<3x64x128xf32, #tpu.memory_space<vmem>>, vector<1x64x128xf32>
    %47 = vector.shape_cast %46 : vector<1x64x128xf32> to vector<64x128xf32>
    %cst_32 = arith.constant dense<0.000000e+00> : vector<122x128xf32>
    %48 = tpu.matmul %45, %47, %cst_32 {dimension_numbers = #tpu.dot_dimension_numbers<[1], [0], [0], [1], [0, 0, 1, 1], [], []>} : vector<122x64xf32>, vector<64x128xf32>, vector<122x128xf32> -> vector<122x128xf32>
    %49 = arith.addf %44, %48 : vector<122x128xf32>
    %c0_33 = arith.constant 0 : index
    %c0_34 = arith.constant 0 : index
    %50 = vector.load %arg11[%c0_33, %c0_34] : memref<122x1xf32, #tpu.memory_space<vmem>>, vector<122x1xf32>
    %c0_35 = arith.constant 0 : index
    %c0_36 = arith.constant 0 : index
    %51 = vector.load %arg6[%c0_35, %c0_36] : memref<1x128xf32, #tpu.memory_space<vmem>>, vector<1x128xf32>
    %c0_37 = arith.constant 0 : index
    %c0_38 = arith.constant 0 : index
    %52 = vector.load %arg7[%c0_37, %c0_38] : memref<1x128xf32, #tpu.memory_space<vmem>>, vector<1x128xf32>
    %53 = vector.broadcast %50 : vector<122x1xf32> to vector<122x128xf32>
    %54 = arith.mulf %49, %53 : vector<122x128xf32>
    %cst_39 = arith.constant dense<0.000000e+00> : vector<128xf32>
    %55 = vector.multi_reduction <add>, %54, %cst_39 [0] : vector<122x128xf32> to vector<128xf32>
    %56 = vector.shape_cast %55 : vector<128xf32> to vector<1x128xf32>
    %cst_40 = arith.constant 1.250000e-02 : f32
    %57 = vector.broadcast %cst_40 : f32 to vector<1x128xf32>
    %58 = arith.mulf %56, %57 : vector<1x128xf32>
    %59 = vector.broadcast %58 : vector<1x128xf32> to vector<122x128xf32>
    %60 = arith.subf %49, %59 : vector<122x128xf32>
    %61 = vector.broadcast %50 : vector<122x1xf32> to vector<122x128xf32>
    %62 = arith.mulf %60, %61 : vector<122x128xf32>
    %63 = arith.mulf %62, %62 : vector<122x128xf32>
    %cst_41 = arith.constant dense<0.000000e+00> : vector<128xf32>
    %64 = vector.multi_reduction <add>, %63, %cst_41 [0] : vector<122x128xf32> to vector<128xf32>
    %65 = vector.shape_cast %64 : vector<128xf32> to vector<1x128xf32>
    %cst_42 = arith.constant 1.250000e-02 : f32
    %66 = vector.broadcast %cst_42 : f32 to vector<1x128xf32>
    %67 = arith.mulf %65, %66 : vector<1x128xf32>
    %cst_43 = arith.constant 1.000000e-03 : f32
    %68 = vector.broadcast %cst_43 : f32 to vector<1x128xf32>
    %69 = arith.addf %67, %68 : vector<1x128xf32>
    %70 = math.rsqrt %69 : vector<1x128xf32>
    %71 = arith.mulf %51, %70 : vector<1x128xf32>
    %72 = arith.mulf %58, %71 : vector<1x128xf32>
    %73 = arith.subf %52, %72 : vector<1x128xf32>
    %74 = vector.broadcast %71 : vector<1x128xf32> to vector<122x128xf32>
    %75 = arith.mulf %49, %74 : vector<122x128xf32>
    %76 = vector.broadcast %73 : vector<1x128xf32> to vector<122x128xf32>
    %77 = arith.addf %75, %76 : vector<122x128xf32>
    %cst_44 = arith.constant 0.000000e+00 : f32
    %78 = vector.broadcast %cst_44 : f32 to vector<122x128xf32>
    %79 = arith.maximumf %77, %78 : vector<122x128xf32>
    %80 = vector.broadcast %50 : vector<122x1xf32> to vector<122x128xf32>
    %81 = arith.mulf %79, %80 : vector<122x128xf32>
    %c0_45 = arith.constant 0 : index
    %c0_46 = arith.constant 0 : index
    %82 = vector.load %arg16[%c0_45, %c0_46] : memref<122x128xf32, #tpu.memory_space<vmem>>, vector<122x128xf32>
    tpu.vector_store %arg16[%c0_45, %c0_46], %81 {strides = array<i32>} : memref<122x128xf32, #tpu.memory_space<vmem>>, vector<122x128xf32>,
    %c0_47 = arith.constant 0 : index
    %c0_48 = arith.constant 0 : index
    %83 = vector.load %arg16[%c0_47, %c0_48] : memref<122x128xf32, #tpu.memory_space<vmem>>, vector<121x128xf32>
    %c0_49 = arith.constant 0 : index
    %c0_50 = arith.constant 0 : index
    %c0_51 = arith.constant 0 : index
    %84 = vector.load %arg3[%c0_49, %c0_50, %c0_51] : memref<2x128x64xf32, #tpu.memory_space<vmem>>, vector<1x128x64xf32>
    %85 = vector.shape_cast %84 : vector<1x128x64xf32> to vector<128x64xf32>
    %cst_52 = arith.constant dense<0.000000e+00> : vector<121x64xf32>
    %86 = tpu.matmul %83, %85, %cst_52 {dimension_numbers = #tpu.dot_dimension_numbers<[1], [0], [0], [1], [0, 0, 1, 1], [], []>} : vector<121x128xf32>, vector<128x64xf32>, vector<121x64xf32> -> vector<121x64xf32>
    %c1_53 = arith.constant 1 : index
    %c0_54 = arith.constant 0 : index
    %87 = vector.load %arg16[%c1_53, %c0_54] : memref<122x128xf32, #tpu.memory_space<vmem>>, vector<121x128xf32>
    %c1_55 = arith.constant 1 : index
    %c0_56 = arith.constant 0 : index
    %c0_57 = arith.constant 0 : index
    %88 = vector.load %arg3[%c1_55, %c0_56, %c0_57] : memref<2x128x64xf32, #tpu.memory_space<vmem>>, vector<1x128x64xf32>
    %89 = vector.shape_cast %88 : vector<1x128x64xf32> to vector<128x64xf32>
    %cst_58 = arith.constant dense<0.000000e+00> : vector<121x64xf32>
    %90 = tpu.matmul %87, %89, %cst_58 {dimension_numbers = #tpu.dot_dimension_numbers<[1], [0], [0], [1], [0, 0, 1, 1], [], []>} : vector<121x128xf32>, vector<128x64xf32>, vector<121x64xf32> -> vector<121x64xf32>
    %91 = arith.addf %86, %90 : vector<121x64xf32>
    %c0_59 = arith.constant 0 : index
    %c0_60 = arith.constant 0 : index
    %92 = vector.load %arg12[%c0_59, %c0_60] : memref<121x1xf32, #tpu.memory_space<vmem>>, vector<121x1xf32>
    %c0_61 = arith.constant 0 : index
    %c0_62 = arith.constant 0 : index
    %93 = vector.load %arg8[%c0_61, %c0_62] : memref<1x64xf32, #tpu.memory_space<vmem>>, vector<1x64xf32>
    %c0_63 = arith.constant 0 : index
    %c0_64 = arith.constant 0 : index
    %94 = vector.load %arg9[%c0_63, %c0_64] : memref<1x64xf32, #tpu.memory_space<vmem>>, vector<1x64xf32>
    %95 = vector.broadcast %92 : vector<121x1xf32> to vector<121x64xf32>
    %96 = arith.mulf %91, %95 : vector<121x64xf32>
    %cst_65 = arith.constant dense<0.000000e+00> : vector<64xf32>
    %97 = vector.multi_reduction <add>, %96, %cst_65 [0] : vector<121x64xf32> to vector<64xf32>
    %98 = vector.shape_cast %97 : vector<64xf32> to vector<1x64xf32>
    %cst_66 = arith.constant 0.013888889 : f32
    %99 = vector.broadcast %cst_66 : f32 to vector<1x64xf32>
    %100 = arith.mulf %98, %99 : vector<1x64xf32>
    %101 = vector.broadcast %100 : vector<1x64xf32> to vector<121x64xf32>
    %102 = arith.subf %91, %101 : vector<121x64xf32>
    %103 = vector.broadcast %92 : vector<121x1xf32> to vector<121x64xf32>
    %104 = arith.mulf %102, %103 : vector<121x64xf32>
    %105 = arith.mulf %104, %104 : vector<121x64xf32>
    %cst_67 = arith.constant dense<0.000000e+00> : vector<64xf32>
    %106 = vector.multi_reduction <add>, %105, %cst_67 [0] : vector<121x64xf32> to vector<64xf32>
    %107 = vector.shape_cast %106 : vector<64xf32> to vector<1x64xf32>
    %cst_68 = arith.constant 0.013888889 : f32
    %108 = vector.broadcast %cst_68 : f32 to vector<1x64xf32>
    %109 = arith.mulf %107, %108 : vector<1x64xf32>
    %cst_69 = arith.constant 1.000000e-03 : f32
    %110 = vector.broadcast %cst_69 : f32 to vector<1x64xf32>
    %111 = arith.addf %109, %110 : vector<1x64xf32>
    %112 = math.rsqrt %111 : vector<1x64xf32>
    %113 = arith.mulf %93, %112 : vector<1x64xf32>
    %114 = arith.mulf %100, %113 : vector<1x64xf32>
    %115 = arith.subf %94, %114 : vector<1x64xf32>
    %116 = vector.broadcast %113 : vector<1x64xf32> to vector<121x64xf32>
    %117 = arith.mulf %91, %116 : vector<121x64xf32>
    %118 = vector.broadcast %115 : vector<1x64xf32> to vector<121x64xf32>
    %119 = arith.addf %117, %118 : vector<121x64xf32>
    %cst_70 = arith.constant 0.000000e+00 : f32
    %120 = vector.broadcast %cst_70 : f32 to vector<121x64xf32>
    %121 = arith.maximumf %119, %120 : vector<121x64xf32>
    %122 = vector.broadcast %92 : vector<121x1xf32> to vector<121x64xf32>
    %123 = arith.mulf %121, %122 : vector<121x64xf32>
    %c0_71 = arith.constant 0 : index
    %c0_72 = arith.constant 0 : index
    %124 = vector.load %arg13[%c0_71, %c0_72] : memref<8x121xf32, #tpu.memory_space<vmem>>, vector<8x121xf32>
    %cst_73 = arith.constant dense<0.000000e+00> : vector<8x64xf32>
    %125 = tpu.matmul %124, %123, %cst_73 {dimension_numbers = #tpu.dot_dimension_numbers<[1], [0], [0], [1], [0, 0, 1, 1], [], []>} : vector<8x121xf32>, vector<121x64xf32>, vector<8x64xf32> -> vector<8x64xf32>
    %c0_74 = arith.constant 0 : index
    %c0_75 = arith.constant 0 : index
    %126 = vector.load %arg14[%c0_74, %c0_75] : memref<8x64xf32, #tpu.memory_space<vmem>>, vector<8x64xf32>
    tpu.vector_store %arg14[%c0_74, %c0_75], %125 {strides = array<i32>} : memref<8x64xf32, #tpu.memory_space<vmem>>, vector<8x64xf32>,
    return
  }
}

module attributes {stable_mosaic.version = 11 : i64} {
  func.func @_lstm_kernel(%arg0: memref<8x16xf32, #tpu.memory_space<vmem>>, %arg1: memref<16x256xf32, #tpu.memory_space<vmem>>, %arg2: memref<64x256xf32, #tpu.memory_space<vmem>>, %arg3: memref<1x256xf32, #tpu.memory_space<vmem>>, %arg4: memref<8x64xf32, #tpu.memory_space<vmem>>, %arg5: memref<8x256xf32, #tpu.memory_space<vmem>>) attributes {dimension_semantics = [], scalar_prefetch = 0 : i64, scratch_operands = 1 : i64, tpu.core_type = #tpu.core_type<tc>} {
    %c0 = arith.constant 0 : index
    %c0_0 = arith.constant 0 : index
    %0 = vector.load %arg0[%c0, %c0_0] : memref<8x16xf32, #tpu.memory_space<vmem>>, vector<8x16xf32>
    %c0_1 = arith.constant 0 : index
    %c0_2 = arith.constant 0 : index
    %1 = vector.load %arg1[%c0_1, %c0_2] : memref<16x256xf32, #tpu.memory_space<vmem>>, vector<16x256xf32>
    %cst = arith.constant dense<0.000000e+00> : vector<8x256xf32>
    %2 = tpu.matmul %0, %1, %cst {dimension_numbers = #tpu.dot_dimension_numbers<[1], [0], [0], [1], [0, 0, 1, 1], [], []>} : vector<8x16xf32>, vector<16x256xf32>, vector<8x256xf32> -> vector<8x256xf32>
    %c0_3 = arith.constant 0 : index
    %c0_4 = arith.constant 0 : index
    %3 = vector.load %arg3[%c0_3, %c0_4] : memref<1x256xf32, #tpu.memory_space<vmem>>, vector<1x256xf32>
    %4 = vector.broadcast %3 : vector<1x256xf32> to vector<8x256xf32>
    %5 = arith.addf %2, %4 : vector<8x256xf32>
    %c0_5 = arith.constant 0 : index
    %c0_6 = arith.constant 0 : index
    %6 = vector.load %arg5[%c0_5, %c0_6] : memref<8x256xf32, #tpu.memory_space<vmem>>, vector<8x256xf32>
    tpu.vector_store %arg5[%c0_5, %c0_6], %5 {strides = array<i32>} : memref<8x256xf32, #tpu.memory_space<vmem>>, vector<8x256xf32>,
    %c0_7 = arith.constant 0 : index
    %c0_8 = arith.constant 0 : index
    %7 = vector.load %arg2[%c0_7, %c0_8] : memref<64x256xf32, #tpu.memory_space<vmem>>, vector<64x256xf32>
    %cst_9 = arith.constant 0.000000e+00 : f32
    %8 = vector.broadcast %cst_9 : f32 to vector<1x64xf32>
    %c0_i32 = arith.constant 0 : i32
    %9 = arith.index_cast %c0_i32 : i32 to index
    %c0_10 = arith.constant 0 : index
    %10 = vector.load %arg5[%9, %c0_10] : memref<8x256xf32, #tpu.memory_space<vmem>>, vector<1x256xf32>
    %cst_11 = arith.constant dense<0.000000e+00> : vector<1x256xf32>
    %11 = tpu.matmul %8, %7, %cst_11 {dimension_numbers = #tpu.dot_dimension_numbers<[1], [0], [0], [1], [0, 0, 1, 1], [], []>} : vector<1x64xf32>, vector<64x256xf32>, vector<1x256xf32> -> vector<1x256xf32>
    %12 = arith.addf %10, %11 : vector<1x256xf32>
    %13 = vector.extract_strided_slice %12 {offsets = [0, 0], sizes = [1, 64], strides = [1, 1]} : vector<1x256xf32> to vector<1x64xf32>
    %cst_12 = arith.constant 0.000000e+00 : f32
    %14 = vector.broadcast %cst_12 : f32 to vector<1x64xf32>
    %15 = arith.subf %14, %13 : vector<1x64xf32>
    %16 = math.exp %15 : vector<1x64xf32>
    %cst_13 = arith.constant 1.000000e+00 : f32
    %17 = vector.broadcast %cst_13 : f32 to vector<1x64xf32>
    %18 = arith.addf %17, %16 : vector<1x64xf32>
    %cst_14 = arith.constant 1.000000e+00 : f32
    %19 = vector.broadcast %cst_14 : f32 to vector<1x64xf32>
    %20 = arith.divf %19, %18 : vector<1x64xf32>
    %21 = vector.extract_strided_slice %12 {offsets = [0, 64], sizes = [1, 64], strides = [1, 1]} : vector<1x256xf32> to vector<1x64xf32>
    %cst_15 = arith.constant 0.000000e+00 : f32
    %22 = vector.broadcast %cst_15 : f32 to vector<1x64xf32>
    %23 = arith.subf %22, %21 : vector<1x64xf32>
    %24 = math.exp %23 : vector<1x64xf32>
    %cst_16 = arith.constant 1.000000e+00 : f32
    %25 = vector.broadcast %cst_16 : f32 to vector<1x64xf32>
    %26 = arith.addf %25, %24 : vector<1x64xf32>
    %cst_17 = arith.constant 1.000000e+00 : f32
    %27 = vector.broadcast %cst_17 : f32 to vector<1x64xf32>
    %28 = arith.divf %27, %26 : vector<1x64xf32>
    %29 = vector.extract_strided_slice %12 {offsets = [0, 128], sizes = [1, 64], strides = [1, 1]} : vector<1x256xf32> to vector<1x64xf32>
    %30 = math.tanh %29 : vector<1x64xf32>
    %31 = vector.extract_strided_slice %12 {offsets = [0, 192], sizes = [1, 64], strides = [1, 1]} : vector<1x256xf32> to vector<1x64xf32>
    %cst_18 = arith.constant 0.000000e+00 : f32
    %32 = vector.broadcast %cst_18 : f32 to vector<1x64xf32>
    %33 = arith.subf %32, %31 : vector<1x64xf32>
    %34 = math.exp %33 : vector<1x64xf32>
    %cst_19 = arith.constant 1.000000e+00 : f32
    %35 = vector.broadcast %cst_19 : f32 to vector<1x64xf32>
    %36 = arith.addf %35, %34 : vector<1x64xf32>
    %cst_20 = arith.constant 1.000000e+00 : f32
    %37 = vector.broadcast %cst_20 : f32 to vector<1x64xf32>
    %38 = arith.divf %37, %36 : vector<1x64xf32>
    %39 = arith.mulf %28, %8 : vector<1x64xf32>
    %40 = arith.mulf %20, %30 : vector<1x64xf32>
    %41 = arith.addf %39, %40 : vector<1x64xf32>
    %42 = math.tanh %41 : vector<1x64xf32>
    %43 = arith.mulf %38, %42 : vector<1x64xf32>
    %44 = arith.index_cast %c0_i32 : i32 to index
    %c0_21 = arith.constant 0 : index
    %45 = vector.load %arg4[%44, %c0_21] : memref<8x64xf32, #tpu.memory_space<vmem>>, vector<1x64xf32>
    tpu.vector_store %arg4[%44, %c0_21], %43 {strides = array<i32>} : memref<8x64xf32, #tpu.memory_space<vmem>>, vector<1x64xf32>,
    %c1_i32 = arith.constant 1 : i32
    %46 = arith.index_cast %c1_i32 : i32 to index
    %c0_22 = arith.constant 0 : index
    %47 = vector.load %arg5[%46, %c0_22] : memref<8x256xf32, #tpu.memory_space<vmem>>, vector<1x256xf32>
    %cst_23 = arith.constant dense<0.000000e+00> : vector<1x256xf32>
    %48 = tpu.matmul %43, %7, %cst_23 {dimension_numbers = #tpu.dot_dimension_numbers<[1], [0], [0], [1], [0, 0, 1, 1], [], []>} : vector<1x64xf32>, vector<64x256xf32>, vector<1x256xf32> -> vector<1x256xf32>
    %49 = arith.addf %47, %48 : vector<1x256xf32>
    %50 = vector.extract_strided_slice %49 {offsets = [0, 0], sizes = [1, 64], strides = [1, 1]} : vector<1x256xf32> to vector<1x64xf32>
    %cst_24 = arith.constant 0.000000e+00 : f32
    %51 = vector.broadcast %cst_24 : f32 to vector<1x64xf32>
    %52 = arith.subf %51, %50 : vector<1x64xf32>
    %53 = math.exp %52 : vector<1x64xf32>
    %cst_25 = arith.constant 1.000000e+00 : f32
    %54 = vector.broadcast %cst_25 : f32 to vector<1x64xf32>
    %55 = arith.addf %54, %53 : vector<1x64xf32>
    %cst_26 = arith.constant 1.000000e+00 : f32
    %56 = vector.broadcast %cst_26 : f32 to vector<1x64xf32>
    %57 = arith.divf %56, %55 : vector<1x64xf32>
    %58 = vector.extract_strided_slice %49 {offsets = [0, 64], sizes = [1, 64], strides = [1, 1]} : vector<1x256xf32> to vector<1x64xf32>
    %cst_27 = arith.constant 0.000000e+00 : f32
    %59 = vector.broadcast %cst_27 : f32 to vector<1x64xf32>
    %60 = arith.subf %59, %58 : vector<1x64xf32>
    %61 = math.exp %60 : vector<1x64xf32>
    %cst_28 = arith.constant 1.000000e+00 : f32
    %62 = vector.broadcast %cst_28 : f32 to vector<1x64xf32>
    %63 = arith.addf %62, %61 : vector<1x64xf32>
    %cst_29 = arith.constant 1.000000e+00 : f32
    %64 = vector.broadcast %cst_29 : f32 to vector<1x64xf32>
    %65 = arith.divf %64, %63 : vector<1x64xf32>
    %66 = vector.extract_strided_slice %49 {offsets = [0, 128], sizes = [1, 64], strides = [1, 1]} : vector<1x256xf32> to vector<1x64xf32>
    %67 = math.tanh %66 : vector<1x64xf32>
    %68 = vector.extract_strided_slice %49 {offsets = [0, 192], sizes = [1, 64], strides = [1, 1]} : vector<1x256xf32> to vector<1x64xf32>
    %cst_30 = arith.constant 0.000000e+00 : f32
    %69 = vector.broadcast %cst_30 : f32 to vector<1x64xf32>
    %70 = arith.subf %69, %68 : vector<1x64xf32>
    %71 = math.exp %70 : vector<1x64xf32>
    %cst_31 = arith.constant 1.000000e+00 : f32
    %72 = vector.broadcast %cst_31 : f32 to vector<1x64xf32>
    %73 = arith.addf %72, %71 : vector<1x64xf32>
    %cst_32 = arith.constant 1.000000e+00 : f32
    %74 = vector.broadcast %cst_32 : f32 to vector<1x64xf32>
    %75 = arith.divf %74, %73 : vector<1x64xf32>
    %76 = arith.mulf %65, %41 : vector<1x64xf32>
    %77 = arith.mulf %57, %67 : vector<1x64xf32>
    %78 = arith.addf %76, %77 : vector<1x64xf32>
    %79 = math.tanh %78 : vector<1x64xf32>
    %80 = arith.mulf %75, %79 : vector<1x64xf32>
    %81 = arith.index_cast %c1_i32 : i32 to index
    %c0_33 = arith.constant 0 : index
    %82 = vector.load %arg4[%81, %c0_33] : memref<8x64xf32, #tpu.memory_space<vmem>>, vector<1x64xf32>
    tpu.vector_store %arg4[%81, %c0_33], %80 {strides = array<i32>} : memref<8x64xf32, #tpu.memory_space<vmem>>, vector<1x64xf32>,
    %c2_i32 = arith.constant 2 : i32
    %83 = arith.index_cast %c2_i32 : i32 to index
    %c0_34 = arith.constant 0 : index
    %84 = vector.load %arg5[%83, %c0_34] : memref<8x256xf32, #tpu.memory_space<vmem>>, vector<1x256xf32>
    %cst_35 = arith.constant dense<0.000000e+00> : vector<1x256xf32>
    %85 = tpu.matmul %80, %7, %cst_35 {dimension_numbers = #tpu.dot_dimension_numbers<[1], [0], [0], [1], [0, 0, 1, 1], [], []>} : vector<1x64xf32>, vector<64x256xf32>, vector<1x256xf32> -> vector<1x256xf32>
    %86 = arith.addf %84, %85 : vector<1x256xf32>
    %87 = vector.extract_strided_slice %86 {offsets = [0, 0], sizes = [1, 64], strides = [1, 1]} : vector<1x256xf32> to vector<1x64xf32>
    %cst_36 = arith.constant 0.000000e+00 : f32
    %88 = vector.broadcast %cst_36 : f32 to vector<1x64xf32>
    %89 = arith.subf %88, %87 : vector<1x64xf32>
    %90 = math.exp %89 : vector<1x64xf32>
    %cst_37 = arith.constant 1.000000e+00 : f32
    %91 = vector.broadcast %cst_37 : f32 to vector<1x64xf32>
    %92 = arith.addf %91, %90 : vector<1x64xf32>
    %cst_38 = arith.constant 1.000000e+00 : f32
    %93 = vector.broadcast %cst_38 : f32 to vector<1x64xf32>
    %94 = arith.divf %93, %92 : vector<1x64xf32>
    %95 = vector.extract_strided_slice %86 {offsets = [0, 64], sizes = [1, 64], strides = [1, 1]} : vector<1x256xf32> to vector<1x64xf32>
    %cst_39 = arith.constant 0.000000e+00 : f32
    %96 = vector.broadcast %cst_39 : f32 to vector<1x64xf32>
    %97 = arith.subf %96, %95 : vector<1x64xf32>
    %98 = math.exp %97 : vector<1x64xf32>
    %cst_40 = arith.constant 1.000000e+00 : f32
    %99 = vector.broadcast %cst_40 : f32 to vector<1x64xf32>
    %100 = arith.addf %99, %98 : vector<1x64xf32>
    %cst_41 = arith.constant 1.000000e+00 : f32
    %101 = vector.broadcast %cst_41 : f32 to vector<1x64xf32>
    %102 = arith.divf %101, %100 : vector<1x64xf32>
    %103 = vector.extract_strided_slice %86 {offsets = [0, 128], sizes = [1, 64], strides = [1, 1]} : vector<1x256xf32> to vector<1x64xf32>
    %104 = math.tanh %103 : vector<1x64xf32>
    %105 = vector.extract_strided_slice %86 {offsets = [0, 192], sizes = [1, 64], strides = [1, 1]} : vector<1x256xf32> to vector<1x64xf32>
    %cst_42 = arith.constant 0.000000e+00 : f32
    %106 = vector.broadcast %cst_42 : f32 to vector<1x64xf32>
    %107 = arith.subf %106, %105 : vector<1x64xf32>
    %108 = math.exp %107 : vector<1x64xf32>
    %cst_43 = arith.constant 1.000000e+00 : f32
    %109 = vector.broadcast %cst_43 : f32 to vector<1x64xf32>
    %110 = arith.addf %109, %108 : vector<1x64xf32>
    %cst_44 = arith.constant 1.000000e+00 : f32
    %111 = vector.broadcast %cst_44 : f32 to vector<1x64xf32>
    %112 = arith.divf %111, %110 : vector<1x64xf32>
    %113 = arith.mulf %102, %78 : vector<1x64xf32>
    %114 = arith.mulf %94, %104 : vector<1x64xf32>
    %115 = arith.addf %113, %114 : vector<1x64xf32>
    %116 = math.tanh %115 : vector<1x64xf32>
    %117 = arith.mulf %112, %116 : vector<1x64xf32>
    %118 = arith.index_cast %c2_i32 : i32 to index
    %c0_45 = arith.constant 0 : index
    %119 = vector.load %arg4[%118, %c0_45] : memref<8x64xf32, #tpu.memory_space<vmem>>, vector<1x64xf32>
    tpu.vector_store %arg4[%118, %c0_45], %117 {strides = array<i32>} : memref<8x64xf32, #tpu.memory_space<vmem>>, vector<1x64xf32>,
    %c3_i32 = arith.constant 3 : i32
    %120 = arith.index_cast %c3_i32 : i32 to index
    %c0_46 = arith.constant 0 : index
    %121 = vector.load %arg5[%120, %c0_46] : memref<8x256xf32, #tpu.memory_space<vmem>>, vector<1x256xf32>
    %cst_47 = arith.constant dense<0.000000e+00> : vector<1x256xf32>
    %122 = tpu.matmul %117, %7, %cst_47 {dimension_numbers = #tpu.dot_dimension_numbers<[1], [0], [0], [1], [0, 0, 1, 1], [], []>} : vector<1x64xf32>, vector<64x256xf32>, vector<1x256xf32> -> vector<1x256xf32>
    %123 = arith.addf %121, %122 : vector<1x256xf32>
    %124 = vector.extract_strided_slice %123 {offsets = [0, 0], sizes = [1, 64], strides = [1, 1]} : vector<1x256xf32> to vector<1x64xf32>
    %cst_48 = arith.constant 0.000000e+00 : f32
    %125 = vector.broadcast %cst_48 : f32 to vector<1x64xf32>
    %126 = arith.subf %125, %124 : vector<1x64xf32>
    %127 = math.exp %126 : vector<1x64xf32>
    %cst_49 = arith.constant 1.000000e+00 : f32
    %128 = vector.broadcast %cst_49 : f32 to vector<1x64xf32>
    %129 = arith.addf %128, %127 : vector<1x64xf32>
    %cst_50 = arith.constant 1.000000e+00 : f32
    %130 = vector.broadcast %cst_50 : f32 to vector<1x64xf32>
    %131 = arith.divf %130, %129 : vector<1x64xf32>
    %132 = vector.extract_strided_slice %123 {offsets = [0, 64], sizes = [1, 64], strides = [1, 1]} : vector<1x256xf32> to vector<1x64xf32>
    %cst_51 = arith.constant 0.000000e+00 : f32
    %133 = vector.broadcast %cst_51 : f32 to vector<1x64xf32>
    %134 = arith.subf %133, %132 : vector<1x64xf32>
    %135 = math.exp %134 : vector<1x64xf32>
    %cst_52 = arith.constant 1.000000e+00 : f32
    %136 = vector.broadcast %cst_52 : f32 to vector<1x64xf32>
    %137 = arith.addf %136, %135 : vector<1x64xf32>
    %cst_53 = arith.constant 1.000000e+00 : f32
    %138 = vector.broadcast %cst_53 : f32 to vector<1x64xf32>
    %139 = arith.divf %138, %137 : vector<1x64xf32>
    %140 = vector.extract_strided_slice %123 {offsets = [0, 128], sizes = [1, 64], strides = [1, 1]} : vector<1x256xf32> to vector<1x64xf32>
    %141 = math.tanh %140 : vector<1x64xf32>
    %142 = vector.extract_strided_slice %123 {offsets = [0, 192], sizes = [1, 64], strides = [1, 1]} : vector<1x256xf32> to vector<1x64xf32>
    %cst_54 = arith.constant 0.000000e+00 : f32
    %143 = vector.broadcast %cst_54 : f32 to vector<1x64xf32>
    %144 = arith.subf %143, %142 : vector<1x64xf32>
    %145 = math.exp %144 : vector<1x64xf32>
    %cst_55 = arith.constant 1.000000e+00 : f32
    %146 = vector.broadcast %cst_55 : f32 to vector<1x64xf32>
    %147 = arith.addf %146, %145 : vector<1x64xf32>
    %cst_56 = arith.constant 1.000000e+00 : f32
    %148 = vector.broadcast %cst_56 : f32 to vector<1x64xf32>
    %149 = arith.divf %148, %147 : vector<1x64xf32>
    %150 = arith.mulf %139, %115 : vector<1x64xf32>
    %151 = arith.mulf %131, %141 : vector<1x64xf32>
    %152 = arith.addf %150, %151 : vector<1x64xf32>
    %153 = math.tanh %152 : vector<1x64xf32>
    %154 = arith.mulf %149, %153 : vector<1x64xf32>
    %155 = arith.index_cast %c3_i32 : i32 to index
    %c0_57 = arith.constant 0 : index
    %156 = vector.load %arg4[%155, %c0_57] : memref<8x64xf32, #tpu.memory_space<vmem>>, vector<1x64xf32>
    tpu.vector_store %arg4[%155, %c0_57], %154 {strides = array<i32>} : memref<8x64xf32, #tpu.memory_space<vmem>>, vector<1x64xf32>,
    %c4_i32 = arith.constant 4 : i32
    %157 = arith.index_cast %c4_i32 : i32 to index
    %c0_58 = arith.constant 0 : index
    %158 = vector.load %arg5[%157, %c0_58] : memref<8x256xf32, #tpu.memory_space<vmem>>, vector<1x256xf32>
    %cst_59 = arith.constant dense<0.000000e+00> : vector<1x256xf32>
    %159 = tpu.matmul %154, %7, %cst_59 {dimension_numbers = #tpu.dot_dimension_numbers<[1], [0], [0], [1], [0, 0, 1, 1], [], []>} : vector<1x64xf32>, vector<64x256xf32>, vector<1x256xf32> -> vector<1x256xf32>
    %160 = arith.addf %158, %159 : vector<1x256xf32>
    %161 = vector.extract_strided_slice %160 {offsets = [0, 0], sizes = [1, 64], strides = [1, 1]} : vector<1x256xf32> to vector<1x64xf32>
    %cst_60 = arith.constant 0.000000e+00 : f32
    %162 = vector.broadcast %cst_60 : f32 to vector<1x64xf32>
    %163 = arith.subf %162, %161 : vector<1x64xf32>
    %164 = math.exp %163 : vector<1x64xf32>
    %cst_61 = arith.constant 1.000000e+00 : f32
    %165 = vector.broadcast %cst_61 : f32 to vector<1x64xf32>
    %166 = arith.addf %165, %164 : vector<1x64xf32>
    %cst_62 = arith.constant 1.000000e+00 : f32
    %167 = vector.broadcast %cst_62 : f32 to vector<1x64xf32>
    %168 = arith.divf %167, %166 : vector<1x64xf32>
    %169 = vector.extract_strided_slice %160 {offsets = [0, 64], sizes = [1, 64], strides = [1, 1]} : vector<1x256xf32> to vector<1x64xf32>
    %cst_63 = arith.constant 0.000000e+00 : f32
    %170 = vector.broadcast %cst_63 : f32 to vector<1x64xf32>
    %171 = arith.subf %170, %169 : vector<1x64xf32>
    %172 = math.exp %171 : vector<1x64xf32>
    %cst_64 = arith.constant 1.000000e+00 : f32
    %173 = vector.broadcast %cst_64 : f32 to vector<1x64xf32>
    %174 = arith.addf %173, %172 : vector<1x64xf32>
    %cst_65 = arith.constant 1.000000e+00 : f32
    %175 = vector.broadcast %cst_65 : f32 to vector<1x64xf32>
    %176 = arith.divf %175, %174 : vector<1x64xf32>
    %177 = vector.extract_strided_slice %160 {offsets = [0, 128], sizes = [1, 64], strides = [1, 1]} : vector<1x256xf32> to vector<1x64xf32>
    %178 = math.tanh %177 : vector<1x64xf32>
    %179 = vector.extract_strided_slice %160 {offsets = [0, 192], sizes = [1, 64], strides = [1, 1]} : vector<1x256xf32> to vector<1x64xf32>
    %cst_66 = arith.constant 0.000000e+00 : f32
    %180 = vector.broadcast %cst_66 : f32 to vector<1x64xf32>
    %181 = arith.subf %180, %179 : vector<1x64xf32>
    %182 = math.exp %181 : vector<1x64xf32>
    %cst_67 = arith.constant 1.000000e+00 : f32
    %183 = vector.broadcast %cst_67 : f32 to vector<1x64xf32>
    %184 = arith.addf %183, %182 : vector<1x64xf32>
    %cst_68 = arith.constant 1.000000e+00 : f32
    %185 = vector.broadcast %cst_68 : f32 to vector<1x64xf32>
    %186 = arith.divf %185, %184 : vector<1x64xf32>
    %187 = arith.mulf %176, %152 : vector<1x64xf32>
    %188 = arith.mulf %168, %178 : vector<1x64xf32>
    %189 = arith.addf %187, %188 : vector<1x64xf32>
    %190 = math.tanh %189 : vector<1x64xf32>
    %191 = arith.mulf %186, %190 : vector<1x64xf32>
    %192 = arith.index_cast %c4_i32 : i32 to index
    %c0_69 = arith.constant 0 : index
    %193 = vector.load %arg4[%192, %c0_69] : memref<8x64xf32, #tpu.memory_space<vmem>>, vector<1x64xf32>
    tpu.vector_store %arg4[%192, %c0_69], %191 {strides = array<i32>} : memref<8x64xf32, #tpu.memory_space<vmem>>, vector<1x64xf32>,
    %c5_i32 = arith.constant 5 : i32
    %194 = arith.index_cast %c5_i32 : i32 to index
    %c0_70 = arith.constant 0 : index
    %195 = vector.load %arg5[%194, %c0_70] : memref<8x256xf32, #tpu.memory_space<vmem>>, vector<1x256xf32>
    %cst_71 = arith.constant dense<0.000000e+00> : vector<1x256xf32>
    %196 = tpu.matmul %191, %7, %cst_71 {dimension_numbers = #tpu.dot_dimension_numbers<[1], [0], [0], [1], [0, 0, 1, 1], [], []>} : vector<1x64xf32>, vector<64x256xf32>, vector<1x256xf32> -> vector<1x256xf32>
    %197 = arith.addf %195, %196 : vector<1x256xf32>
    %198 = vector.extract_strided_slice %197 {offsets = [0, 0], sizes = [1, 64], strides = [1, 1]} : vector<1x256xf32> to vector<1x64xf32>
    %cst_72 = arith.constant 0.000000e+00 : f32
    %199 = vector.broadcast %cst_72 : f32 to vector<1x64xf32>
    %200 = arith.subf %199, %198 : vector<1x64xf32>
    %201 = math.exp %200 : vector<1x64xf32>
    %cst_73 = arith.constant 1.000000e+00 : f32
    %202 = vector.broadcast %cst_73 : f32 to vector<1x64xf32>
    %203 = arith.addf %202, %201 : vector<1x64xf32>
    %cst_74 = arith.constant 1.000000e+00 : f32
    %204 = vector.broadcast %cst_74 : f32 to vector<1x64xf32>
    %205 = arith.divf %204, %203 : vector<1x64xf32>
    %206 = vector.extract_strided_slice %197 {offsets = [0, 64], sizes = [1, 64], strides = [1, 1]} : vector<1x256xf32> to vector<1x64xf32>
    %cst_75 = arith.constant 0.000000e+00 : f32
    %207 = vector.broadcast %cst_75 : f32 to vector<1x64xf32>
    %208 = arith.subf %207, %206 : vector<1x64xf32>
    %209 = math.exp %208 : vector<1x64xf32>
    %cst_76 = arith.constant 1.000000e+00 : f32
    %210 = vector.broadcast %cst_76 : f32 to vector<1x64xf32>
    %211 = arith.addf %210, %209 : vector<1x64xf32>
    %cst_77 = arith.constant 1.000000e+00 : f32
    %212 = vector.broadcast %cst_77 : f32 to vector<1x64xf32>
    %213 = arith.divf %212, %211 : vector<1x64xf32>
    %214 = vector.extract_strided_slice %197 {offsets = [0, 128], sizes = [1, 64], strides = [1, 1]} : vector<1x256xf32> to vector<1x64xf32>
    %215 = math.tanh %214 : vector<1x64xf32>
    %216 = vector.extract_strided_slice %197 {offsets = [0, 192], sizes = [1, 64], strides = [1, 1]} : vector<1x256xf32> to vector<1x64xf32>
    %cst_78 = arith.constant 0.000000e+00 : f32
    %217 = vector.broadcast %cst_78 : f32 to vector<1x64xf32>
    %218 = arith.subf %217, %216 : vector<1x64xf32>
    %219 = math.exp %218 : vector<1x64xf32>
    %cst_79 = arith.constant 1.000000e+00 : f32
    %220 = vector.broadcast %cst_79 : f32 to vector<1x64xf32>
    %221 = arith.addf %220, %219 : vector<1x64xf32>
    %cst_80 = arith.constant 1.000000e+00 : f32
    %222 = vector.broadcast %cst_80 : f32 to vector<1x64xf32>
    %223 = arith.divf %222, %221 : vector<1x64xf32>
    %224 = arith.mulf %213, %189 : vector<1x64xf32>
    %225 = arith.mulf %205, %215 : vector<1x64xf32>
    %226 = arith.addf %224, %225 : vector<1x64xf32>
    %227 = math.tanh %226 : vector<1x64xf32>
    %228 = arith.mulf %223, %227 : vector<1x64xf32>
    %229 = arith.index_cast %c5_i32 : i32 to index
    %c0_81 = arith.constant 0 : index
    %230 = vector.load %arg4[%229, %c0_81] : memref<8x64xf32, #tpu.memory_space<vmem>>, vector<1x64xf32>
    tpu.vector_store %arg4[%229, %c0_81], %228 {strides = array<i32>} : memref<8x64xf32, #tpu.memory_space<vmem>>, vector<1x64xf32>,
    %c6_i32 = arith.constant 6 : i32
    %231 = arith.index_cast %c6_i32 : i32 to index
    %c0_82 = arith.constant 0 : index
    %232 = vector.load %arg5[%231, %c0_82] : memref<8x256xf32, #tpu.memory_space<vmem>>, vector<1x256xf32>
    %cst_83 = arith.constant dense<0.000000e+00> : vector<1x256xf32>
    %233 = tpu.matmul %228, %7, %cst_83 {dimension_numbers = #tpu.dot_dimension_numbers<[1], [0], [0], [1], [0, 0, 1, 1], [], []>} : vector<1x64xf32>, vector<64x256xf32>, vector<1x256xf32> -> vector<1x256xf32>
    %234 = arith.addf %232, %233 : vector<1x256xf32>
    %235 = vector.extract_strided_slice %234 {offsets = [0, 0], sizes = [1, 64], strides = [1, 1]} : vector<1x256xf32> to vector<1x64xf32>
    %cst_84 = arith.constant 0.000000e+00 : f32
    %236 = vector.broadcast %cst_84 : f32 to vector<1x64xf32>
    %237 = arith.subf %236, %235 : vector<1x64xf32>
    %238 = math.exp %237 : vector<1x64xf32>
    %cst_85 = arith.constant 1.000000e+00 : f32
    %239 = vector.broadcast %cst_85 : f32 to vector<1x64xf32>
    %240 = arith.addf %239, %238 : vector<1x64xf32>
    %cst_86 = arith.constant 1.000000e+00 : f32
    %241 = vector.broadcast %cst_86 : f32 to vector<1x64xf32>
    %242 = arith.divf %241, %240 : vector<1x64xf32>
    %243 = vector.extract_strided_slice %234 {offsets = [0, 64], sizes = [1, 64], strides = [1, 1]} : vector<1x256xf32> to vector<1x64xf32>
    %cst_87 = arith.constant 0.000000e+00 : f32
    %244 = vector.broadcast %cst_87 : f32 to vector<1x64xf32>
    %245 = arith.subf %244, %243 : vector<1x64xf32>
    %246 = math.exp %245 : vector<1x64xf32>
    %cst_88 = arith.constant 1.000000e+00 : f32
    %247 = vector.broadcast %cst_88 : f32 to vector<1x64xf32>
    %248 = arith.addf %247, %246 : vector<1x64xf32>
    %cst_89 = arith.constant 1.000000e+00 : f32
    %249 = vector.broadcast %cst_89 : f32 to vector<1x64xf32>
    %250 = arith.divf %249, %248 : vector<1x64xf32>
    %251 = vector.extract_strided_slice %234 {offsets = [0, 128], sizes = [1, 64], strides = [1, 1]} : vector<1x256xf32> to vector<1x64xf32>
    %252 = math.tanh %251 : vector<1x64xf32>
    %253 = vector.extract_strided_slice %234 {offsets = [0, 192], sizes = [1, 64], strides = [1, 1]} : vector<1x256xf32> to vector<1x64xf32>
    %cst_90 = arith.constant 0.000000e+00 : f32
    %254 = vector.broadcast %cst_90 : f32 to vector<1x64xf32>
    %255 = arith.subf %254, %253 : vector<1x64xf32>
    %256 = math.exp %255 : vector<1x64xf32>
    %cst_91 = arith.constant 1.000000e+00 : f32
    %257 = vector.broadcast %cst_91 : f32 to vector<1x64xf32>
    %258 = arith.addf %257, %256 : vector<1x64xf32>
    %cst_92 = arith.constant 1.000000e+00 : f32
    %259 = vector.broadcast %cst_92 : f32 to vector<1x64xf32>
    %260 = arith.divf %259, %258 : vector<1x64xf32>
    %261 = arith.mulf %250, %226 : vector<1x64xf32>
    %262 = arith.mulf %242, %252 : vector<1x64xf32>
    %263 = arith.addf %261, %262 : vector<1x64xf32>
    %264 = math.tanh %263 : vector<1x64xf32>
    %265 = arith.mulf %260, %264 : vector<1x64xf32>
    %266 = arith.index_cast %c6_i32 : i32 to index
    %c0_93 = arith.constant 0 : index
    %267 = vector.load %arg4[%266, %c0_93] : memref<8x64xf32, #tpu.memory_space<vmem>>, vector<1x64xf32>
    tpu.vector_store %arg4[%266, %c0_93], %265 {strides = array<i32>} : memref<8x64xf32, #tpu.memory_space<vmem>>, vector<1x64xf32>,
    %c7_i32 = arith.constant 7 : i32
    %268 = arith.index_cast %c7_i32 : i32 to index
    %c0_94 = arith.constant 0 : index
    %269 = vector.load %arg5[%268, %c0_94] : memref<8x256xf32, #tpu.memory_space<vmem>>, vector<1x256xf32>
    %cst_95 = arith.constant dense<0.000000e+00> : vector<1x256xf32>
    %270 = tpu.matmul %265, %7, %cst_95 {dimension_numbers = #tpu.dot_dimension_numbers<[1], [0], [0], [1], [0, 0, 1, 1], [], []>} : vector<1x64xf32>, vector<64x256xf32>, vector<1x256xf32> -> vector<1x256xf32>
    %271 = arith.addf %269, %270 : vector<1x256xf32>
    %272 = vector.extract_strided_slice %271 {offsets = [0, 0], sizes = [1, 64], strides = [1, 1]} : vector<1x256xf32> to vector<1x64xf32>
    %cst_96 = arith.constant 0.000000e+00 : f32
    %273 = vector.broadcast %cst_96 : f32 to vector<1x64xf32>
    %274 = arith.subf %273, %272 : vector<1x64xf32>
    %275 = math.exp %274 : vector<1x64xf32>
    %cst_97 = arith.constant 1.000000e+00 : f32
    %276 = vector.broadcast %cst_97 : f32 to vector<1x64xf32>
    %277 = arith.addf %276, %275 : vector<1x64xf32>
    %cst_98 = arith.constant 1.000000e+00 : f32
    %278 = vector.broadcast %cst_98 : f32 to vector<1x64xf32>
    %279 = arith.divf %278, %277 : vector<1x64xf32>
    %280 = vector.extract_strided_slice %271 {offsets = [0, 64], sizes = [1, 64], strides = [1, 1]} : vector<1x256xf32> to vector<1x64xf32>
    %cst_99 = arith.constant 0.000000e+00 : f32
    %281 = vector.broadcast %cst_99 : f32 to vector<1x64xf32>
    %282 = arith.subf %281, %280 : vector<1x64xf32>
    %283 = math.exp %282 : vector<1x64xf32>
    %cst_100 = arith.constant 1.000000e+00 : f32
    %284 = vector.broadcast %cst_100 : f32 to vector<1x64xf32>
    %285 = arith.addf %284, %283 : vector<1x64xf32>
    %cst_101 = arith.constant 1.000000e+00 : f32
    %286 = vector.broadcast %cst_101 : f32 to vector<1x64xf32>
    %287 = arith.divf %286, %285 : vector<1x64xf32>
    %288 = vector.extract_strided_slice %271 {offsets = [0, 128], sizes = [1, 64], strides = [1, 1]} : vector<1x256xf32> to vector<1x64xf32>
    %289 = math.tanh %288 : vector<1x64xf32>
    %290 = vector.extract_strided_slice %271 {offsets = [0, 192], sizes = [1, 64], strides = [1, 1]} : vector<1x256xf32> to vector<1x64xf32>
    %cst_102 = arith.constant 0.000000e+00 : f32
    %291 = vector.broadcast %cst_102 : f32 to vector<1x64xf32>
    %292 = arith.subf %291, %290 : vector<1x64xf32>
    %293 = math.exp %292 : vector<1x64xf32>
    %cst_103 = arith.constant 1.000000e+00 : f32
    %294 = vector.broadcast %cst_103 : f32 to vector<1x64xf32>
    %295 = arith.addf %294, %293 : vector<1x64xf32>
    %cst_104 = arith.constant 1.000000e+00 : f32
    %296 = vector.broadcast %cst_104 : f32 to vector<1x64xf32>
    %297 = arith.divf %296, %295 : vector<1x64xf32>
    %298 = arith.mulf %287, %263 : vector<1x64xf32>
    %299 = arith.mulf %279, %289 : vector<1x64xf32>
    %300 = arith.addf %298, %299 : vector<1x64xf32>
    %301 = math.tanh %300 : vector<1x64xf32>
    %302 = arith.mulf %297, %301 : vector<1x64xf32>
    %303 = arith.index_cast %c7_i32 : i32 to index
    %c0_105 = arith.constant 0 : index
    %304 = vector.load %arg4[%303, %c0_105] : memref<8x64xf32, #tpu.memory_space<vmem>>, vector<1x64xf32>
    tpu.vector_store %arg4[%303, %c0_105], %302 {strides = array<i32>} : memref<8x64xf32, #tpu.memory_space<vmem>>, vector<1x64xf32>,
    %c8_i32 = arith.constant 8 : i32
    return
  }
}

</mosaic_0001>

<llo_original>
// kernel: lstmfcn_forward.5
$region0: #{lstmfcn_forward.5}
  #allocation0 [shape = 'u32[]', space=smem, size = 0x4, offset = 0x4, fixed_abs, tag = 'smem constant byte address 0x4 - core index']
  #allocation1 [shape = 'u32[144,128]{1,0:T(1,128)}', space=vmem, size = 0x12000, scoped, tag = 'internal scratch']
  #allocation2 [shape = 'f32[1,1]{1,0:T(1,128)S(1)}', space=vmem, size = 0x200, scoped, tag = 'scoped memory for lstmfcn_forward.5']
  %s0 = inlined_call_operand.vmem [shape: f32[8,64], index: 0, kind: input, shape index: {}]
  %s1 = inlined_call_operand.vmem [shape: f32[8,64], index: 1, kind: input, shape index: {}]
  %s2 = inlined_call_operand.vmem [shape: f32[1,64], index: 2, kind: input, shape index: {}]
  %s3 = inlined_call_operand.vmem [shape: f32[1,64], index: 3, kind: input, shape index: {}]
  %s4 = inlined_call_operand.<no memory space> [shape: f32[1,1], index: 4, kind: input, shape index: {}]
  %s5 = inlined_call_operand.vmem [shape: f32[8,1], index: 5, kind: output, shape index: {}]
  %s6 = sld [smem:[#allocation0]]
  $region30: #{lstmfcn_forward.5} parent=0
    _
  %s8 = ssub.s32 1, %s6
  %s9 = scalar_select 0, %s8, %s6
  %v10 = vstv %s4
  %11 = vst [vmem:[#allocation2] sm:$0x1] %v10
  // Predicated region
  $region2: #{lstmfcn_forward.5} parent=0 // pred_check
    _
  $region3: #{lstmfcn_forward.5} parent=0 // pred_check_branch
    %13 = sbr.rel (0) target = $region5
  $region4: #{lstmfcn_forward.5} parent=0 // pred_region
    _
  $region5: #{lstmfcn_forward.5} parent=0 // pred_fallthru
    _
  // Predicated region
  $region6: #{lstmfcn_forward.5} parent=0 // pred_check
    _
  $region7: #{lstmfcn_forward.5} parent=0 // pred_check_branch
    %15 = sbr.rel (0) target = $region9
  $region8: #{lstmfcn_forward.5} parent=0 // pred_region
    _
  $region9: #{lstmfcn_forward.5} parent=0 // pred_fallthru
    _
  // Predicated region
  $region10: #{lstmfcn_forward.5} parent=0 // pred_check
    _
  $region11: #{lstmfcn_forward.5} parent=0 // pred_check_branch
    %17 = sbr.rel (0) target = $region13
  $region12: #{lstmfcn_forward.5} parent=0 // pred_region
    _
  $region13: #{lstmfcn_forward.5} parent=0 // pred_fallthru
    _
  // Predicated region
  $region14: #{lstmfcn_forward.5} parent=0 // pred_check
    _
  $region15: #{lstmfcn_forward.5} parent=0 // pred_check_branch
    %19 = sbr.rel (0) target = $region17
  $region16: #{lstmfcn_forward.5} parent=0 // pred_region
    _
  $region17: #{lstmfcn_forward.5} parent=0 // pred_fallthru
    _
  // Predicated region
  $region18: #{lstmfcn_forward.5} parent=0 // pred_check
    _
  $region19: #{lstmfcn_forward.5} parent=0 // pred_check_branch
    %21 = sbr.rel (0) target = $region21
  $region20: #{lstmfcn_forward.5} parent=0 // pred_region
    _
  $region21: #{lstmfcn_forward.5} parent=0 // pred_fallthru
    _
  %v22 = vld [vmem:[%s1] sm:$0xff]
  %v23 = vld [vmem:[%s2] sm:$0x1]
  %v25 = vlaneseq
  %v26 = vshrl.u32 %v25, 7
  %v27 = vsub.s32 0, %v26
  %v28 = vrot.slane %v23, %v27
  %v30 = vmul.f32 %v22, %v28
  %vm31 = vcmask 523264
  %v32 = vsel %vm31, %v30, 0.0
  %33 = vadd.xlane.f32.xlu0 %v32
  %v34 = vpop.xlane.xlu0 %33
  %v35 = vld [vmem:[%s0] sm:$0xff]
  %v36 = vld [vmem:[%s3] sm:$0x1]
  %v38 = vlaneseq
  %v39 = vshrl.u32 %v38, 7
  %v40 = vsub.s32 0, %v39
  %v41 = vrot.slane %v36, %v40
  %v43 = vmul.f32 %v35, %v41
  %v44 = vsel %vm31, %v43, 0.0
  %45 = vadd.xlane.f32.xlu0 %v44
  %v46 = vpop.xlane.xlu0 %45
  %v47 = vadd.f32 %v34, %v46
  %v48 = vld [vmem:[#allocation2] sm:$0x1]
  %v50 = vlaneseq
  %v51 = vshrl.u32 %v50, 7
  %v52 = vsub.s32 0, %v51
  %v53 = vrot.slane %v48, %v52
  %v55 = vadd.f32 %v47, %v53
  %vm56 = vcmask 7168
  %57 = vst.msk [vmem:[%s5] sm:$0xff] %vm56, %v55
  // Predicated region
  $region22: #{lstmfcn_forward.5} parent=0 // pred_check
    _
  $region23: #{lstmfcn_forward.5} parent=0 // pred_check_branch
    %59 = sbr.rel (0) target = $region25
  $region24: #{lstmfcn_forward.5} parent=0 // pred_region
    _
  $region25: #{lstmfcn_forward.5} parent=0 // pred_fallthru
    _
  // Predicated region
  $region26: #{lstmfcn_forward.5} parent=0 // pred_check
    _
  $region27: #{lstmfcn_forward.5} parent=0 // pred_check_branch
    %61 = sbr.rel (0) target = $region29
  $region28: #{lstmfcn_forward.5} parent=0 // pred_region
    _
  $region29: #{lstmfcn_forward.5} parent=0 // pred_fallthru
    _

// kernel: lstmfcn_forward.3
$region0: #{lstmfcn_forward.3}
  #allocation0 [shape = 'u32[]', space=smem, size = 0x4, offset = 0x4, fixed_abs, tag = 'smem constant byte address 0x4 - core index']
  #allocation1 [shape = 'u32[144,128]{1,0:T(1,128)}', space=vmem, size = 0x12000, scoped, tag = 'internal scratch']
  #allocation2 [shape = 'f32[8,256]{1,0:T(8,128)}', space=vmem, size = 0x2000, scoped, tag = 'scratch operand']
  %s0 = inlined_call_operand.vmem [shape: f32[8,16], index: 0, kind: input, shape index: {}]
  %s1 = inlined_call_operand.vmem [shape: f32[16,256], index: 1, kind: input, shape index: {}]
  %s2 = inlined_call_operand.vmem [shape: f32[64,256], index: 2, kind: input, shape index: {}]
  %s3 = inlined_call_operand.vmem [shape: f32[1,256], index: 3, kind: input, shape index: {}]
  %s4 = inlined_call_operand.vmem [shape: f32[8,64], index: 4, kind: output, shape index: {}]
  %s5 = sld [smem:[#allocation0]]
  $region26: #{lstmfcn_forward.3} parent=0
    _
  %s7 = ssub.s32 1, %s5
  %s8 = scalar_select 0, %s7, %s5
  // Predicated region
  $region2: #{lstmfcn_forward.3} parent=0 // pred_check
    _
  $region3: #{lstmfcn_forward.3} parent=0 // pred_check_branch
    %10 = sbr.rel (0) target = $region5
  $region4: #{lstmfcn_forward.3} parent=0 // pred_region
    _
  $region5: #{lstmfcn_forward.3} parent=0 // pred_fallthru
    _
  // Predicated region
  $region6: #{lstmfcn_forward.3} parent=0 // pred_check
    _
  $region7: #{lstmfcn_forward.3} parent=0 // pred_check_branch
    %12 = sbr.rel (0) target = $region9
  $region8: #{lstmfcn_forward.3} parent=0 // pred_region
    _
  $region9: #{lstmfcn_forward.3} parent=0 // pred_fallthru
    _
  // Predicated region
  $region10: #{lstmfcn_forward.3} parent=0 // pred_check
    _
  $region11: #{lstmfcn_forward.3} parent=0 // pred_check_branch
    %14 = sbr.rel (0) target = $region13
  $region12: #{lstmfcn_forward.3} parent=0 // pred_region
    _
  $region13: #{lstmfcn_forward.3} parent=0 // pred_fallthru
    _
  // Predicated region
  $region14: #{lstmfcn_forward.3} parent=0 // pred_check
    _
  $region15: #{lstmfcn_forward.3} parent=0 // pred_check_branch
    %16 = sbr.rel (0) target = $region17
  $region16: #{lstmfcn_forward.3} parent=0 // pred_region
    _
  $region17: #{lstmfcn_forward.3} parent=0 // pred_fallthru
    _
  %v17 = vld [vmem:[%s0] sm:$0xff]
  %v18 = vld [vmem:[%s1] sm:$0xff]
  %v19 = vld [vmem:[%s1 + $0x8] sm:$0xff]
  %v20 = vld [vmem:[%s1 + $0x10] sm:$0xff]
  %v21 = vld [vmem:[%s1 + $0x18] sm:$0xff]
  %v22 = vld [vmem:[%s3] sm:$0x3]
  %v24 = vlaneseq
  %v25 = vshrl.u32 %v24, 7
  %v26 = vsub.s32 0, %v25
  %v27 = vrot.slane %v22, %v26
  %v28 = vlaneseq
  %v29 = vshrl.u32 %v28, 7
  %v30 = vsub.s32 1, %v29
  %v31 = vrot.slane %v22, %v30
  %vm34 = vcmask 130048
  %v36 = vsel %vm34, %v17, 0
  %38 = vmatprep.subr.mxu0 0.0
  %39 = vmatpush1.msra.mxu0 0.0
  %40 = vmatprep.subr.mxu0 0.0
  %41 = vmatpush1.msra.mxu0 0.0
  %42 = vmatprep.subr.mxu0 0.0
  %43 = vmatpush1.msra.mxu0 0.0
  %44 = vmatprep.subr.mxu0 0.0
  %45 = vmatpush1.msra.mxu0 0.0
  %46 = vmatprep.subr.mxu0 0.0
  %47 = vmatpush1.msra.mxu0 0.0
  %48 = vmatprep.subr.mxu0 0.0
  %49 = vmatpush1.msra.mxu0 0.0
  %50 = vmatprep.subr.mxu0 0.0
  %51 = vmatpush1.msra.mxu0 0.0
  %52 = vmatprep.subr.mxu0 0.0
  %53 = vmatpush1.msra.mxu0 0.0
  %54 = vmatprep.subr.mxu0 0.0
  %55 = vmatpush1.msra.mxu0 0.0
  %56 = vmatprep.subr.mxu0 0.0
  %57 = vmatpush1.msra.mxu0 0.0
  %58 = vmatprep.subr.mxu0 0.0
  %59 = vmatpush1.msra.mxu0 0.0
  %60 = vmatprep.subr.mxu0 0.0
  %61 = vmatpush1.msra.mxu0 0.0
  %62 = vmatprep.subr.mxu0 0.0
  %63 = vmatpush1.msra.mxu0 0.0
  %64 = vmatprep.subr.mxu0 0.0
  %65 = vmatpush1.msra.mxu0 0.0
  %66 = vmatprep.subr.mxu0 %v21
  %67 = vmatpush1.msra.mxu0 %v20
  %68 = vmatprep.subr.mxu0 %v19
  %69 = vmatpush1.msra.mxu0 %v18
  %70 = vmatprep.subr.mxu0 0.0
  %71 = vmatpush2.msra.mxu0 0.0
  %72 = vmatprep.subr.mxu0 0.0
  %73 = vmatpush2.msra.mxu0 0.0
  %74 = vmatprep.subr.mxu0 0.0
  %75 = vmatpush2.msra.mxu0 0.0
  %76 = vmatprep.subr.mxu0 0.0
  %77 = vmatpush2.msra.mxu0 0.0
  %78 = vmatprep.subr.mxu0 0.0
  %79 = vmatpush2.msra.mxu0 0.0
  %80 = vmatprep.subr.mxu0 0.0
  %81 = vmatpush2.msra.mxu0 0.0
  %82 = vmatprep.subr.mxu0 0.0
  %83 = vmatpush2.msra.mxu0 0.0
  %84 = vmatprep.subr.mxu0 0.0
  %85 = vmatpush2.msra.mxu0 0.0
  %86 = vmatprep.subr.mxu0 0.0
  %87 = vmatpush2.msra.mxu0 0.0
  %88 = vmatprep.subr.mxu0 0.0
  %89 = vmatpush2.msra.mxu0 0.0
  %90 = vmatprep.subr.mxu0 0.0
  %91 = vmatpush2.msra.mxu0 0.0
  %92 = vmatprep.subr.mxu0 0.0
  %93 = vmatpush2.msra.mxu0 0.0
  %94 = vmatprep.subr.mxu0 0.0
  %95 = vmatpush2.msra.mxu0 0.0
  %96 = vmatprep.subr.mxu0 0.0
  %97 = vmatpush2.msra.mxu0 0.0
  %98 = vmatprep.subr.mxu0 0.0
  %99 = vmatpush2.msra.mxu0 0.0
  %100 = vmatprep.subr.mxu0 0.0
  %101 = vmatpush2.msra.mxu0 0.0
  %102 = vmatprep.mubr.f32.mxu0 0.0
  %103 = vmatmul.mubr.f32.gmra.mxu0 %v36
  %v104 = vpop.f32.mrf.mxu0
  %v105 = vadd.f32 %v27, %v104
  %v106 = vpop.f32.mrf.mxu0
  %v107 = vadd.f32 %v31, %v106
  %108 = vdwg.mxu0
  %109 = vst [vmem:[#allocation2] sm:$0xff] %v105
  %110 = vst [vmem:[#allocation2 + $0x8] sm:$0xff] %v107
  %v111 = vld [vmem:[%s2] sm:$0xff]
  %v112 = vld [vmem:[%s2 + $0x8] sm:$0xff]
  %v113 = vld [vmem:[%s2 + $0x10] sm:$0xff]
  %v114 = vld [vmem:[%s2 + $0x18] sm:$0xff]
  %v115 = vld [vmem:[%s2 + $0x20] sm:$0xff]
  %v116 = vld [vmem:[%s2 + $0x28] sm:$0xff]
  %v117 = vld [vmem:[%s2 + $0x30] sm:$0xff]
  %v118 = vld [vmem:[%s2 + $0x38] sm:$0xff]
  %v119 = vld [vmem:[%s2 + $0x40] sm:$0xff]
  %v120 = vld [vmem:[%s2 + $0x48] sm:$0xff]
  %v121 = vld [vmem:[%s2 + $0x50] sm:$0xff]
  %v122 = vld [vmem:[%s2 + $0x58] sm:$0xff]
  %v123 = vld [vmem:[%s2 + $0x60] sm:$0xff]
  %v124 = vld [vmem:[%s2 + $0x68] sm:$0xff]
  %v125 = vld [vmem:[%s2 + $0x70] sm:$0xff]
  %v126 = vld [vmem:[%s2 + $0x78] sm:$0xff]
  %v127 = vld [vmem:[#allocation2] ss:$8 sm:$0x3]
  %vm128 = vcmask 523264
  %v130 = vsel %vm128, 0.0, 0
  %132 = vmatprep.subr.mxu0 0.0
  %133 = vmatpush1.msra.mxu0 0.0
  %134 = vmatprep.subr.mxu0 0.0
  %135 = vmatpush1.msra.mxu0 0.0
  %136 = vmatprep.subr.mxu0 0.0
  %137 = vmatpush1.msra.mxu0 0.0
  %138 = vmatprep.subr.mxu0 0.0
  %139 = vmatpush1.msra.mxu0 0.0
  %140 = vmatprep.subr.mxu0 0.0
  %141 = vmatpush1.msra.mxu0 0.0
  %142 = vmatprep.subr.mxu0 0.0
  %143 = vmatpush1.msra.mxu0 0.0
  %144 = vmatprep.subr.mxu0 0.0
  %145 = vmatpush1.msra.mxu0 0.0
  %146 = vmatprep.subr.mxu0 0.0
  %147 = vmatpush1.msra.mxu0 0.0
  %148 = vmatprep.subr.mxu0 %v126
  %149 = vmatpush1.msra.mxu0 %v125
  %150 = vmatprep.subr.mxu0 %v124
  %151 = vmatpush1.msra.mxu0 %v123
  %152 = vmatprep.subr.mxu0 %v122
  %153 = vmatpush1.msra.mxu0 %v121
  %154 = vmatprep.subr.mxu0 %v120
  %155 = vmatpush1.msra.mxu0 %v119
  %156 = vmatprep.subr.mxu0 %v118
  %157 = vmatpush1.msra.mxu0 %v117
  %158 = vmatprep.subr.mxu0 %v116
  %159 = vmatpush1.msra.mxu0 %v115
  %160 = vmatprep.subr.mxu0 %v114
  %161 = vmatpush1.msra.mxu0 %v113
  %162 = vmatprep.subr.mxu0 %v112
  %163 = vmatpush1.msra.mxu0 %v111
  %164 = vmatprep.subr.mxu0 0.0
  %165 = vmatpush2.msra.mxu0 0.0
  %166 = vmatprep.subr.mxu0 0.0
  %167 = vmatpush2.msra.mxu0 0.0
  %168 = vmatprep.subr.mxu0 0.0
  %169 = vmatpush2.msra.mxu0 0.0
  %170 = vmatprep.subr.mxu0 0.0
  %171 = vmatpush2.msra.mxu0 0.0
  %172 = vmatprep.subr.mxu0 0.0
  %173 = vmatpush2.msra.mxu0 0.0
  %174 = vmatprep.subr.mxu0 0.0
  %175 = vmatpush2.msra.mxu0 0.0
  %176 = vmatprep.subr.mxu0 0.0
  %177 = vmatpush2.msra.mxu0 0.0
  %178 = vmatprep.subr.mxu0 0.0
  %179 = vmatpush2.msra.mxu0 0.0
  %180 = vmatprep.subr.mxu0 0.0
  %181 = vmatpush2.msra.mxu0 0.0
  %182 = vmatprep.subr.mxu0 0.0
  %183 = vmatpush2.msra.mxu0 0.0
  %184 = vmatprep.subr.mxu0 0.0
  %185 = vmatpush2.msra.mxu0 0.0
  %186 = vmatprep.subr.mxu0 0.0
  %187 = vmatpush2.msra.mxu0 0.0
  %188 = vmatprep.subr.mxu0 0.0
  %189 = vmatpush2.msra.mxu0 0.0
  %190 = vmatprep.subr.mxu0 0.0
  %191 = vmatpush2.msra.mxu0 0.0
  %192 = vmatprep.subr.mxu0 0.0
  %193 = vmatpush2.msra.mxu0 0.0
  %194 = vmatprep.subr.mxu0 0.0
  %195 = vmatpush2.msra.mxu0 0.0
  %196 = vmatprep.mubr.f32.mxu0 0.0
  %197 = vmatmul.mubr.f32.gmra.mxu0 %v130
  %v198 = vpop.f32.mrf.mxu0
  %v199 = vadd.f32 0.0, %v198
  %v200 = vpop.f32.mrf.mxu0
  %v201 = vadd.f32 0.0, %v200
  %202 = vdwg.mxu0
  %v205 = vcombine.low %v199, %v201
  %v207 = vunpack.c.l.s4 1966171168
  %v208 = vunpack.c.0.s8 %v207
  %v209 = vlaneseq
  %v210 = vshrl.u32 %v209, 7
  %v211 = vsub.s32 %v208, %v210
  %v212 = vrot.slane %v205, %v211
  %v214 = vunpack.c.l.s4 1966171168
  %v215 = vunpack.c.0.s8 %v214
  %v216 = vlaneseq
  %v217 = vshrl.u32 %v216, 7
  %v218 = vsub.s32 %v215, %v217
  %v219 = vrot.slane %v212, %v218
  %v221 = vadd.f32 %v127, %v219
  %v222 = vsub.f32 0.0, %v221
  %v223 = vmul.f32 %v222, 1.442695
  %v224 = vpow.pop %v223
  %v225 = vadd.f32 %v224, 1.0
  %v226 = vrcp.pop %v225
  %v227 = vmul.f32 1.0, %v226
  %v229 = vrot.slane %v221, 1
  %v231 = vtanh.pop %v229
  %232 = vrot.lane.b32.xlu0 %v221, 64
  %v233 = vpop.permute.xlu0 %232
  %v234 = vrot.slane %v233, 1
  %v236 = vsub.f32 0.0, %v234
  %v237 = vmul.f32 %v236, 1.442695
  %v238 = vpow.pop %v237
  %v239 = vadd.f32 %v238, 1.0
  %v240 = vrcp.pop %v239
  %v241 = vmul.f32 1.0, %v240
  %v242 = vmul.f32 %v227, 0.0
  %v243 = vmul.f32 %v227, %v231
  %245 = vrot.lane.b32.xlu0 %v243, 64
  %v246 = vpop.permute.xlu0 %245
  %v248 = vadd.f32 %v242, %v246
  %v249 = vtanh.pop %v248
  %251 = vrot.lane.b32.xlu0 %v249, 64
  %v252 = vpop.permute.xlu0 %251
  %v254 = vmul.f32 %v241, %v252
  %vm255 = vcmask 516096
  %256 = vst.msk [vmem:[%s4] sm:$0x1] %vm255, %v254
  %s257 = scalar_lea.vmem [#allocation2], 1
  %v258 = vld [vmem:[%s257] ss:$8 sm:$0x3]
  %v260 = vsel %vm128, %v254, 0
  %262 = vmatprep.subr.mxu0 0.0
  %263 = vmatpush1.msra.mxu0 0.0
  %264 = vmatprep.subr.mxu0 0.0
  %265 = vmatpush1.msra.mxu0 0.0
  %266 = vmatprep.subr.mxu0 0.0
  %267 = vmatpush1.msra.mxu0 0.0
  %268 = vmatprep.subr.mxu0 0.0
  %269 = vmatpush1.msra.mxu0 0.0
  %270 = vmatprep.subr.mxu0 0.0
  %271 = vmatpush1.msra.mxu0 0.0
  %272 = vmatprep.subr.mxu0 0.0
  %273 = vmatpush1.msra.mxu0 0.0
  %274 = vmatprep.subr.mxu0 0.0
  %275 = vmatpush1.msra.mxu0 0.0
  %276 = vmatprep.subr.mxu0 0.0
  %277 = vmatpush1.msra.mxu0 0.0
  %278 = vmatprep.subr.mxu0 %v126
  %279 = vmatpush1.msra.mxu0 %v125
  %280 = vmatprep.subr.mxu0 %v124
  %281 = vmatpush1.msra.mxu0 %v123
  %282 = vmatprep.subr.mxu0 %v122
  %283 = vmatpush1.msra.mxu0 %v121
  %284 = vmatprep.subr.mxu0 %v120
  %285 = vmatpush1.msra.mxu0 %v119
  %286 = vmatprep.subr.mxu0 %v118
  %287 = vmatpush1.msra.mxu0 %v117
  %288 = vmatprep.subr.mxu0 %v116
  %289 = vmatpush1.msra.mxu0 %v115
  %290 = vmatprep.subr.mxu0 %v114
  %291 = vmatpush1.msra.mxu0 %v113
  %292 = vmatprep.subr.mxu0 %v112
  %293 = vmatpush1.msra.mxu0 %v111
  %294 = vmatprep.subr.mxu0 0.0
  %295 = vmatpush2.msra.mxu0 0.0
  %296 = vmatprep.subr.mxu0 0.0
  %297 = vmatpush2.msra.mxu0 0.0
  %298 = vmatprep.subr.mxu0 0.0
  %299 = vmatpush2.msra.mxu0 0.0
  %300 = vmatprep.subr.mxu0 0.0
  %301 = vmatpush2.msra.mxu0 0.0
  %302 = vmatprep.subr.mxu0 0.0
  %303 = vmatpush2.msra.mxu0 0.0
  %304 = vmatprep.subr.mxu0 0.0
  %305 = vmatpush2.msra.mxu0 0.0
  %306 = vmatprep.subr.mxu0 0.0
  %307 = vmatpush2.msra.mxu0 0.0
  %308 = vmatprep.subr.mxu0 0.0
  %309 = vmatpush2.msra.mxu0 0.0
  %310 = vmatprep.subr.mxu0 0.0
  %311 = vmatpush2.msra.mxu0 0.0
  %312 = vmatprep.subr.mxu0 0.0
  %313 = vmatpush2.msra.mxu0 0.0
  %314 = vmatprep.subr.mxu0 0.0
  %315 = vmatpush2.msra.mxu0 0.0
  %316 = vmatprep.subr.mxu0 0.0
  %317 = vmatpush2.msra.mxu0 0.0
  %318 = vmatprep.subr.mxu0 0.0
  %319 = vmatpush2.msra.mxu0 0.0
  %320 = vmatprep.subr.mxu0 0.0
  %321 = vmatpush2.msra.mxu0 0.0
  %322 = vmatprep.subr.mxu0 0.0
  %323 = vmatpush2.msra.mxu0 0.0
  %324 = vmatprep.subr.mxu0 0.0
  %325 = vmatpush2.msra.mxu0 0.0
  %326 = vmatprep.mubr.f32.mxu0 0.0
  %327 = vmatmul.mubr.f32.gmra.mxu0 %v260
  %v328 = vpop.f32.mrf.mxu0
  %v329 = vadd.f32 0.0, %v328
  %v330 = vpop.f32.mrf.mxu0
  %v331 = vadd.f32 0.0, %v330
  %332 = vdwg.mxu0
  %v335 = vcombine.low %v329, %v331
  %v337 = vunpack.c.l.s4 1966171168
  %v338 = vunpack.c.0.s8 %v337
  %v339 = vlaneseq
  %v340 = vshrl.u32 %v339, 7
  %v341 = vsub.s32 %v338, %v340
  %v342 = vrot.slane %v335, %v341
  %v344 = vunpack.c.l.s4 1966171168
  %v345 = vunpack.c.0.s8 %v344
  %v346 = vlaneseq
  %v347 = vshrl.u32 %v346, 7
  %v348 = vsub.s32 %v345, %v347
  %v349 = vrot.slane %v342, %v348
  %v351 = vadd.f32 %v258, %v349
  %v352 = vsub.f32 0.0, %v351
  %v353 = vmul.f32 %v352, 1.442695
  %v354 = vpow.pop %v353
  %v355 = vadd.f32 %v354, 1.0
  %v356 = vrcp.pop %v355
  %v357 = vmul.f32 1.0, %v356
  %v359 = vrot.slane %v351, 1
  %v361 = vtanh.pop %v359
  %362 = vrot.lane.b32.xlu0 %v351, 64
  %v363 = vpop.permute.xlu0 %362
  %v364 = vrot.slane %v363, 1
  %v366 = vsub.f32 0.0, %v364
  %v367 = vmul.f32 %v366, 1.442695
  %v368 = vpow.pop %v367
  %v369 = vadd.f32 %v368, 1.0
  %v370 = vrcp.pop %v369
  %v371 = vmul.f32 1.0, %v370
  %v372 = vmul.f32 %v357, %v248
  %v373 = vmul.f32 %v357, %v361
  %375 = vrot.lane.b32.xlu0 %v373, 64
  %v376 = vpop.permute.xlu0 %375
  %v378 = vadd.f32 %v372, %v376
  %v379 = vtanh.pop %v378
  %381 = vrot.lane.b32.xlu0 %v379, 64
  %v382 = vpop.permute.xlu0 %381
  %v384 = vmul.f32 %v371, %v382
  %385 = vst.msk [vmem:[%s4 + $0x1] sm:$0x1] %vm255, %v384
  %s386 = scalar_lea.vmem [#allocation2], 2
  %v387 = vld [vmem:[%s386] ss:$8 sm:$0x3]
  %v389 = vsel %vm128, %v384, 0
  %391 = vmatprep.subr.mxu0 0.0
  %392 = vmatpush1.msra.mxu0 0.0
  %393 = vmatprep.subr.mxu0 0.0
  %394 = vmatpush1.msra.mxu0 0.0
  %395 = vmatprep.subr.mxu0 0.0
  %396 = vmatpush1.msra.mxu0 0.0
  %397 = vmatprep.subr.mxu0 0.0
  %398 = vmatpush1.msra.mxu0 0.0
  %399 = vmatprep.subr.mxu0 0.0
  %400 = vmatpush1.msra.mxu0 0.0
  %401 = vmatprep.subr.mxu0 0.0
  %402 = vmatpush1.msra.mxu0 0.0
  %403 = vmatprep.subr.mxu0 0.0
  %404 = vmatpush1.msra.mxu0 0.0
  %405 = vmatprep.subr.mxu0 0.0
  %406 = vmatpush1.msra.mxu0 0.0
  %407 = vmatprep.subr.mxu0 %v126
  %408 = vmatpush1.msra.mxu0 %v125
  %409 = vmatprep.subr.mxu0 %v124
  %410 = vmatpush1.msra.mxu0 %v123
  %411 = vmatprep.subr.mxu0 %v122
  %412 = vmatpush1.msra.mxu0 %v121
  %413 = vmatprep.subr.mxu0 %v120
  %414 = vmatpush1.msra.mxu0 %v119
  %415 = vmatprep.subr.mxu0 %v118
  %416 = vmatpush1.msra.mxu0 %v117
  %417 = vmatprep.subr.mxu0 %v116
  %418 = vmatpush1.msra.mxu0 %v115
  %419 = vmatprep.subr.mxu0 %v114
  %420 = vmatpush1.msra.mxu0 %v113
  %421 = vmatprep.subr.mxu0 %v112
  %422 = vmatpush1.msra.mxu0 %v111
  %423 = vmatprep.subr.mxu0 0.0
  %424 = vmatpush2.msra.mxu0 0.0
  %425 = vmatprep.subr.mxu0 0.0
  %426 = vmatpush2.msra.mxu0 0.0
  %427 = vmatprep.subr.mxu0 0.0
  %428 = vmatpush2.msra.mxu0 0.0
  %429 = vmatprep.subr.mxu0 0.0
  %430 = vmatpush2.msra.mxu0 0.0
  %431 = vmatprep.subr.mxu0 0.0
  %432 = vmatpush2.msra.mxu0 0.0
  %433 = vmatprep.subr.mxu0 0.0
  %434 = vmatpush2.msra.mxu0 0.0
  %435 = vmatprep.subr.mxu0 0.0
  %436 = vmatpush2.msra.mxu0 0.0
  %437 = vmatprep.subr.mxu0 0.0
  %438 = vmatpush2.msra.mxu0 0.0
  %439 = vmatprep.subr.mxu0 0.0
  %440 = vmatpush2.msra.mxu0 0.0
  %441 = vmatprep.subr.mxu0 0.0
  %442 = vmatpush2.msra.mxu0 0.0
  %443 = vmatprep.subr.mxu0 0.0
  %444 = vmatpush2.msra.mxu0 0.0
  %445 = vmatprep.subr.mxu0 0.0
  %446 = vmatpush2.msra.mxu0 0.0
  %447 = vmatprep.subr.mxu0 0.0
  %448 = vmatpush2.msra.mxu0 0.0
  %449 = vmatprep.subr.mxu0 0.0
  %450 = vmatpush2.msra.mxu0 0.0
  %451 = vmatprep.subr.mxu0 0.0
  %452 = vmatpush2.msra.mxu0 0.0
  %453 = vmatprep.subr.mxu0 0.0
  %454 = vmatpush2.msra.mxu0 0.0
  %455 = vmatprep.mubr.f32.mxu0 0.0
  %456 = vmatmul.mubr.f32.gmra.mxu0 %v389
  %v457 = vpop.f32.mrf.mxu0
  %v458 = vadd.f32 0.0, %v457
  %v459 = vpop.f32.mrf.mxu0
  %v460 = vadd.f32 0.0, %v459
  %461 = vdwg.mxu0
  %v464 = vcombine.low %v458, %v460
  %v466 = vunpack.c.l.s4 1966171168
  %v467 = vunpack.c.0.s8 %v466
  %v468 = vlaneseq
  %v469 = vshrl.u32 %v468, 7
  %v470 = vsub.s32 %v467, %v469
  %v471 = vrot.slane %v464, %v470
  %v473 = vunpack.c.l.s4 1966171168
  %v474 = vunpack.c.0.s8 %v473
  %v475 = vlaneseq
  %v476 = vshrl.u32 %v475, 7
  %v477 = vsub.s32 %v474, %v476
  %v478 = vrot.slane %v471, %v477
  %v480 = vadd.f32 %v387, %v478
  %v481 = vsub.f32 0.0, %v480
  %v482 = vmul.f32 %v481, 1.442695
  %v483 = vpow.pop %v482
  %v484 = vadd.f32 %v483, 1.0
  %v485 = vrcp.pop %v484
  %v486 = vmul.f32 1.0, %v485
  %v488 = vrot.slane %v480, 1
  %v490 = vtanh.pop %v488
  %491 = vrot.lane.b32.xlu0 %v480, 64
  %v492 = vpop.permute.xlu0 %491
  %v493 = vrot.slane %v492, 1
  %v495 = vsub.f32 0.0, %v493
  %v496 = vmul.f32 %v495, 1.442695
  %v497 = vpow.pop %v496
  %v498 = vadd.f32 %v497, 1.0
  %v499 = vrcp.pop %v498
  %v500 = vmul.f32 1.0, %v499
  %v501 = vmul.f32 %v486, %v378
  %v502 = vmul.f32 %v486, %v490
  %504 = vrot.lane.b32.xlu0 %v502, 64
  %v505 = vpop.permute.xlu0 %504
  %v507 = vadd.f32 %v501, %v505
  %v508 = vtanh.pop %v507
  %510 = vrot.lane.b32.xlu0 %v508, 64
  %v511 = vpop.permute.xlu0 %510
  %v513 = vmul.f32 %v500, %v511
  %514 = vst.msk [vmem:[%s4 + $0x2] sm:$0x1] %vm255, %v513
  %s515 = scalar_lea.vmem [#allocation2], 3
  %v516 = vld [vmem:[%s515] ss:$8 sm:$0x3]
  %v518 = vsel %vm128, %v513, 0
  %520 = vmatprep.subr.mxu0 0.0
  %521 = vmatpush1.msra.mxu0 0.0
  %522 = vmatprep.subr.mxu0 0.0
  %523 = vmatpush1.msra.mxu0 0.0
  %524 = vmatprep.subr.mxu0 0.0
  %525 = vmatpush1.msra.mxu0 0.0
  %526 = vmatprep.subr.mxu0 0.0
  %527 = vmatpush1.msra.mxu0 0.0
  %528 = vmatprep.subr.mxu0 0.0
  %529 = vmatpush1.msra.mxu0 0.0
  %530 = vmatprep.subr.mxu0 0.0
  %531 = vmatpush1.msra.mxu0 0.0
  %532 = vmatprep.subr.mxu0 0.0
  %533 = vmatpush1.msra.mxu0 0.0
  %534 = vmatprep.subr.mxu0 0.0
  %535 = vmatpush1.msra.mxu0 0.0
  %536 = vmatprep.subr.mxu0 %v126
  %537 = vmatpush1.msra.mxu0 %v125
  %538 = vmatprep.subr.mxu0 %v124
  %539 = vmatpush1.msra.mxu0 %v123
  %540 = vmatprep.subr.mxu0 %v122
  %541 = vmatpush1.msra.mxu0 %v121
  %542 = vmatprep.subr.mxu0 %v120
  %543 = vmatpush1.msra.mxu0 %v119
  %544 = vmatprep.subr.mxu0 %v118
  %545 = vmatpush1.msra.mxu0 %v117
  %546 = vmatprep.subr.mxu0 %v116
  %547 = vmatpush1.msra.mxu0 %v115
  %548 = vmatprep.subr.mxu0 %v114
  %549 = vmatpush1.msra.mxu0 %v113
  %550 = vmatprep.subr.mxu0 %v112
  %551 = vmatpush1.msra.mxu0 %v111
  %552 = vmatprep.subr.mxu0 0.0
  %553 = vmatpush2.msra.mxu0 0.0
  %554 = vmatprep.subr.mxu0 0.0
  %555 = vmatpush2.msra.mxu0 0.0
  %556 = vmatprep.subr.mxu0 0.0
  %557 = vmatpush2.msra.mxu0 0.0
  %558 = vmatprep.subr.mxu0 0.0
  %559 = vmatpush2.msra.mxu0 0.0
  %560 = vmatprep.subr.mxu0 0.0
  %561 = vmatpush2.msra.mxu0 0.0
  %562 = vmatprep.subr.mxu0 0.0
  %563 = vmatpush2.msra.mxu0 0.0
  %564 = vmatprep.subr.mxu0 0.0
  %565 = vmatpush2.msra.mxu0 0.0
  %566 = vmatprep.subr.mxu0 0.0
  %567 = vmatpush2.msra.mxu0 0.0
  %568 = vmatprep.subr.mxu0 0.0
  %569 = vmatpush2.msra.mxu0 0.0
  %570 = vmatprep.subr.mxu0 0.0
  %571 = vmatpush2.msra.mxu0 0.0
  %572 = vmatprep.subr.mxu0 0.0
  %573 = vmatpush2.msra.mxu0 0.0
  %574 = vmatprep.subr.mxu0 0.0
  %575 = vmatpush2.msra.mxu0 0.0
  %576 = vmatprep.subr.mxu0 0.0
  %577 = vmatpush2.msra.mxu0 0.0
  %578 = vmatprep.subr.mxu0 0.0
  %579 = vmatpush2.msra.mxu0 0.0
  %580 = vmatprep.subr.mxu0 0.0
  %581 = vmatpush2.msra.mxu0 0.0
  %582 = vmatprep.subr.mxu0 0.0
  %583 = vmatpush2.msra.mxu0 0.0
  %584 = vmatprep.mubr.f32.mxu0 0.0
  %585 = vmatmul.mubr.f32.gmra.mxu0 %v518
  %v586 = vpop.f32.mrf.mxu0
  %v587 = vadd.f32 0.0, %v586
  %v588 = vpop.f32.mrf.mxu0
  %v589 = vadd.f32 0.0, %v588
  %590 = vdwg.mxu0
  %v593 = vcombine.low %v587, %v589
  %v595 = vunpack.c.l.s4 1966171168
  %v596 = vunpack.c.0.s8 %v595
  %v597 = vlaneseq
  %v598 = vshrl.u32 %v597, 7
  %v599 = vsub.s32 %v596, %v598
  %v600 = vrot.slane %v593, %v599
  %v602 = vunpack.c.l.s4 1966171168
  %v603 = vunpack.c.0.s8 %v602
  %v604 = vlaneseq
  %v605 = vshrl.u32 %v604, 7
  %v606 = vsub.s32 %v603, %v605
  %v607 = vrot.slane %v600, %v606
  %v609 = vadd.f32 %v516, %v607
  %v610 = vsub.f32 0.0, %v609
  %v611 = vmul.f32 %v610, 1.442695
  %v612 = vpow.pop %v611
  %v613 = vadd.f32 %v612, 1.0
  %v614 = vrcp.pop %v613
  %v615 = vmul.f32 1.0, %v614
  %v617 = vrot.slane %v609, 1
  %v619 = vtanh.pop %v617
  %620 = vrot.lane.b32.xlu0 %v609, 64
  %v621 = vpop.permute.xlu0 %620
  %v622 = vrot.slane %v621, 1
  %v624 = vsub.f32 0.0, %v622
  %v625 = vmul.f32 %v624, 1.442695
  %v626 = vpow.pop %v625
  %v627 = vadd.f32 %v626, 1.0
  %v628 = vrcp.pop %v627
  %v629 = vmul.f32 1.0, %v628
  %v630 = vmul.f32 %v615, %v507
  %v631 = vmul.f32 %v615, %v619
  %633 = vrot.lane.b32.xlu0 %v631, 64
  %v634 = vpop.permute.xlu0 %633
  %v636 = vadd.f32 %v630, %v634
  %v637 = vtanh.pop %v636
  %639 = vrot.lane.b32.xlu0 %v637, 64
  %v640 = vpop.permute.xlu0 %639
  %v642 = vmul.f32 %v629, %v640
  %643 = vst.msk [vmem:[%s4 + $0x3] sm:$0x1] %vm255, %v642
  %s644 = scalar_lea.vmem [#allocation2], 4
  %v645 = vld [vmem:[%s644] ss:$8 sm:$0x3]
  %v647 = vsel %vm128, %v642, 0
  %649 = vmatprep.subr.mxu0 0.0
  %650 = vmatpush1.msra.mxu0 0.0
  %651 = vmatprep.subr.mxu0 0.0
  %652 = vmatpush1.msra.mxu0 0.0
  %653 = vmatprep.subr.mxu0 0.0
  %654 = vmatpush1.msra.mxu0 0.0
  %655 = vmatprep.subr.mxu0 0.0
  %656 = vmatpush1.msra.mxu0 0.0
  %657 = vmatprep.subr.mxu0 0.0
  %658 = vmatpush1.msra.mxu0 0.0
  %659 = vmatprep.subr.mxu0 0.0
  %660 = vmatpush1.msra.mxu0 0.0
  %661 = vmatprep.subr.mxu0 0.0
  %662 = vmatpush1.msra.mxu0 0.0
  %663 = vmatprep.subr.mxu0 0.0
  %664 = vmatpush1.msra.mxu0 0.0
  %665 = vmatprep.subr.mxu0 %v126
  %666 = vmatpush1.msra.mxu0 %v125
  %667 = vmatprep.subr.mxu0 %v124
  %668 = vmatpush1.msra.mxu0 %v123
  %669 = vmatprep.subr.mxu0 %v122
  %670 = vmatpush1.msra.mxu0 %v121
  %671 = vmatprep.subr.mxu0 %v120
  %672 = vmatpush1.msra.mxu0 %v119
  %673 = vmatprep.subr.mxu0 %v118
  %674 = vmatpush1.msra.mxu0 %v117
  %675 = vmatprep.subr.mxu0 %v116
  %676 = vmatpush1.msra.mxu0 %v115
  %677 = vmatprep.subr.mxu0 %v114
  %678 = vmatpush1.msra.mxu0 %v113
  %679 = vmatprep.subr.mxu0 %v112
  %680 = vmatpush1.msra.mxu0 %v111
  %681 = vmatprep.subr.mxu0 0.0
  %682 = vmatpush2.msra.mxu0 0.0
  %683 = vmatprep.subr.mxu0 0.0
  %684 = vmatpush2.msra.mxu0 0.0
  %685 = vmatprep.subr.mxu0 0.0
  %686 = vmatpush2.msra.mxu0 0.0
  %687 = vmatprep.subr.mxu0 0.0
  %688 = vmatpush2.msra.mxu0 0.0
  %689 = vmatprep.subr.mxu0 0.0
  %690 = vmatpush2.msra.mxu0 0.0
  %691 = vmatprep.subr.mxu0 0.0
  %692 = vmatpush2.msra.mxu0 0.0
  %693 = vmatprep.subr.mxu0 0.0
  %694 = vmatpush2.msra.mxu0 0.0
  %695 = vmatprep.subr.mxu0 0.0
  %696 = vmatpush2.msra.mxu0 0.0
  %697 = vmatprep.subr.mxu0 0.0
  %698 = vmatpush2.msra.mxu0 0.0
  %699 = vmatprep.subr.mxu0 0.0
  %700 = vmatpush2.msra.mxu0 0.0
  %701 = vmatprep.subr.mxu0 0.0
  %702 = vmatpush2.msra.mxu0 0.0
  %703 = vmatprep.subr.mxu0 0.0
  %704 = vmatpush2.msra.mxu0 0.0
  %705 = vmatprep.subr.mxu0 0.0
  %706 = vmatpush2.msra.mxu0 0.0
  %707 = vmatprep.subr.mxu0 0.0
  %708 = vmatpush2.msra.mxu0 0.0
  %709 = vmatprep.subr.mxu0 0.0
  %710 = vmatpush2.msra.mxu0 0.0
  %711 = vmatprep.subr.mxu0 0.0
  %712 = vmatpush2.msra.mxu0 0.0
  %713 = vmatprep.mubr.f32.mxu0 0.0
  %714 = vmatmul.mubr.f32.gmra.mxu0 %v647
  %v715 = vpop.f32.mrf.mxu0
  %v716 = vadd.f32 0.0, %v715
  %v717 = vpop.f32.mrf.mxu0
  %v718 = vadd.f32 0.0, %v717
  %719 = vdwg.mxu0
  %v722 = vcombine.low %v716, %v718
  %v724 = vunpack.c.l.s4 1966171168
  %v725 = vunpack.c.0.s8 %v724
  %v726 = vlaneseq
  %v727 = vshrl.u32 %v726, 7
  %v728 = vsub.s32 %v725, %v727
  %v729 = vrot.slane %v722, %v728
  %v731 = vunpack.c.l.s4 1966171168
  %v732 = vunpack.c.0.s8 %v731
  %v733 = vlaneseq
  %v734 = vshrl.u32 %v733, 7
  %v735 = vsub.s32 %v732, %v734
  %v736 = vrot.slane %v729, %v735
  %v738 = vadd.f32 %v645, %v736
  %v739 = vsub.f32 0.0, %v738
  %v740 = vmul.f32 %v739, 1.442695
  %v741 = vpow.pop %v740
  %v742 = vadd.f32 %v741, 1.0
  %v743 = vrcp.pop %v742
  %v744 = vmul.f32 1.0, %v743
  %v746 = vrot.slane %v738, 1
  %v748 = vtanh.pop %v746
  %749 = vrot.lane.b32.xlu0 %v738, 64
  %v750 = vpop.permute.xlu0 %749
  %v751 = vrot.slane %v750, 1
  %v753 = vsub.f32 0.0, %v751
  %v754 = vmul.f32 %v753, 1.442695
  %v755 = vpow.pop %v754
  %v756 = vadd.f32 %v755, 1.0
  %v757 = vrcp.pop %v756
  %v758 = vmul.f32 1.0, %v757
  %v759 = vmul.f32 %v744, %v636
  %v760 = vmul.f32 %v744, %v748
  %762 = vrot.lane.b32.xlu0 %v760, 64
  %v763 = vpop.permute.xlu0 %762
  %v765 = vadd.f32 %v759, %v763
  %v766 = vtanh.pop %v765
  %768 = vrot.lane.b32.xlu0 %v766, 64
  %v769 = vpop.permute.xlu0 %768
  %v771 = vmul.f32 %v758, %v769
  %772 = vst.msk [vmem:[%s4 + $0x4] sm:$0x1] %vm255, %v771
  %s773 = scalar_lea.vmem [#allocation2], 5
  %v774 = vld [vmem:[%s773] ss:$8 sm:$0x3]
  %v776 = vsel %vm128, %v771, 0
  %778 = vmatprep.subr.mxu0 0.0
  %779 = vmatpush1.msra.mxu0 0.0
  %780 = vmatprep.subr.mxu0 0.0
  %781 = vmatpush1.msra.mxu0 0.0
  %782 = vmatprep.subr.mxu0 0.0
  %783 = vmatpush1.msra.mxu0 0.0
  %784 = vmatprep.subr.mxu0 0.0
  %785 = vmatpush1.msra.mxu0 0.0
  %786 = vmatprep.subr.mxu0 0.0
  %787 = vmatpush1.msra.mxu0 0.0
  %788 = vmatprep.subr.mxu0 0.0
  %789 = vmatpush1.msra.mxu0 0.0
  %790 = vmatprep.subr.mxu0 0.0
  %791 = vmatpush1.msra.mxu0 0.0
  %792 = vmatprep.subr.mxu0 0.0
  %793 = vmatpush1.msra.mxu0 0.0
  %794 = vmatprep.subr.mxu0 %v126
  %795 = vmatpush1.msra.mxu0 %v125
  %796 = vmatprep.subr.mxu0 %v124
  %797 = vmatpush1.msra.mxu0 %v123
  %798 = vmatprep.subr.mxu0 %v122
  %799 = vmatpush1.msra.mxu0 %v121
  %800 = vmatprep.subr.mxu0 %v120
  %801 = vmatpush1.msra.mxu0 %v119
  %802 = vmatprep.subr.mxu0 %v118
  %803 = vmatpush1.msra.mxu0 %v117
  %804 = vmatprep.subr.mxu0 %v116
  %805 = vmatpush1.msra.mxu0 %v115
  %806 = vmatprep.subr.mxu0 %v114
  %807 = vmatpush1.msra.mxu0 %v113
  %808 = vmatprep.subr.mxu0 %v112
  %809 = vmatpush1.msra.mxu0 %v111
  %810 = vmatprep.subr.mxu0 0.0
  %811 = vmatpush2.msra.mxu0 0.0
  %812 = vmatprep.subr.mxu0 0.0
  %813 = vmatpush2.msra.mxu0 0.0
  %814 = vmatprep.subr.mxu0 0.0
  %815 = vmatpush2.msra.mxu0 0.0
  %816 = vmatprep.subr.mxu0 0.0
  %817 = vmatpush2.msra.mxu0 0.0
  %818 = vmatprep.subr.mxu0 0.0
  %819 = vmatpush2.msra.mxu0 0.0
  %820 = vmatprep.subr.mxu0 0.0
  %821 = vmatpush2.msra.mxu0 0.0
  %822 = vmatprep.subr.mxu0 0.0
  %823 = vmatpush2.msra.mxu0 0.0
  %824 = vmatprep.subr.mxu0 0.0
  %825 = vmatpush2.msra.mxu0 0.0
  %826 = vmatprep.subr.mxu0 0.0
  %827 = vmatpush2.msra.mxu0 0.0
  %828 = vmatprep.subr.mxu0 0.0
  %829 = vmatpush2.msra.mxu0 0.0
  %830 = vmatprep.subr.mxu0 0.0
  %831 = vmatpush2.msra.mxu0 0.0
  %832 = vmatprep.subr.mxu0 0.0
  %833 = vmatpush2.msra.mxu0 0.0
  %834 = vmatprep.subr.mxu0 0.0
  %835 = vmatpush2.msra.mxu0 0.0
  %836 = vmatprep.subr.mxu0 0.0
  %837 = vmatpush2.msra.mxu0 0.0
  %838 = vmatprep.subr.mxu0 0.0
  %839 = vmatpush2.msra.mxu0 0.0
  %840 = vmatprep.subr.mxu0 0.0
  %841 = vmatpush2.msra.mxu0 0.0
  %842 = vmatprep.mubr.f32.mxu0 0.0
  %843 = vmatmul.mubr.f32.gmra.mxu0 %v776
  %v844 = vpop.f32.mrf.mxu0
  %v845 = vadd.f32 0.0, %v844
  %v846 = vpop.f32.mrf.mxu0
  %v847 = vadd.f32 0.0, %v846
  %848 = vdwg.mxu0
  %v851 = vcombine.low %v845, %v847
  %v853 = vunpack.c.l.s4 1966171168
  %v854 = vunpack.c.0.s8 %v853
  %v855 = vlaneseq
  %v856 = vshrl.u32 %v855, 7
  %v857 = vsub.s32 %v854, %v856
  %v858 = vrot.slane %v851, %v857
  %v860 = vunpack.c.l.s4 1966171168
  %v861 = vunpack.c.0.s8 %v860
  %v862 = vlaneseq
  %v863 = vshrl.u32 %v862, 7
  %v864 = vsub.s32 %v861, %v863
  %v865 = vrot.slane %v858, %v864
  %v867 = vadd.f32 %v774, %v865
  %v868 = vsub.f32 0.0, %v867
  %v869 = vmul.f32 %v868, 1.442695
  %v870 = vpow.pop %v869
  %v871 = vadd.f32 %v870, 1.0
  %v872 = vrcp.pop %v871
  %v873 = vmul.f32 1.0, %v872
  %v875 = vrot.slane %v867, 1
  %v877 = vtanh.pop %v875
  %878 = vrot.lane.b32.xlu0 %v867, 64
  %v879 = vpop.permute.xlu0 %878
  %v880 = vrot.slane %v879, 1
  %v882 = vsub.f32 0.0, %v880
  %v883 = vmul.f32 %v882, 1.442695
  %v884 = vpow.pop %v883
  %v885 = vadd.f32 %v884, 1.0
  %v886 = vrcp.pop %v885
  %v887 = vmul.f32 1.0, %v886
  %v888 = vmul.f32 %v873, %v765
  %v889 = vmul.f32 %v873, %v877
  %891 = vrot.lane.b32.xlu0 %v889, 64
  %v892 = vpop.permute.xlu0 %891
  %v894 = vadd.f32 %v888, %v892
  %v895 = vtanh.pop %v894
  %897 = vrot.lane.b32.xlu0 %v895, 64
  %v898 = vpop.permute.xlu0 %897
  %v900 = vmul.f32 %v887, %v898
  %901 = vst.msk [vmem:[%s4 + $0x5] sm:$0x1] %vm255, %v900
  %s902 = scalar_lea.vmem [#allocation2], 6
  %v903 = vld [vmem:[%s902] ss:$8 sm:$0x3]
  %v905 = vsel %vm128, %v900, 0
  %907 = vmatprep.subr.mxu0 0.0
  %908 = vmatpush1.msra.mxu0 0.0
  %909 = vmatprep.subr.mxu0 0.0
  %910 = vmatpush1.msra.mxu0 0.0
  %911 = vmatprep.subr.mxu0 0.0
  %912 = vmatpush1.msra.mxu0 0.0
  %913 = vmatprep.subr.mxu0 0.0
  %914 = vmatpush1.msra.mxu0 0.0
  %915 = vmatprep.subr.mxu0 0.0
  %916 = vmatpush1.msra.mxu0 0.0
  %917 = vmatprep.subr.mxu0 0.0
  %918 = vmatpush1.msra.mxu0 0.0
  %919 = vmatprep.subr.mxu0 0.0
  %920 = vmatpush1.msra.mxu0 0.0
  %921 = vmatprep.subr.mxu0 0.0
  %922 = vmatpush1.msra.mxu0 0.0
  %923 = vmatprep.subr.mxu0 %v126
  %924 = vmatpush1.msra.mxu0 %v125
  %925 = vmatprep.subr.mxu0 %v124
  %926 = vmatpush1.msra.mxu0 %v123
  %927 = vmatprep.subr.mxu0 %v122
  %928 = vmatpush1.msra.mxu0 %v121
  %929 = vmatprep.subr.mxu0 %v120
  %930 = vmatpush1.msra.mxu0 %v119
  %931 = vmatprep.subr.mxu0 %v118
  %932 = vmatpush1.msra.mxu0 %v117
  %933 = vmatprep.subr.mxu0 %v116
  %934 = vmatpush1.msra.mxu0 %v115
  %935 = vmatprep.subr.mxu0 %v114
  %936 = vmatpush1.msra.mxu0 %v113
  %937 = vmatprep.subr.mxu0 %v112
  %938 = vmatpush1.msra.mxu0 %v111
  %939 = vmatprep.subr.mxu0 0.0
  %940 = vmatpush2.msra.mxu0 0.0
  %941 = vmatprep.subr.mxu0 0.0
  %942 = vmatpush2.msra.mxu0 0.0
  %943 = vmatprep.subr.mxu0 0.0
  %944 = vmatpush2.msra.mxu0 0.0
  %945 = vmatprep.subr.mxu0 0.0
  %946 = vmatpush2.msra.mxu0 0.0
  %947 = vmatprep.subr.mxu0 0.0
  %948 = vmatpush2.msra.mxu0 0.0
  %949 = vmatprep.subr.mxu0 0.0
  %950 = vmatpush2.msra.mxu0 0.0
  %951 = vmatprep.subr.mxu0 0.0
  %952 = vmatpush2.msra.mxu0 0.0
  %953 = vmatprep.subr.mxu0 0.0
  %954 = vmatpush2.msra.mxu0 0.0
  %955 = vmatprep.subr.mxu0 0.0
  %956 = vmatpush2.msra.mxu0 0.0
  %957 = vmatprep.subr.mxu0 0.0
  %958 = vmatpush2.msra.mxu0 0.0
  %959 = vmatprep.subr.mxu0 0.0
  %960 = vmatpush2.msra.mxu0 0.0
  %961 = vmatprep.subr.mxu0 0.0
  %962 = vmatpush2.msra.mxu0 0.0
  %963 = vmatprep.subr.mxu0 0.0
  %964 = vmatpush2.msra.mxu0 0.0
  %965 = vmatprep.subr.mxu0 0.0
  %966 = vmatpush2.msra.mxu0 0.0
  %967 = vmatprep.subr.mxu0 0.0
  %968 = vmatpush2.msra.mxu0 0.0
  %969 = vmatprep.subr.mxu0 0.0
  %970 = vmatpush2.msra.mxu0 0.0
  %971 = vmatprep.mubr.f32.mxu0 0.0
  %972 = vmatmul.mubr.f32.gmra.mxu0 %v905
  %v973 = vpop.f32.mrf.mxu0
  %v974 = vadd.f32 0.0, %v973
  %v975 = vpop.f32.mrf.mxu0
  %v976 = vadd.f32 0.0, %v975
  %977 = vdwg.mxu0
  %v980 = vcombine.low %v974, %v976
  %v982 = vunpack.c.l.s4 1966171168
  %v983 = vunpack.c.0.s8 %v982
  %v984 = vlaneseq
  %v985 = vshrl.u32 %v984, 7
  %v986 = vsub.s32 %v983, %v985
  %v987 = vrot.slane %v980, %v986
  %v989 = vunpack.c.l.s4 1966171168
  %v990 = vunpack.c.0.s8 %v989
  %v991 = vlaneseq
  %v992 = vshrl.u32 %v991, 7
  %v993 = vsub.s32 %v990, %v992
  %v994 = vrot.slane %v987, %v993
  %v996 = vadd.f32 %v903, %v994
  %v997 = vsub.f32 0.0, %v996
  %v998 = vmul.f32 %v997, 1.442695
  %v999 = vpow.pop %v998
  %v1000 = vadd.f32 %v999, 1.0
  %v1001 = vrcp.pop %v1000
  %v1002 = vmul.f32 1.0, %v1001
  %v1004 = vrot.slane %v996, 1
  %v1006 = vtanh.pop %v1004
  %1007 = vrot.lane.b32.xlu0 %v996, 64
  %v1008 = vpop.permute.xlu0 %1007
  %v1009 = vrot.slane %v1008, 1
  %v1011 = vsub.f32 0.0, %v1009
  %v1012 = vmul.f32 %v1011, 1.442695
  %v1013 = vpow.pop %v1012
  %v1014 = vadd.f32 %v1013, 1.0
  %v1015 = vrcp.pop %v1014
  %v1016 = vmul.f32 1.0, %v1015
  %v1017 = vmul.f32 %v1002, %v894
  %v1018 = vmul.f32 %v1002, %v1006
  %1020 = vrot.lane.b32.xlu0 %v1018, 64
  %v1021 = vpop.permute.xlu0 %1020
  %v1023 = vadd.f32 %v1017, %v1021
  %v1024 = vtanh.pop %v1023
  %1026 = vrot.lane.b32.xlu0 %v1024, 64
  %v1027 = vpop.permute.xlu0 %1026
  %v1029 = vmul.f32 %v1016, %v1027
  %1030 = vst.msk [vmem:[%s4 + $0x6] sm:$0x1] %vm255, %v1029
  %s1031 = scalar_lea.vmem [#allocation2], 7
  %v1032 = vld [vmem:[%s1031] ss:$8 sm:$0x3]
  %v1034 = vsel %vm128, %v1029, 0
  %1036 = vmatprep.subr.mxu0 0.0
  %1037 = vmatpush1.msra.mxu0 0.0
  %1038 = vmatprep.subr.mxu0 0.0
  %1039 = vmatpush1.msra.mxu0 0.0
  %1040 = vmatprep.subr.mxu0 0.0
  %1041 = vmatpush1.msra.mxu0 0.0
  %1042 = vmatprep.subr.mxu0 0.0
  %1043 = vmatpush1.msra.mxu0 0.0
  %1044 = vmatprep.subr.mxu0 0.0
  %1045 = vmatpush1.msra.mxu0 0.0
  %1046 = vmatprep.subr.mxu0 0.0
  %1047 = vmatpush1.msra.mxu0 0.0
  %1048 = vmatprep.subr.mxu0 0.0
  %1049 = vmatpush1.msra.mxu0 0.0
  %1050 = vmatprep.subr.mxu0 0.0
  %1051 = vmatpush1.msra.mxu0 0.0
  %1052 = vmatprep.subr.mxu0 %v126
  %1053 = vmatpush1.msra.mxu0 %v125
  %1054 = vmatprep.subr.mxu0 %v124
  %1055 = vmatpush1.msra.mxu0 %v123
  %1056 = vmatprep.subr.mxu0 %v122
  %1057 = vmatpush1.msra.mxu0 %v121
  %1058 = vmatprep.subr.mxu0 %v120
  %1059 = vmatpush1.msra.mxu0 %v119
  %1060 = vmatprep.subr.mxu0 %v118
  %1061 = vmatpush1.msra.mxu0 %v117
  %1062 = vmatprep.subr.mxu0 %v116
  %1063 = vmatpush1.msra.mxu0 %v115
  %1064 = vmatprep.subr.mxu0 %v114
  %1065 = vmatpush1.msra.mxu0 %v113
  %1066 = vmatprep.subr.mxu0 %v112
  %1067 = vmatpush1.msra.mxu0 %v111
  %1068 = vmatprep.subr.mxu0 0.0
  %1069 = vmatpush2.msra.mxu0 0.0
  %1070 = vmatprep.subr.mxu0 0.0
  %1071 = vmatpush2.msra.mxu0 0.0
  %1072 = vmatprep.subr.mxu0 0.0
  %1073 = vmatpush2.msra.mxu0 0.0
  %1074 = vmatprep.subr.mxu0 0.0
  %1075 = vmatpush2.msra.mxu0 0.0
  %1076 = vmatprep.subr.mxu0 0.0
  %1077 = vmatpush2.msra.mxu0 0.0
  %1078 = vmatprep.subr.mxu0 0.0
  %1079 = vmatpush2.msra.mxu0 0.0
  %1080 = vmatprep.subr.mxu0 0.0
  %1081 = vmatpush2.msra.mxu0 0.0
  %1082 = vmatprep.subr.mxu0 0.0
  %1083 = vmatpush2.msra.mxu0 0.0
  %1084 = vmatprep.subr.mxu0 0.0
  %1085 = vmatpush2.msra.mxu0 0.0
  %1086 = vmatprep.subr.mxu0 0.0
  %1087 = vmatpush2.msra.mxu0 0.0
  %1088 = vmatprep.subr.mxu0 0.0
  %1089 = vmatpush2.msra.mxu0 0.0
  %1090 = vmatprep.subr.mxu0 0.0
  %1091 = vmatpush2.msra.mxu0 0.0
  %1092 = vmatprep.subr.mxu0 0.0
  %1093 = vmatpush2.msra.mxu0 0.0
  %1094 = vmatprep.subr.mxu0 0.0
  %1095 = vmatpush2.msra.mxu0 0.0
  %1096 = vmatprep.subr.mxu0 0.0
  %1097 = vmatpush2.msra.mxu0 0.0
  %1098 = vmatprep.subr.mxu0 0.0
  %1099 = vmatpush2.msra.mxu0 0.0
  %1100 = vmatprep.mubr.f32.mxu0 0.0
  %1101 = vmatmul.mubr.f32.gmra.mxu0 %v1034
  %v1102 = vpop.f32.mrf.mxu0
  %v1103 = vadd.f32 0.0, %v1102
  %v1104 = vpop.f32.mrf.mxu0
  %v1105 = vadd.f32 0.0, %v1104
  %1106 = vdwg.mxu0
  %v1109 = vcombine.low %v1103, %v1105
  %v1111 = vunpack.c.l.s4 1966171168
  %v1112 = vunpack.c.0.s8 %v1111
  %v1113 = vlaneseq
  %v1114 = vshrl.u32 %v1113, 7
  %v1115 = vsub.s32 %v1112, %v1114
  %v1116 = vrot.slane %v1109, %v1115
  %v1118 = vunpack.c.l.s4 1966171168
  %v1119 = vunpack.c.0.s8 %v1118
  %v1120 = vlaneseq
  %v1121 = vshrl.u32 %v1120, 7
  %v1122 = vsub.s32 %v1119, %v1121
  %v1123 = vrot.slane %v1116, %v1122
  %v1125 = vadd.f32 %v1032, %v1123
  %v1126 = vsub.f32 0.0, %v1125
  %v1127 = vmul.f32 %v1126, 1.442695
  %v1128 = vpow.pop %v1127
  %v1129 = vadd.f32 %v1128, 1.0
  %v1130 = vrcp.pop %v1129
  %v1131 = vmul.f32 1.0, %v1130
  %v1133 = vrot.slane %v1125, 1
  %v1135 = vtanh.pop %v1133
  %1136 = vrot.lane.b32.xlu0 %v1125, 64
  %v1137 = vpop.permute.xlu0 %1136
  %v1138 = vrot.slane %v1137, 1
  %v1140 = vsub.f32 0.0, %v1138
  %v1141 = vmul.f32 %v1140, 1.442695
  %v1142 = vpow.pop %v1141
  %v1143 = vadd.f32 %v1142, 1.0
  %v1144 = vrcp.pop %v1143
  %v1145 = vmul.f32 1.0, %v1144
  %v1146 = vmul.f32 %v1131, %v1023
  %v1147 = vmul.f32 %v1131, %v1135
  %1149 = vrot.lane.b32.xlu0 %v1147, 64
  %v1150 = vpop.permute.xlu0 %1149
  %v1152 = vadd.f32 %v1146, %v1150
  %v1153 = vtanh.pop %v1152
  %1155 = vrot.lane.b32.xlu0 %v1153, 64
  %v1156 = vpop.permute.xlu0 %1155
  %v1158 = vmul.f32 %v1145, %v1156
  %1159 = vst.msk [vmem:[%s4 + $0x7] sm:$0x1] %vm255, %v1158
  // Predicated region
  $region18: #{lstmfcn_forward.3} parent=0 // pred_check
    _
  $region19: #{lstmfcn_forward.3} parent=0 // pred_check_branch
    %1161 = sbr.rel (0) target = $region21
  $region20: #{lstmfcn_forward.3} parent=0 // pred_region
    _
  $region21: #{lstmfcn_forward.3} parent=0 // pred_fallthru
    _
  // Predicated region
  $region22: #{lstmfcn_forward.3} parent=0 // pred_check
    _
  $region23: #{lstmfcn_forward.3} parent=0 // pred_check_branch
    %1163 = sbr.rel (0) target = $region25
  $region24: #{lstmfcn_forward.3} parent=0 // pred_region
    _
  $region25: #{lstmfcn_forward.3} parent=0 // pred_fallthru
    _

// kernel: lstmfcn_forward.4
$region0: #{lstmfcn_forward.4}
  #allocation0 [shape = 'u32[]', space=smem, size = 0x4, offset = 0x4, fixed_abs, tag = 'smem constant byte address 0x4 - core index']
  #allocation1 [shape = 'u32[144,128]{1,0:T(1,128)}', space=vmem, size = 0x12000, scoped, tag = 'internal scratch']
  #allocation2 [shape = 'f32[124,64]{1,0:T(8,128)}', space=vmem, size = 0x10000, scoped, tag = 'scratch operand']
  #allocation3 [shape = 'f32[122,128]{1,0:T(8,128)}', space=vmem, size = 0x10000, scoped, tag = 'scratch operand']
  %s0 = inlined_call_operand.vmem [shape: f32[124,5], index: 0, kind: input, shape index: {}]
  %s1 = inlined_call_operand.vmem [shape: f32[5,64], index: 1, kind: input, shape index: {}]
  %s2 = inlined_call_operand.vmem [shape: f32[3,64,128], index: 2, kind: input, shape index: {}]
  %s3 = inlined_call_operand.vmem [shape: f32[2,128,64], index: 3, kind: input, shape index: {}]
  %s4 = inlined_call_operand.vmem [shape: f32[1,64], index: 4, kind: input, shape index: {}]
  %s5 = inlined_call_operand.vmem [shape: f32[1,64], index: 5, kind: input, shape index: {}]
  %s6 = inlined_call_operand.vmem [shape: f32[1,128], index: 6, kind: input, shape index: {}]
  %s7 = inlined_call_operand.vmem [shape: f32[1,128], index: 7, kind: input, shape index: {}]
  %s8 = inlined_call_operand.vmem [shape: f32[1,64], index: 8, kind: input, shape index: {}]
  %s9 = inlined_call_operand.vmem [shape: f32[1,64], index: 9, kind: input, shape index: {}]
  %s10 = inlined_call_operand.vmem [shape: f32[124,1], index: 10, kind: input, shape index: {}]
  %s11 = inlined_call_operand.vmem [shape: f32[122,1], index: 11, kind: input, shape index: {}]
  %s12 = inlined_call_operand.vmem [shape: f32[121,1], index: 12, kind: input, shape index: {}]
  %s13 = inlined_call_operand.vmem [shape: f32[8,121], index: 13, kind: input, shape index: {}]
  %s14 = inlined_call_operand.vmem [shape: f32[8,64], index: 14, kind: output, shape index: {}]
  %s15 = sld [smem:[#allocation0]]
  $region66: #{lstmfcn_forward.4} parent=0
    _
  %s17 = ssub.s32 1, %s15
  %s18 = scalar_select 0, %s17, %s15
  // Predicated region
  $region2: #{lstmfcn_forward.4} parent=0 // pred_check
    _
  $region3: #{lstmfcn_forward.4} parent=0 // pred_check_branch
    %20 = sbr.rel (0) target = $region5
  $region4: #{lstmfcn_forward.4} parent=0 // pred_region
    _
  $region5: #{lstmfcn_forward.4} parent=0 // pred_fallthru
    _
  // Predicated region
  $region6: #{lstmfcn_forward.4} parent=0 // pred_check
    _
  $region7: #{lstmfcn_forward.4} parent=0 // pred_check_branch
    %22 = sbr.rel (0) target = $region9
  $region8: #{lstmfcn_forward.4} parent=0 // pred_region
    _
  $region9: #{lstmfcn_forward.4} parent=0 // pred_fallthru
    _
  // Predicated region
  $region10: #{lstmfcn_forward.4} parent=0 // pred_check
    _
  $region11: #{lstmfcn_forward.4} parent=0 // pred_check_branch
    %24 = sbr.rel (0) target = $region13
  $region12: #{lstmfcn_forward.4} parent=0 // pred_region
    _
  $region13: #{lstmfcn_forward.4} parent=0 // pred_fallthru
    _
  // Predicated region
  $region14: #{lstmfcn_forward.4} parent=0 // pred_check
    _
  $region15: #{lstmfcn_forward.4} parent=0 // pred_check_branch
    %26 = sbr.rel (0) target = $region17
  $region16: #{lstmfcn_forward.4} parent=0 // pred_region
    _
  $region17: #{lstmfcn_forward.4} parent=0 // pred_fallthru
    _
  // Predicated region
  $region18: #{lstmfcn_forward.4} parent=0 // pred_check
    _
  $region19: #{lstmfcn_forward.4} parent=0 // pred_check_branch
    %28 = sbr.rel (0) target = $region21
  $region20: #{lstmfcn_forward.4} parent=0 // pred_region
    _
  $region21: #{lstmfcn_forward.4} parent=0 // pred_fallthru
    _
  // Predicated region
  $region22: #{lstmfcn_forward.4} parent=0 // pred_check
    _
  $region23: #{lstmfcn_forward.4} parent=0 // pred_check_branch
    %30 = sbr.rel (0) target = $region25
  $region24: #{lstmfcn_forward.4} parent=0 // pred_region
    _
  $region25: #{lstmfcn_forward.4} parent=0 // pred_fallthru
    _
  // Predicated region
  $region26: #{lstmfcn_forward.4} parent=0 // pred_check
    _
  $region27: #{lstmfcn_forward.4} parent=0 // pred_check_branch
    %32 = sbr.rel (0) target = $region29
  $region28: #{lstmfcn_forward.4} parent=0 // pred_region
    _
  $region29: #{lstmfcn_forward.4} parent=0 // pred_fallthru
    _
  // Predicated region
  $region30: #{lstmfcn_forward.4} parent=0 // pred_check
    _
  $region31: #{lstmfcn_forward.4} parent=0 // pred_check_branch
    %34 = sbr.rel (0) target = $region33
  $region32: #{lstmfcn_forward.4} parent=0 // pred_region
    _
  $region33: #{lstmfcn_forward.4} parent=0 // pred_fallthru
    _
  // Predicated region
  $region34: #{lstmfcn_forward.4} parent=0 // pred_check
    _
  $region35: #{lstmfcn_forward.4} parent=0 // pred_check_branch
    %36 = sbr.rel (0) target = $region37
  $region36: #{lstmfcn_forward.4} parent=0 // pred_region
    _
  $region37: #{lstmfcn_forward.4} parent=0 // pred_fallthru
    _
  // Predicated region
  $region38: #{lstmfcn_forward.4} parent=0 // pred_check
    _
  $region39: #{lstmfcn_forward.4} parent=0 // pred_check_branch
    %38 = sbr.rel (0) target = $region41
  $region40: #{lstmfcn_forward.4} parent=0 // pred_region
    _
  $region41: #{lstmfcn_forward.4} parent=0 // pred_fallthru
    _
  // Predicated region
  $region42: #{lstmfcn_forward.4} parent=0 // pred_check
    _
  $region43: #{lstmfcn_forward.4} parent=0 // pred_check_branch
    %40 = sbr.rel (0) target = $region45
  $region44: #{lstmfcn_forward.4} parent=0 // pred_region
    _
  $region45: #{lstmfcn_forward.4} parent=0 // pred_fallthru
    _
  // Predicated region
  $region46: #{lstmfcn_forward.4} parent=0 // pred_check
    _
  $region47: #{lstmfcn_forward.4} parent=0 // pred_check_branch
    %42 = sbr.rel (0) target = $region49
  $region48: #{lstmfcn_forward.4} parent=0 // pred_region
    _
  $region49: #{lstmfcn_forward.4} parent=0 // pred_fallthru
    _
  // Predicated region
  $region50: #{lstmfcn_forward.4} parent=0 // pred_check
    _
  $region51: #{lstmfcn_forward.4} parent=0 // pred_check_branch
    %44 = sbr.rel (0) target = $region53
  $region52: #{lstmfcn_forward.4} parent=0 // pred_region
    _
  $region53: #{lstmfcn_forward.4} parent=0 // pred_fallthru
    _
  // Predicated region
  $region54: #{lstmfcn_forward.4} parent=0 // pred_check
    _
  $region55: #{lstmfcn_forward.4} parent=0 // pred_check_branch
    %46 = sbr.rel (0) target = $region57
  $region56: #{lstmfcn_forward.4} parent=0 // pred_region
    _
  $region57: #{lstmfcn_forward.4} parent=0 // pred_fallthru
    _
  %v47 = vld [vmem:[%s0] sm:$0xff]
  %v48 = vld [vmem:[%s0 + $0x8] sm:$0xff]
  %v49 = vld [vmem:[%s0 + $0x10] sm:$0xff]
  %v50 = vld [vmem:[%s0 + $0x18] sm:$0xff]
  %v51 = vld [vmem:[%s0 + $0x20] sm:$0xff]
  %v52 = vld [vmem:[%s0 + $0x28] sm:$0xff]
  %v53 = vld [vmem:[%s0 + $0x30] sm:$0xff]
  %v54 = vld [vmem:[%s0 + $0x38] sm:$0xff]
  %v55 = vld [vmem:[%s0 + $0x40] sm:$0xff]
  %v56 = vld [vmem:[%s0 + $0x48] sm:$0xff]
  %v57 = vld [vmem:[%s0 + $0x50] sm:$0xff]
  %v58 = vld [vmem:[%s0 + $0x58] sm:$0xff]
  %v59 = vld [vmem:[%s0 + $0x60] sm:$0xff]
  %v60 = vld [vmem:[%s0 + $0x68] sm:$0xff]
  %v61 = vld [vmem:[%s0 + $0x70] sm:$0xff]
  %v62 = vld [vmem:[%s0 + $0x78] sm:$0xf]
  %v63 = vld [vmem:[%s1] sm:$0x1f]
  %vm64 = vcmask 39936
  %v66 = vsel %vm64, %v47, 0
  %v69 = vsel %vm64, %v48, 0
  %v72 = vsel %vm64, %v49, 0
  %v75 = vsel %vm64, %v50, 0
  %v78 = vsel %vm64, %v51, 0
  %v81 = vsel %vm64, %v52, 0
  %v84 = vsel %vm64, %v53, 0
  %v87 = vsel %vm64, %v54, 0
  %v90 = vsel %vm64, %v55, 0
  %v93 = vsel %vm64, %v56, 0
  %v96 = vsel %vm64, %v57, 0
  %v99 = vsel %vm64, %v58, 0
  %v102 = vsel %vm64, %v59, 0
  %v105 = vsel %vm64, %v60, 0
  %v108 = vsel %vm64, %v61, 0
  %v111 = vsel %vm64, %v62, 0
  %vm113 = vcmask 1044480
  %v115 = vsel %vm113, %v63, 0
  %117 = vmatprep.subr.mxu0 0.0
  %118 = vmatpush1.msra.mxu0 0.0
  %119 = vmatprep.subr.mxu0 0.0
  %120 = vmatpush1.msra.mxu0 0.0
  %121 = vmatprep.subr.mxu0 0.0
  %122 = vmatpush1.msra.mxu0 0.0
  %123 = vmatprep.subr.mxu0 0.0
  %124 = vmatpush1.msra.mxu0 0.0
  %125 = vmatprep.subr.mxu0 0.0
  %126 = vmatpush1.msra.mxu0 0.0
  %127 = vmatprep.subr.mxu0 0.0
  %128 = vmatpush1.msra.mxu0 0.0
  %129 = vmatprep.subr.mxu0 0.0
  %130 = vmatpush1.msra.mxu0 0.0
  %131 = vmatprep.subr.mxu0 0.0
  %132 = vmatpush1.msra.mxu0 0.0
  %133 = vmatprep.subr.mxu0 0.0
  %134 = vmatpush1.msra.mxu0 0.0
  %135 = vmatprep.subr.mxu0 0.0
  %136 = vmatpush1.msra.mxu0 0.0
  %137 = vmatprep.subr.mxu0 0.0
  %138 = vmatpush1.msra.mxu0 0.0
  %139 = vmatprep.subr.mxu0 0.0
  %140 = vmatpush1.msra.mxu0 0.0
  %141 = vmatprep.subr.mxu0 0.0
  %142 = vmatpush1.msra.mxu0 0.0
  %143 = vmatprep.subr.mxu0 0.0
  %144 = vmatpush1.msra.mxu0 0.0
  %145 = vmatprep.subr.mxu0 0.0
  %146 = vmatpush1.msra.mxu0 0.0
  %147 = vmatprep.subr.mxu0 0.0
  %148 = vmatpush1.msra.mxu0 %v115
  %149 = vmatprep.subr.mxu0 0.0
  %150 = vmatpush2.msra.mxu0 0.0
  %151 = vmatprep.subr.mxu0 0.0
  %152 = vmatpush2.msra.mxu0 0.0
  %153 = vmatprep.subr.mxu0 0.0
  %154 = vmatpush2.msra.mxu0 0.0
  %155 = vmatprep.subr.mxu0 0.0
  %156 = vmatpush2.msra.mxu0 0.0
  %157 = vmatprep.subr.mxu0 0.0
  %158 = vmatpush2.msra.mxu0 0.0
  %159 = vmatprep.subr.mxu0 0.0
  %160 = vmatpush2.msra.mxu0 0.0
  %161 = vmatprep.subr.mxu0 0.0
  %162 = vmatpush2.msra.mxu0 0.0
  %163 = vmatprep.subr.mxu0 0.0
  %164 = vmatpush2.msra.mxu0 0.0
  %165 = vmatprep.subr.mxu0 0.0
  %166 = vmatpush2.msra.mxu0 0.0
  %167 = vmatprep.subr.mxu0 0.0
  %168 = vmatpush2.msra.mxu0 0.0
  %169 = vmatprep.subr.mxu0 0.0
  %170 = vmatpush2.msra.mxu0 0.0
  %171 = vmatprep.subr.mxu0 0.0
  %172 = vmatpush2.msra.mxu0 0.0
  %173 = vmatprep.subr.mxu0 0.0
  %174 = vmatpush2.msra.mxu0 0.0
  %175 = vmatprep.subr.mxu0 0.0
  %176 = vmatpush2.msra.mxu0 0.0
  %177 = vmatprep.subr.mxu0 0.0
  %178 = vmatpush2.msra.mxu0 0.0
  %179 = vmatprep.subr.mxu0 0.0
  %180 = vmatpush2.msra.mxu0 0.0
  %181 = vmatprep.mubr.f32.mxu0 0.0
  %182 = vmatmul.mubr.f32.gmra.mxu0 %v66
  %v183 = vpop.f32.mrf.mxu0
  %v184 = vadd.f32 0.0, %v183
  %v185 = vpop.f32.mrf.mxu0
  %186 = vmatprep.mubr.f32.mxu0 0.0
  %187 = vmatmul.mubr.f32.gmra.mxu0 %v69
  %v188 = vpop.f32.mrf.mxu0
  %v189 = vadd.f32 0.0, %v188
  %v190 = vpop.f32.mrf.mxu0
  %191 = vmatprep.mubr.f32.mxu0 0.0
  %192 = vmatmul.mubr.f32.gmra.mxu0 %v72
  %v193 = vpop.f32.mrf.mxu0
  %v194 = vadd.f32 0.0, %v193
  %v195 = vpop.f32.mrf.mxu0
  %196 = vmatprep.mubr.f32.mxu0 0.0
  %197 = vmatmul.mubr.f32.gmra.mxu0 %v75
  %v198 = vpop.f32.mrf.mxu0
  %v199 = vadd.f32 0.0, %v198
  %v200 = vpop.f32.mrf.mxu0
  %201 = vmatprep.mubr.f32.mxu0 0.0
  %202 = vmatmul.mubr.f32.gmra.mxu0 %v78
  %v203 = vpop.f32.mrf.mxu0
  %v204 = vadd.f32 0.0, %v203
  %v205 = vpop.f32.mrf.mxu0
  %206 = vmatprep.mubr.f32.mxu0 0.0
  %207 = vmatmul.mubr.f32.gmra.mxu0 %v81
  %v208 = vpop.f32.mrf.mxu0
  %v209 = vadd.f32 0.0, %v208
  %v210 = vpop.f32.mrf.mxu0
  %211 = vmatprep.mubr.f32.mxu0 0.0
  %212 = vmatmul.mubr.f32.gmra.mxu0 %v84
  %v213 = vpop.f32.mrf.mxu0
  %v214 = vadd.f32 0.0, %v213
  %v215 = vpop.f32.mrf.mxu0
  %216 = vmatprep.mubr.f32.mxu0 0.0
  %217 = vmatmul.mubr.f32.gmra.mxu0 %v87
  %v218 = vpop.f32.mrf.mxu0
  %v219 = vadd.f32 0.0, %v218
  %v220 = vpop.f32.mrf.mxu0
  %221 = vmatprep.mubr.f32.mxu0 0.0
  %222 = vmatmul.mubr.f32.gmra.mxu0 %v90
  %v223 = vpop.f32.mrf.mxu0
  %v224 = vadd.f32 0.0, %v223
  %v225 = vpop.f32.mrf.mxu0
  %226 = vmatprep.mubr.f32.mxu0 0.0
  %227 = vmatmul.mubr.f32.gmra.mxu0 %v93
  %v228 = vpop.f32.mrf.mxu0
  %v229 = vadd.f32 0.0, %v228
  %v230 = vpop.f32.mrf.mxu0
  %231 = vmatprep.mubr.f32.mxu0 0.0
  %232 = vmatmul.mubr.f32.gmra.mxu0 %v96
  %v233 = vpop.f32.mrf.mxu0
  %v234 = vadd.f32 0.0, %v233
  %v235 = vpop.f32.mrf.mxu0
  %236 = vmatprep.mubr.f32.mxu0 0.0
  %237 = vmatmul.mubr.f32.gmra.mxu0 %v99
  %v238 = vpop.f32.mrf.mxu0
  %v239 = vadd.f32 0.0, %v238
  %v240 = vpop.f32.mrf.mxu0
  %241 = vmatprep.mubr.f32.mxu0 0.0
  %242 = vmatmul.mubr.f32.gmra.mxu0 %v102
  %v243 = vpop.f32.mrf.mxu0
  %v244 = vadd.f32 0.0, %v243
  %v245 = vpop.f32.mrf.mxu0
  %246 = vmatprep.mubr.f32.mxu0 0.0
  %247 = vmatmul.mubr.f32.gmra.mxu0 %v105
  %v248 = vpop.f32.mrf.mxu0
  %v249 = vadd.f32 0.0, %v248
  %v250 = vpop.f32.mrf.mxu0
  %251 = vmatprep.mubr.f32.mxu0 0.0
  %252 = vmatmul.mubr.f32.gmra.mxu0 %v108
  %v253 = vpop.f32.mrf.mxu0
  %v254 = vadd.f32 0.0, %v253
  %v255 = vpop.f32.mrf.mxu0
  %256 = vmatprep.mubr.f32.mxu0 0.0
  %257 = vmatmul.mubr.f32.gmra.mxu0 %v111
  %v258 = vpop.f32.mrf.mxu0
  %v259 = vadd.f32 0.0, %v258
  %v260 = vpop.f32.mrf.mxu0
  %261 = vdwg.mxu0
  %v262 = vld [vmem:[%s10] sm:$0xff]
  %v263 = vld [vmem:[%s10 + $0x8] sm:$0xff]
  %v264 = vld [vmem:[%s10 + $0x10] sm:$0xff]
  %v265 = vld [vmem:[%s10 + $0x18] sm:$0xff]
  %v266 = vld [vmem:[%s10 + $0x20] sm:$0xff]
  %v267 = vld [vmem:[%s10 + $0x28] sm:$0xff]
  %v268 = vld [vmem:[%s10 + $0x30] sm:$0xff]
  %v269 = vld [vmem:[%s10 + $0x38] sm:$0xff]
  %v270 = vld [vmem:[%s10 + $0x40] sm:$0xff]
  %v271 = vld [vmem:[%s10 + $0x48] sm:$0xff]
  %v272 = vld [vmem:[%s10 + $0x50] sm:$0xff]
  %v273 = vld [vmem:[%s10 + $0x58] sm:$0xff]
  %v274 = vld [vmem:[%s10 + $0x60] sm:$0xff]
  %v275 = vld [vmem:[%s10 + $0x68] sm:$0xff]
  %v276 = vld [vmem:[%s10 + $0x70] sm:$0xff]
  %v277 = vld [vmem:[%s10 + $0x78] sm:$0xf]
  %v278 = vld [vmem:[%s4] sm:$0x1]
  %v279 = vld [vmem:[%s5] sm:$0x1]
  %281 = vset.pattern.permute.xlu0 0
  %282 = vperm.xlu0 %281, %v262
  %v283 = vpop.permute.xlu0 %282
  %286 = vset.pattern.permute.xlu0 0
  %287 = vperm.xlu0 %286, %v263
  %v288 = vpop.permute.xlu0 %287
  %291 = vset.pattern.permute.xlu0 0
  %292 = vperm.xlu0 %291, %v264
  %v293 = vpop.permute.xlu0 %292
  %296 = vset.pattern.permute.xlu0 0
  %297 = vperm.xlu0 %296, %v265
  %v298 = vpop.permute.xlu0 %297
  %301 = vset.pattern.permute.xlu0 0
  %302 = vperm.xlu0 %301, %v266
  %v303 = vpop.permute.xlu0 %302
  %306 = vset.pattern.permute.xlu0 0
  %307 = vperm.xlu0 %306, %v267
  %v308 = vpop.permute.xlu0 %307
  %311 = vset.pattern.permute.xlu0 0
  %312 = vperm.xlu0 %311, %v268
  %v313 = vpop.permute.xlu0 %312
  %316 = vset.pattern.permute.xlu0 0
  %317 = vperm.xlu0 %316, %v269
  %v318 = vpop.permute.xlu0 %317
  %321 = vset.pattern.permute.xlu0 0
  %322 = vperm.xlu0 %321, %v270
  %v323 = vpop.permute.xlu0 %322
  %326 = vset.pattern.permute.xlu0 0
  %327 = vperm.xlu0 %326, %v271
  %v328 = vpop.permute.xlu0 %327
  %331 = vset.pattern.permute.xlu0 0
  %332 = vperm.xlu0 %331, %v272
  %v333 = vpop.permute.xlu0 %332
  %336 = vset.pattern.permute.xlu0 0
  %337 = vperm.xlu0 %336, %v273
  %v338 = vpop.permute.xlu0 %337
  %341 = vset.pattern.permute.xlu0 0
  %342 = vperm.xlu0 %341, %v274
  %v343 = vpop.permute.xlu0 %342
  %346 = vset.pattern.permute.xlu0 0
  %347 = vperm.xlu0 %346, %v275
  %v348 = vpop.permute.xlu0 %347
  %351 = vset.pattern.permute.xlu0 0
  %352 = vperm.xlu0 %351, %v276
  %v353 = vpop.permute.xlu0 %352
  %356 = vset.pattern.permute.xlu0 0
  %357 = vperm.xlu0 %356, %v277
  %v358 = vpop.permute.xlu0 %357
  %v360 = vmul.f32 %v184, %v283
  %v361 = vmul.f32 %v189, %v288
  %v362 = vmul.f32 %v194, %v293
  %v363 = vmul.f32 %v199, %v298
  %v364 = vmul.f32 %v204, %v303
  %v365 = vmul.f32 %v209, %v308
  %v366 = vmul.f32 %v214, %v313
  %v367 = vmul.f32 %v219, %v318
  %v368 = vmul.f32 %v224, %v323
  %v369 = vmul.f32 %v229, %v328
  %v370 = vmul.f32 %v234, %v333
  %v371 = vmul.f32 %v239, %v338
  %v372 = vmul.f32 %v244, %v343
  %v373 = vmul.f32 %v249, %v348
  %v374 = vmul.f32 %v254, %v353
  %v375 = vmul.f32 %v259, %v358
  %vm376 = vcmask 523264
  %v377 = vsel %vm376, %v360, 0.0
  %v378 = vsel %vm376, %v361, 0.0
  %v379 = vadd.f32 %v377, %v378
  %v380 = vsel %vm376, %v362, 0.0
  %v381 = vadd.f32 %v379, %v380
  %v382 = vsel %vm376, %v363, 0.0
  %v383 = vadd.f32 %v381, %v382
  %v384 = vsel %vm376, %v364, 0.0
  %v385 = vadd.f32 %v383, %v384
  %v386 = vsel %vm376, %v365, 0.0
  %v387 = vadd.f32 %v385, %v386
  %v388 = vsel %vm376, %v366, 0.0
  %v389 = vadd.f32 %v387, %v388
  %v390 = vsel %vm376, %v367, 0.0
  %v391 = vadd.f32 %v389, %v390
  %v392 = vsel %vm376, %v368, 0.0
  %v393 = vadd.f32 %v391, %v392
  %v394 = vsel %vm376, %v369, 0.0
  %v395 = vadd.f32 %v393, %v394
  %v396 = vsel %vm376, %v370, 0.0
  %v397 = vadd.f32 %v395, %v396
  %v398 = vsel %vm376, %v371, 0.0
  %v399 = vadd.f32 %v397, %v398
  %v400 = vsel %vm376, %v372, 0.0
  %v401 = vadd.f32 %v399, %v400
  %v402 = vsel %vm376, %v373, 0.0
  %v403 = vadd.f32 %v401, %v402
  %v404 = vsel %vm376, %v374, 0.0
  %v405 = vadd.f32 %v403, %v404
  %vm406 = vcmask 519168
  %v407 = vsel %vm406, %v375, 0.0
  %v408 = vadd.f32 %v405, %v407
  %v409 = vrot.slane %v408, 4
  %v410 = vadd.f32 %v408, %v409
  %v411 = vrot.slane %v410, 2
  %v412 = vadd.f32 %v410, %v411
  %v413 = vrot.slane %v412, 1
  %v414 = vadd.f32 %v412, %v413
  %v415 = vmul.f32 %v414, 0.010416667
  %v416 = vsub.f32 %v184, %v415
  %v417 = vsub.f32 %v189, %v415
  %v418 = vsub.f32 %v194, %v415
  %v419 = vsub.f32 %v199, %v415
  %v420 = vsub.f32 %v204, %v415
  %v421 = vsub.f32 %v209, %v415
  %v422 = vsub.f32 %v214, %v415
  %v423 = vsub.f32 %v219, %v415
  %v424 = vsub.f32 %v224, %v415
  %v425 = vsub.f32 %v229, %v415
  %v426 = vsub.f32 %v234, %v415
  %v427 = vsub.f32 %v239, %v415
  %v428 = vsub.f32 %v244, %v415
  %v429 = vsub.f32 %v249, %v415
  %v430 = vsub.f32 %v254, %v415
  %v431 = vsub.f32 %v259, %v415
  %v432 = vmul.f32 %v416, %v283
  %v433 = vmul.f32 %v417, %v288
  %v434 = vmul.f32 %v418, %v293
  %v435 = vmul.f32 %v419, %v298
  %v436 = vmul.f32 %v420, %v303
  %v437 = vmul.f32 %v421, %v308
  %v438 = vmul.f32 %v422, %v313
  %v439 = vmul.f32 %v423, %v318
  %v440 = vmul.f32 %v424, %v323
  %v441 = vmul.f32 %v425, %v328
  %v442 = vmul.f32 %v426, %v333
  %v443 = vmul.f32 %v427, %v338
  %v444 = vmul.f32 %v428, %v343
  %v445 = vmul.f32 %v429, %v348
  %v446 = vmul.f32 %v430, %v353
  %v447 = vmul.f32 %v431, %v358
  %v448 = vmul.f32 %v432, %v432
  %v449 = vmul.f32 %v433, %v433
  %v450 = vmul.f32 %v434, %v434
  %v451 = vmul.f32 %v435, %v435
  %v452 = vmul.f32 %v436, %v436
  %v453 = vmul.f32 %v437, %v437
  %v454 = vmul.f32 %v438, %v438
  %v455 = vmul.f32 %v439, %v439
  %v456 = vmul.f32 %v440, %v440
  %v457 = vmul.f32 %v441, %v441
  %v458 = vmul.f32 %v442, %v442
  %v459 = vmul.f32 %v443, %v443
  %v460 = vmul.f32 %v444, %v444
  %v461 = vmul.f32 %v445, %v445
  %v462 = vmul.f32 %v446, %v446
  %v463 = vmul.f32 %v447, %v447
  %v464 = vsel %vm376, %v448, 0.0
  %v465 = vsel %vm376, %v449, 0.0
  %v466 = vadd.f32 %v464, %v465
  %v467 = vsel %vm376, %v450, 0.0
  %v468 = vadd.f32 %v466, %v467
  %v469 = vsel %vm376, %v451, 0.0
  %v470 = vadd.f32 %v468, %v469
  %v471 = vsel %vm376, %v452, 0.0
  %v472 = vadd.f32 %v470, %v471
  %v473 = vsel %vm376, %v453, 0.0
  %v474 = vadd.f32 %v472, %v473
  %v475 = vsel %vm376, %v454, 0.0
  %v476 = vadd.f32 %v474, %v475
  %v477 = vsel %vm376, %v455, 0.0
  %v478 = vadd.f32 %v476, %v477
  %v479 = vsel %vm376, %v456, 0.0
  %v480 = vadd.f32 %v478, %v479
  %v481 = vsel %vm376, %v457, 0.0
  %v482 = vadd.f32 %v480, %v481
  %v483 = vsel %vm376, %v458, 0.0
  %v484 = vadd.f32 %v482, %v483
  %v485 = vsel %vm376, %v459, 0.0
  %v486 = vadd.f32 %v484, %v485
  %v487 = vsel %vm376, %v460, 0.0
  %v488 = vadd.f32 %v486, %v487
  %v489 = vsel %vm376, %v461, 0.0
  %v490 = vadd.f32 %v488, %v489
  %v491 = vsel %vm376, %v462, 0.0
  %v492 = vadd.f32 %v490, %v491
  %v493 = vsel %vm406, %v463, 0.0
  %v494 = vadd.f32 %v492, %v493
  %v495 = vrot.slane %v494, 4
  %v496 = vadd.f32 %v494, %v495
  %v497 = vrot.slane %v496, 2
  %v498 = vadd.f32 %v496, %v497
  %v499 = vrot.slane %v498, 1
  %v500 = vadd.f32 %v498, %v499
  %v501 = vmul.f32 %v500, 0.010416667
  %v502 = vadd.f32 %v501, 0.001
  %v503 = vrsqrt.pop %v502
  %v504 = vmul.f32 %v278, %v503
  %v505 = vmul.f32 %v415, %v504
  %v506 = vsub.f32 %v279, %v505
  %v508 = vlaneseq
  %v509 = vshrl.u32 %v508, 7
  %v510 = vsub.s32 0, %v509
  %v511 = vrot.slane %v504, %v510
  %v513 = vmul.f32 %v184, %v511
  %v514 = vmul.f32 %v189, %v511
  %v515 = vmul.f32 %v194, %v511
  %v516 = vmul.f32 %v199, %v511
  %v517 = vmul.f32 %v204, %v511
  %v518 = vmul.f32 %v209, %v511
  %v519 = vmul.f32 %v214, %v511
  %v520 = vmul.f32 %v219, %v511
  %v521 = vmul.f32 %v224, %v511
  %v522 = vmul.f32 %v229, %v511
  %v523 = vmul.f32 %v234, %v511
  %v524 = vmul.f32 %v239, %v511
  %v525 = vmul.f32 %v244, %v511
  %v526 = vmul.f32 %v249, %v511
  %v527 = vmul.f32 %v254, %v511
  %v528 = vmul.f32 %v259, %v511
  %v530 = vlaneseq
  %v531 = vshrl.u32 %v530, 7
  %v532 = vsub.s32 0, %v531
  %v533 = vrot.slane %v506, %v532
  %v535 = vadd.f32 %v513, %v533
  %v536 = vadd.f32 %v514, %v533
  %v537 = vadd.f32 %v515, %v533
  %v538 = vadd.f32 %v516, %v533
  %v539 = vadd.f32 %v517, %v533
  %v540 = vadd.f32 %v518, %v533
  %v541 = vadd.f32 %v519, %v533
  %v542 = vadd.f32 %v520, %v533
  %v543 = vadd.f32 %v521, %v533
  %v544 = vadd.f32 %v522, %v533
  %v545 = vadd.f32 %v523, %v533
  %v546 = vadd.f32 %v524, %v533
  %v547 = vadd.f32 %v525, %v533
  %v548 = vadd.f32 %v526, %v533
  %v549 = vadd.f32 %v527, %v533
  %v550 = vadd.f32 %v528, %v533
  %v551 = vmax.f32 %v535, 0.0
  %v552 = vmax.f32 %v536, 0.0
  %v553 = vmax.f32 %v537, 0.0
  %v554 = vmax.f32 %v538, 0.0
  %v555 = vmax.f32 %v539, 0.0
  %v556 = vmax.f32 %v540, 0.0
  %v557 = vmax.f32 %v541, 0.0
  %v558 = vmax.f32 %v542, 0.0
  %v559 = vmax.f32 %v543, 0.0
  %v560 = vmax.f32 %v544, 0.0
  %v561 = vmax.f32 %v545, 0.0
  %v562 = vmax.f32 %v546, 0.0
  %v563 = vmax.f32 %v547, 0.0
  %v564 = vmax.f32 %v548, 0.0
  %v565 = vmax.f32 %v549, 0.0
  %v566 = vmax.f32 %v550, 0.0
  %v567 = vmul.f32 %v551, %v283
  %v568 = vmul.f32 %v552, %v288
  %v569 = vmul.f32 %v553, %v293
  %v570 = vmul.f32 %v554, %v298
  %v571 = vmul.f32 %v555, %v303
  %v572 = vmul.f32 %v556, %v308
  %v573 = vmul.f32 %v557, %v313
  %v574 = vmul.f32 %v558, %v318
  %v575 = vmul.f32 %v559, %v323
  %v576 = vmul.f32 %v560, %v328
  %v577 = vmul.f32 %v561, %v333
  %v578 = vmul.f32 %v562, %v338
  %v579 = vmul.f32 %v563, %v343
  %v580 = vmul.f32 %v564, %v348
  %v581 = vmul.f32 %v565, %v353
  %v582 = vmul.f32 %v566, %v358
  %583 = vst.msk [vmem:[#allocation2] sm:$0xff] %vm376, %v567
  %584 = vst.msk [vmem:[#allocation2 + $0x8] sm:$0xff] %vm376, %v568
  %585 = vst.msk [vmem:[#allocation2 + $0x10] sm:$0xff] %vm376, %v569
  %586 = vst.msk [vmem:[#allocation2 + $0x18] sm:$0xff] %vm376, %v570
  %587 = vst.msk [vmem:[#allocation2 + $0x20] sm:$0xff] %vm376, %v571
  %588 = vst.msk [vmem:[#allocation2 + $0x28] sm:$0xff] %vm376, %v572
  %589 = vst.msk [vmem:[#allocation2 + $0x30] sm:$0xff] %vm376, %v573
  %590 = vst.msk [vmem:[#allocation2 + $0x38] sm:$0xff] %vm376, %v574
  %591 = vst.msk [vmem:[#allocation2 + $0x40] sm:$0xff] %vm376, %v575
  %592 = vst.msk [vmem:[#allocation2 + $0x48] sm:$0xff] %vm376, %v576
  %593 = vst.msk [vmem:[#allocation2 + $0x50] sm:$0xff] %vm376, %v577
  %594 = vst.msk [vmem:[#allocation2 + $0x58] sm:$0xff] %vm376, %v578
  %595 = vst.msk [vmem:[#allocation2 + $0x60] sm:$0xff] %vm376, %v579
  %596 = vst.msk [vmem:[#allocation2 + $0x68] sm:$0xff] %vm376, %v580
  %597 = vst.msk [vmem:[#allocation2 + $0x70] sm:$0xff] %vm376, %v581
  %598 = vst.msk [vmem:[#allocation2 + $0x78] sm:$0xf] %vm406, %v582
  %v599 = vld [vmem:[#allocation2] sm:$0xff]
  %v600 = vld [vmem:[#allocation2 + $0x8] sm:$0xff]
  %v601 = vld [vmem:[#allocation2 + $0x10] sm:$0xff]
  %v602 = vld [vmem:[#allocation2 + $0x18] sm:$0xff]
  %v603 = vld [vmem:[#allocation2 + $0x20] sm:$0xff]
  %v604 = vld [vmem:[#allocation2 + $0x28] sm:$0xff]
  %v605 = vld [vmem:[#allocation2 + $0x30] sm:$0xff]
  %v606 = vld [vmem:[#allocation2 + $0x38] sm:$0xff]
  %v607 = vld [vmem:[#allocation2 + $0x40] sm:$0xff]
  %v608 = vld [vmem:[#allocation2 + $0x48] sm:$0xff]
  %v609 = vld [vmem:[#allocation2 + $0x50] sm:$0xff]
  %v610 = vld [vmem:[#allocation2 + $0x58] sm:$0xff]
  %v611 = vld [vmem:[#allocation2 + $0x60] sm:$0xff]
  %v612 = vld [vmem:[#allocation2 + $0x68] sm:$0xff]
  %v613 = vld [vmem:[#allocation2 + $0x70] sm:$0xff]
  %v614 = vld [vmem:[#allocation2 + $0x78] sm:$0x3]
  %v615 = vld [vmem:[%s2] sm:$0xff]
  %v616 = vld [vmem:[%s2 + $0x8] sm:$0xff]
  %v617 = vld [vmem:[%s2 + $0x10] sm:$0xff]
  %v618 = vld [vmem:[%s2 + $0x18] sm:$0xff]
  %v619 = vld [vmem:[%s2 + $0x20] sm:$0xff]
  %v620 = vld [vmem:[%s2 + $0x28] sm:$0xff]
  %v621 = vld [vmem:[%s2 + $0x30] sm:$0xff]
  %v622 = vld [vmem:[%s2 + $0x38] sm:$0xff]
  %v623 = vld [vmem:[#allocation2 + $0x1] sm:$0xff]
  %v624 = vld [vmem:[#allocation2 + $0x9] sm:$0xff]
  %v625 = vld [vmem:[#allocation2 + $0x11] sm:$0xff]
  %v626 = vld [vmem:[#allocation2 + $0x19] sm:$0xff]
  %v627 = vld [vmem:[#allocation2 + $0x21] sm:$0xff]
  %v628 = vld [vmem:[#allocation2 + $0x29] sm:$0xff]
  %v629 = vld [vmem:[#allocation2 + $0x31] sm:$0xff]
  %v630 = vld [vmem:[#allocation2 + $0x39] sm:$0xff]
  %v631 = vld [vmem:[#allocation2 + $0x41] sm:$0xff]
  %v632 = vld [vmem:[#allocation2 + $0x49] sm:$0xff]
  %v633 = vld [vmem:[#allocation2 + $0x51] sm:$0xff]
  %v634 = vld [vmem:[#allocation2 + $0x59] sm:$0xff]
  %v635 = vld [vmem:[#allocation2 + $0x61] sm:$0xff]
  %v636 = vld [vmem:[#allocation2 + $0x69] sm:$0xff]
  %v637 = vld [vmem:[#allocation2 + $0x71] sm:$0xff]
  %v638 = vld [vmem:[#allocation2 + $0x79] sm:$0x3]
  %s639 = scalar_lea.vmem %s2, 64
  %v640 = vld [vmem:[%s639] sm:$0xff]
  %v641 = vld [vmem:[%s639 + $0x8] sm:$0xff]
  %v642 = vld [vmem:[%s639 + $0x10] sm:$0xff]
  %v643 = vld [vmem:[%s639 + $0x18] sm:$0xff]
  %v644 = vld [vmem:[%s639 + $0x20] sm:$0xff]
  %v645 = vld [vmem:[%s639 + $0x28] sm:$0xff]
  %v646 = vld [vmem:[%s639 + $0x30] sm:$0xff]
  %v647 = vld [vmem:[%s639 + $0x38] sm:$0xff]
  %v649 = vsel %vm376, %v623, 0
  %v652 = vsel %vm376, %v624, 0
  %v655 = vsel %vm376, %v625, 0
  %v658 = vsel %vm376, %v626, 0
  %v661 = vsel %vm376, %v627, 0
  %v664 = vsel %vm376, %v628, 0
  %v667 = vsel %vm376, %v629, 0
  %v670 = vsel %vm376, %v630, 0
  %v673 = vsel %vm376, %v631, 0
  %v676 = vsel %vm376, %v632, 0
  %v679 = vsel %vm376, %v633, 0
  %v682 = vsel %vm376, %v634, 0
  %v685 = vsel %vm376, %v635, 0
  %v688 = vsel %vm376, %v636, 0
  %v691 = vsel %vm376, %v637, 0
  %v694 = vsel %vm376, %v638, 0
  %696 = vmatprep.subr.mxu0 0.0
  %697 = vmatpush1.msra.mxu0 0.0
  %698 = vmatprep.subr.mxu0 0.0
  %699 = vmatpush1.msra.mxu0 0.0
  %700 = vmatprep.subr.mxu0 0.0
  %701 = vmatpush1.msra.mxu0 0.0
  %702 = vmatprep.subr.mxu0 0.0
  %703 = vmatpush1.msra.mxu0 0.0
  %704 = vmatprep.subr.mxu0 0.0
  %705 = vmatpush1.msra.mxu0 0.0
  %706 = vmatprep.subr.mxu0 0.0
  %707 = vmatpush1.msra.mxu0 0.0
  %708 = vmatprep.subr.mxu0 0.0
  %709 = vmatpush1.msra.mxu0 0.0
  %710 = vmatprep.subr.mxu0 0.0
  %711 = vmatpush1.msra.mxu0 0.0
  %712 = vmatprep.subr.mxu0 0.0
  %713 = vmatpush1.msra.mxu0 %v647
  %714 = vmatprep.subr.mxu0 0.0
  %715 = vmatpush1.msra.mxu0 %v646
  %716 = vmatprep.subr.mxu0 0.0
  %717 = vmatpush1.msra.mxu0 %v645
  %718 = vmatprep.subr.mxu0 0.0
  %719 = vmatpush1.msra.mxu0 %v644
  %720 = vmatprep.subr.mxu0 0.0
  %721 = vmatpush1.msra.mxu0 %v643
  %722 = vmatprep.subr.mxu0 0.0
  %723 = vmatpush1.msra.mxu0 %v642
  %724 = vmatprep.subr.mxu0 0.0
  %725 = vmatpush1.msra.mxu0 %v641
  %726 = vmatprep.subr.mxu0 0.0
  %727 = vmatpush1.msra.mxu0 %v640
  %728 = vmatprep.subr.mxu0 0.0
  %729 = vmatpush2.msra.mxu0 0.0
  %730 = vmatprep.subr.mxu0 0.0
  %731 = vmatpush2.msra.mxu0 0.0
  %732 = vmatprep.subr.mxu0 0.0
  %733 = vmatpush2.msra.mxu0 0.0
  %734 = vmatprep.subr.mxu0 0.0
  %735 = vmatpush2.msra.mxu0 0.0
  %736 = vmatprep.subr.mxu0 0.0
  %737 = vmatpush2.msra.mxu0 0.0
  %738 = vmatprep.subr.mxu0 0.0
  %739 = vmatpush2.msra.mxu0 0.0
  %740 = vmatprep.subr.mxu0 0.0
  %741 = vmatpush2.msra.mxu0 0.0
  %742 = vmatprep.subr.mxu0 0.0
  %743 = vmatpush2.msra.mxu0 0.0
  %744 = vmatprep.subr.mxu0 0.0
  %745 = vmatpush2.msra.mxu0 0.0
  %746 = vmatprep.subr.mxu0 0.0
  %747 = vmatpush2.msra.mxu0 0.0
  %748 = vmatprep.subr.mxu0 0.0
  %749 = vmatpush2.msra.mxu0 0.0
  %750 = vmatprep.subr.mxu0 0.0
  %751 = vmatpush2.msra.mxu0 0.0
  %752 = vmatprep.subr.mxu0 0.0
  %753 = vmatpush2.msra.mxu0 0.0
  %754 = vmatprep.subr.mxu0 0.0
  %755 = vmatpush2.msra.mxu0 0.0
  %756 = vmatprep.subr.mxu0 0.0
  %757 = vmatpush2.msra.mxu0 0.0
  %758 = vmatprep.subr.mxu0 0.0
  %759 = vmatpush2.msra.mxu0 0.0
  %760 = vmatprep.mubr.f32.mxu0 0.0
  %761 = vmatmul.mubr.f32.gmra.mxu0 %v649
  %v762 = vpop.f32.mrf.mxu0
  %v763 = vadd.f32 0.0, %v762
  %v764 = vpop.f32.mrf.mxu0
  %765 = vmatprep.mubr.f32.mxu0 0.0
  %766 = vmatmul.mubr.f32.gmra.mxu0 %v652
  %v767 = vpop.f32.mrf.mxu0
  %v768 = vadd.f32 0.0, %v767
  %v769 = vpop.f32.mrf.mxu0
  %770 = vmatprep.mubr.f32.mxu0 0.0
  %771 = vmatmul.mubr.f32.gmra.mxu0 %v655
  %v772 = vpop.f32.mrf.mxu0
  %v773 = vadd.f32 0.0, %v772
  %v774 = vpop.f32.mrf.mxu0
  %775 = vmatprep.mubr.f32.mxu0 0.0
  %776 = vmatmul.mubr.f32.gmra.mxu0 %v658
  %v777 = vpop.f32.mrf.mxu0
  %v778 = vadd.f32 0.0, %v777
  %v779 = vpop.f32.mrf.mxu0
  %780 = vmatprep.mubr.f32.mxu0 0.0
  %781 = vmatmul.mubr.f32.gmra.mxu0 %v661
  %v782 = vpop.f32.mrf.mxu0
  %v783 = vadd.f32 0.0, %v782
  %v784 = vpop.f32.mrf.mxu0
  %785 = vmatprep.mubr.f32.mxu0 0.0
  %786 = vmatmul.mubr.f32.gmra.mxu0 %v664
  %v787 = vpop.f32.mrf.mxu0
  %v788 = vadd.f32 0.0, %v787
  %v789 = vpop.f32.mrf.mxu0
  %790 = vmatprep.mubr.f32.mxu0 0.0
  %791 = vmatmul.mubr.f32.gmra.mxu0 %v667
  %v792 = vpop.f32.mrf.mxu0
  %v793 = vadd.f32 0.0, %v792
  %v794 = vpop.f32.mrf.mxu0
  %795 = vmatprep.mubr.f32.mxu0 0.0
  %796 = vmatmul.mubr.f32.gmra.mxu0 %v670
  %v797 = vpop.f32.mrf.mxu0
  %v798 = vadd.f32 0.0, %v797
  %v799 = vpop.f32.mrf.mxu0
  %800 = vmatprep.mubr.f32.mxu0 0.0
  %801 = vmatmul.mubr.f32.gmra.mxu0 %v673
  %v802 = vpop.f32.mrf.mxu0
  %v803 = vadd.f32 0.0, %v802
  %v804 = vpop.f32.mrf.mxu0
  %805 = vmatprep.mubr.f32.mxu0 0.0
  %806 = vmatmul.mubr.f32.gmra.mxu0 %v676
  %v807 = vpop.f32.mrf.mxu0
  %v808 = vadd.f32 0.0, %v807
  %v809 = vpop.f32.mrf.mxu0
  %810 = vmatprep.mubr.f32.mxu0 0.0
  %811 = vmatmul.mubr.f32.gmra.mxu0 %v679
  %v812 = vpop.f32.mrf.mxu0
  %v813 = vadd.f32 0.0, %v812
  %v814 = vpop.f32.mrf.mxu0
  %815 = vmatprep.mubr.f32.mxu0 0.0
  %816 = vmatmul.mubr.f32.gmra.mxu0 %v682
  %v817 = vpop.f32.mrf.mxu0
  %v818 = vadd.f32 0.0, %v817
  %v819 = vpop.f32.mrf.mxu0
  %820 = vmatprep.mubr.f32.mxu0 0.0
  %821 = vmatmul.mubr.f32.gmra.mxu0 %v685
  %v822 = vpop.f32.mrf.mxu0
  %v823 = vadd.f32 0.0, %v822
  %v824 = vpop.f32.mrf.mxu0
  %825 = vmatprep.mubr.f32.mxu0 0.0
  %826 = vmatmul.mubr.f32.gmra.mxu0 %v688
  %v827 = vpop.f32.mrf.mxu0
  %v828 = vadd.f32 0.0, %v827
  %v829 = vpop.f32.mrf.mxu0
  %830 = vmatprep.mubr.f32.mxu0 0.0
  %831 = vmatmul.mubr.f32.gmra.mxu0 %v691
  %v832 = vpop.f32.mrf.mxu0
  %v833 = vadd.f32 0.0, %v832
  %v834 = vpop.f32.mrf.mxu0
  %835 = vmatprep.mubr.f32.mxu0 0.0
  %836 = vmatmul.mubr.f32.gmra.mxu0 %v694
  %v837 = vpop.f32.mrf.mxu0
  %v838 = vadd.f32 0.0, %v837
  %v839 = vpop.f32.mrf.mxu0
  %840 = vdwg.mxu0
  %v842 = vsel %vm376, %v599, 0
  %v845 = vsel %vm376, %v600, 0
  %v848 = vsel %vm376, %v601, 0
  %v851 = vsel %vm376, %v602, 0
  %v854 = vsel %vm376, %v603, 0
  %v857 = vsel %vm376, %v604, 0
  %v860 = vsel %vm376, %v605, 0
  %v863 = vsel %vm376, %v606, 0
  %v866 = vsel %vm376, %v607, 0
  %v869 = vsel %vm376, %v608, 0
  %v872 = vsel %vm376, %v609, 0
  %v875 = vsel %vm376, %v610, 0
  %v878 = vsel %vm376, %v611, 0
  %v881 = vsel %vm376, %v612, 0
  %v884 = vsel %vm376, %v613, 0
  %v887 = vsel %vm376, %v614, 0
  %889 = vmatprep.subr.mxu0 0.0
  %890 = vmatpush1.msra.mxu0 0.0
  %891 = vmatprep.subr.mxu0 0.0
  %892 = vmatpush1.msra.mxu0 0.0
  %893 = vmatprep.subr.mxu0 0.0
  %894 = vmatpush1.msra.mxu0 0.0
  %895 = vmatprep.subr.mxu0 0.0
  %896 = vmatpush1.msra.mxu0 0.0
  %897 = vmatprep.subr.mxu0 0.0
  %898 = vmatpush1.msra.mxu0 0.0
  %899 = vmatprep.subr.mxu0 0.0
  %900 = vmatpush1.msra.mxu0 0.0
  %901 = vmatprep.subr.mxu0 0.0
  %902 = vmatpush1.msra.mxu0 0.0
  %903 = vmatprep.subr.mxu0 0.0
  %904 = vmatpush1.msra.mxu0 0.0
  %905 = vmatprep.subr.mxu0 0.0
  %906 = vmatpush1.msra.mxu0 %v622
  %907 = vmatprep.subr.mxu0 0.0
  %908 = vmatpush1.msra.mxu0 %v621
  %909 = vmatprep.subr.mxu0 0.0
  %910 = vmatpush1.msra.mxu0 %v620
  %911 = vmatprep.subr.mxu0 0.0
  %912 = vmatpush1.msra.mxu0 %v619
  %913 = vmatprep.subr.mxu0 0.0
  %914 = vmatpush1.msra.mxu0 %v618
  %915 = vmatprep.subr.mxu0 0.0
  %916 = vmatpush1.msra.mxu0 %v617
  %917 = vmatprep.subr.mxu0 0.0
  %918 = vmatpush1.msra.mxu0 %v616
  %919 = vmatprep.subr.mxu0 0.0
  %920 = vmatpush1.msra.mxu0 %v615
  %921 = vmatprep.subr.mxu0 0.0
  %922 = vmatpush2.msra.mxu0 0.0
  %923 = vmatprep.subr.mxu0 0.0
  %924 = vmatpush2.msra.mxu0 0.0
  %925 = vmatprep.subr.mxu0 0.0
  %926 = vmatpush2.msra.mxu0 0.0
  %927 = vmatprep.subr.mxu0 0.0
  %928 = vmatpush2.msra.mxu0 0.0
  %929 = vmatprep.subr.mxu0 0.0
  %930 = vmatpush2.msra.mxu0 0.0
  %931 = vmatprep.subr.mxu0 0.0
  %932 = vmatpush2.msra.mxu0 0.0
  %933 = vmatprep.subr.mxu0 0.0
  %934 = vmatpush2.msra.mxu0 0.0
  %935 = vmatprep.subr.mxu0 0.0
  %936 = vmatpush2.msra.mxu0 0.0
  %937 = vmatprep.subr.mxu0 0.0
  %938 = vmatpush2.msra.mxu0 0.0
  %939 = vmatprep.subr.mxu0 0.0
  %940 = vmatpush2.msra.mxu0 0.0
  %941 = vmatprep.subr.mxu0 0.0
  %942 = vmatpush2.msra.mxu0 0.0
  %943 = vmatprep.subr.mxu0 0.0
  %944 = vmatpush2.msra.mxu0 0.0
  %945 = vmatprep.subr.mxu0 0.0
  %946 = vmatpush2.msra.mxu0 0.0
  %947 = vmatprep.subr.mxu0 0.0
  %948 = vmatpush2.msra.mxu0 0.0
  %949 = vmatprep.subr.mxu0 0.0
  %950 = vmatpush2.msra.mxu0 0.0
  %951 = vmatprep.subr.mxu0 0.0
  %952 = vmatpush2.msra.mxu0 0.0
  %953 = vmatprep.mubr.f32.mxu0 0.0
  %954 = vmatmul.mubr.f32.gmra.mxu0 %v842
  %v955 = vpop.f32.mrf.mxu0
  %v956 = vadd.f32 %v763, %v955
  %v957 = vpop.f32.mrf.mxu0
  %958 = vmatprep.mubr.f32.mxu0 0.0
  %959 = vmatmul.mubr.f32.gmra.mxu0 %v845
  %v960 = vpop.f32.mrf.mxu0
  %v961 = vadd.f32 %v768, %v960
  %v962 = vpop.f32.mrf.mxu0
  %963 = vmatprep.mubr.f32.mxu0 0.0
  %964 = vmatmul.mubr.f32.gmra.mxu0 %v848
  %v965 = vpop.f32.mrf.mxu0
  %v966 = vadd.f32 %v773, %v965
  %v967 = vpop.f32.mrf.mxu0
  %968 = vmatprep.mubr.f32.mxu0 0.0
  %969 = vmatmul.mubr.f32.gmra.mxu0 %v851
  %v970 = vpop.f32.mrf.mxu0
  %v971 = vadd.f32 %v778, %v970
  %v972 = vpop.f32.mrf.mxu0
  %973 = vmatprep.mubr.f32.mxu0 0.0
  %974 = vmatmul.mubr.f32.gmra.mxu0 %v854
  %v975 = vpop.f32.mrf.mxu0
  %v976 = vadd.f32 %v783, %v975
  %v977 = vpop.f32.mrf.mxu0
  %978 = vmatprep.mubr.f32.mxu0 0.0
  %979 = vmatmul.mubr.f32.gmra.mxu0 %v857
  %v980 = vpop.f32.mrf.mxu0
  %v981 = vadd.f32 %v788, %v980
  %v982 = vpop.f32.mrf.mxu0
  %983 = vmatprep.mubr.f32.mxu0 0.0
  %984 = vmatmul.mubr.f32.gmra.mxu0 %v860
  %v985 = vpop.f32.mrf.mxu0
  %v986 = vadd.f32 %v793, %v985
  %v987 = vpop.f32.mrf.mxu0
  %988 = vmatprep.mubr.f32.mxu0 0.0
  %989 = vmatmul.mubr.f32.gmra.mxu0 %v863
  %v990 = vpop.f32.mrf.mxu0
  %v991 = vadd.f32 %v798, %v990
  %v992 = vpop.f32.mrf.mxu0
  %993 = vmatprep.mubr.f32.mxu0 0.0
  %994 = vmatmul.mubr.f32.gmra.mxu0 %v866
  %v995 = vpop.f32.mrf.mxu0
  %v996 = vadd.f32 %v803, %v995
  %v997 = vpop.f32.mrf.mxu0
  %998 = vmatprep.mubr.f32.mxu0 0.0
  %999 = vmatmul.mubr.f32.gmra.mxu0 %v869
  %v1000 = vpop.f32.mrf.mxu0
  %v1001 = vadd.f32 %v808, %v1000
  %v1002 = vpop.f32.mrf.mxu0
  %1003 = vmatprep.mubr.f32.mxu0 0.0
  %1004 = vmatmul.mubr.f32.gmra.mxu0 %v872
  %v1005 = vpop.f32.mrf.mxu0
  %v1006 = vadd.f32 %v813, %v1005
  %v1007 = vpop.f32.mrf.mxu0
  %1008 = vmatprep.mubr.f32.mxu0 0.0
  %1009 = vmatmul.mubr.f32.gmra.mxu0 %v875
  %v1010 = vpop.f32.mrf.mxu0
  %v1011 = vadd.f32 %v818, %v1010
  %v1012 = vpop.f32.mrf.mxu0
  %1013 = vmatprep.mubr.f32.mxu0 0.0
  %1014 = vmatmul.mubr.f32.gmra.mxu0 %v878
  %v1015 = vpop.f32.mrf.mxu0
  %v1016 = vadd.f32 %v823, %v1015
  %v1017 = vpop.f32.mrf.mxu0
  %1018 = vmatprep.mubr.f32.mxu0 0.0
  %1019 = vmatmul.mubr.f32.gmra.mxu0 %v881
  %v1020 = vpop.f32.mrf.mxu0
  %v1021 = vadd.f32 %v828, %v1020
  %v1022 = vpop.f32.mrf.mxu0
  %1023 = vmatprep.mubr.f32.mxu0 0.0
  %1024 = vmatmul.mubr.f32.gmra.mxu0 %v884
  %v1025 = vpop.f32.mrf.mxu0
  %v1026 = vadd.f32 %v833, %v1025
  %v1027 = vpop.f32.mrf.mxu0
  %1028 = vmatprep.mubr.f32.mxu0 0.0
  %1029 = vmatmul.mubr.f32.gmra.mxu0 %v887
  %v1030 = vpop.f32.mrf.mxu0
  %v1031 = vadd.f32 %v838, %v1030
  %v1032 = vpop.f32.mrf.mxu0
  %1033 = vdwg.mxu0
  %v1034 = vld [vmem:[#allocation2 + $0x2] sm:$0xff]
  %v1035 = vld [vmem:[#allocation2 + $0xa] sm:$0xff]
  %v1036 = vld [vmem:[#allocation2 + $0x12] sm:$0xff]
  %v1037 = vld [vmem:[#allocation2 + $0x1a] sm:$0xff]
  %v1038 = vld [vmem:[#allocation2 + $0x22] sm:$0xff]
  %v1039 = vld [vmem:[#allocation2 + $0x2a] sm:$0xff]
  %v1040 = vld [vmem:[#allocation2 + $0x32] sm:$0xff]
  %v1041 = vld [vmem:[#allocation2 + $0x3a] sm:$0xff]
  %v1042 = vld [vmem:[#allocation2 + $0x42] sm:$0xff]
  %v1043 = vld [vmem:[#allocation2 + $0x4a] sm:$0xff]
  %v1044 = vld [vmem:[#allocation2 + $0x52] sm:$0xff]
  %v1045 = vld [vmem:[#allocation2 + $0x5a] sm:$0xff]
  %v1046 = vld [vmem:[#allocation2 + $0x62] sm:$0xff]
  %v1047 = vld [vmem:[#allocation2 + $0x6a] sm:$0xff]
  %v1048 = vld [vmem:[#allocation2 + $0x72] sm:$0xff]
  %v1049 = vld [vmem:[#allocation2 + $0x7a] sm:$0x3]
  %s1050 = scalar_lea.vmem %s2, 128
  %v1051 = vld [vmem:[%s1050] sm:$0xff]
  %v1052 = vld [vmem:[%s1050 + $0x8] sm:$0xff]
  %v1053 = vld [vmem:[%s1050 + $0x10] sm:$0xff]
  %v1054 = vld [vmem:[%s1050 + $0x18] sm:$0xff]
  %v1055 = vld [vmem:[%s1050 + $0x20] sm:$0xff]
  %v1056 = vld [vmem:[%s1050 + $0x28] sm:$0xff]
  %v1057 = vld [vmem:[%s1050 + $0x30] sm:$0xff]
  %v1058 = vld [vmem:[%s1050 + $0x38] sm:$0xff]
  %v1060 = vsel %vm376, %v1034, 0
  %v1063 = vsel %vm376, %v1035, 0
  %v1066 = vsel %vm376, %v1036, 0
  %v1069 = vsel %vm376, %v1037, 0
  %v1072 = vsel %vm376, %v1038, 0
  %v1075 = vsel %vm376, %v1039, 0
  %v1078 = vsel %vm376, %v1040, 0
  %v1081 = vsel %vm376, %v1041, 0
  %v1084 = vsel %vm376, %v1042, 0
  %v1087 = vsel %vm376, %v1043, 0
  %v1090 = vsel %vm376, %v1044, 0
  %v1093 = vsel %vm376, %v1045, 0
  %v1096 = vsel %vm376, %v1046, 0
  %v1099 = vsel %vm376, %v1047, 0
  %v1102 = vsel %vm376, %v1048, 0
  %v1105 = vsel %vm376, %v1049, 0
  %1107 = vmatprep.subr.mxu0 0.0
  %1108 = vmatpush1.msra.mxu0 0.0
  %1109 = vmatprep.subr.mxu0 0.0
  %1110 = vmatpush1.msra.mxu0 0.0
  %1111 = vmatprep.subr.mxu0 0.0
  %1112 = vmatpush1.msra.mxu0 0.0
  %1113 = vmatprep.subr.mxu0 0.0
  %1114 = vmatpush1.msra.mxu0 0.0
  %1115 = vmatprep.subr.mxu0 0.0
  %1116 = vmatpush1.msra.mxu0 0.0
  %1117 = vmatprep.subr.mxu0 0.0
  %1118 = vmatpush1.msra.mxu0 0.0
  %1119 = vmatprep.subr.mxu0 0.0
  %1120 = vmatpush1.msra.mxu0 0.0
  %1121 = vmatprep.subr.mxu0 0.0
  %1122 = vmatpush1.msra.mxu0 0.0
  %1123 = vmatprep.subr.mxu0 0.0
  %1124 = vmatpush1.msra.mxu0 %v1058
  %1125 = vmatprep.subr.mxu0 0.0
  %1126 = vmatpush1.msra.mxu0 %v1057
  %1127 = vmatprep.subr.mxu0 0.0
  %1128 = vmatpush1.msra.mxu0 %v1056
  %1129 = vmatprep.subr.mxu0 0.0
  %1130 = vmatpush1.msra.mxu0 %v1055
  %1131 = vmatprep.subr.mxu0 0.0
  %1132 = vmatpush1.msra.mxu0 %v1054
  %1133 = vmatprep.subr.mxu0 0.0
  %1134 = vmatpush1.msra.mxu0 %v1053
  %1135 = vmatprep.subr.mxu0 0.0
  %1136 = vmatpush1.msra.mxu0 %v1052
  %1137 = vmatprep.subr.mxu0 0.0
  %1138 = vmatpush1.msra.mxu0 %v1051
  %1139 = vmatprep.subr.mxu0 0.0
  %1140 = vmatpush2.msra.mxu0 0.0
  %1141 = vmatprep.subr.mxu0 0.0
  %1142 = vmatpush2.msra.mxu0 0.0
  %1143 = vmatprep.subr.mxu0 0.0
  %1144 = vmatpush2.msra.mxu0 0.0
  %1145 = vmatprep.subr.mxu0 0.0
  %1146 = vmatpush2.msra.mxu0 0.0
  %1147 = vmatprep.subr.mxu0 0.0
  %1148 = vmatpush2.msra.mxu0 0.0
  %1149 = vmatprep.subr.mxu0 0.0
  %1150 = vmatpush2.msra.mxu0 0.0
  %1151 = vmatprep.subr.mxu0 0.0
  %1152 = vmatpush2.msra.mxu0 0.0
  %1153 = vmatprep.subr.mxu0 0.0
  %1154 = vmatpush2.msra.mxu0 0.0
  %1155 = vmatprep.subr.mxu0 0.0
  %1156 = vmatpush2.msra.mxu0 0.0
  %1157 = vmatprep.subr.mxu0 0.0
  %1158 = vmatpush2.msra.mxu0 0.0
  %1159 = vmatprep.subr.mxu0 0.0
  %1160 = vmatpush2.msra.mxu0 0.0
  %1161 = vmatprep.subr.mxu0 0.0
  %1162 = vmatpush2.msra.mxu0 0.0
  %1163 = vmatprep.subr.mxu0 0.0
  %1164 = vmatpush2.msra.mxu0 0.0
  %1165 = vmatprep.subr.mxu0 0.0
  %1166 = vmatpush2.msra.mxu0 0.0
  %1167 = vmatprep.subr.mxu0 0.0
  %1168 = vmatpush2.msra.mxu0 0.0
  %1169 = vmatprep.subr.mxu0 0.0
  %1170 = vmatpush2.msra.mxu0 0.0
  %1171 = vmatprep.mubr.f32.mxu0 0.0
  %1172 = vmatmul.mubr.f32.gmra.mxu0 %v1060
  %v1173 = vpop.f32.mrf.mxu0
  %v1174 = vadd.f32 0.0, %v1173
  %v1175 = vpop.f32.mrf.mxu0
  %1176 = vmatprep.mubr.f32.mxu0 0.0
  %1177 = vmatmul.mubr.f32.gmra.mxu0 %v1063
  %v1178 = vpop.f32.mrf.mxu0
  %v1179 = vadd.f32 0.0, %v1178
  %v1180 = vpop.f32.mrf.mxu0
  %1181 = vmatprep.mubr.f32.mxu0 0.0
  %1182 = vmatmul.mubr.f32.gmra.mxu0 %v1066
  %v1183 = vpop.f32.mrf.mxu0
  %v1184 = vadd.f32 0.0, %v1183
  %v1185 = vpop.f32.mrf.mxu0
  %1186 = vmatprep.mubr.f32.mxu0 0.0
  %1187 = vmatmul.mubr.f32.gmra.mxu0 %v1069
  %v1188 = vpop.f32.mrf.mxu0
  %v1189 = vadd.f32 0.0, %v1188
  %v1190 = vpop.f32.mrf.mxu0
  %1191 = vmatprep.mubr.f32.mxu0 0.0
  %1192 = vmatmul.mubr.f32.gmra.mxu0 %v1072
  %v1193 = vpop.f32.mrf.mxu0
  %v1194 = vadd.f32 0.0, %v1193
  %v1195 = vpop.f32.mrf.mxu0
  %1196 = vmatprep.mubr.f32.mxu0 0.0
  %1197 = vmatmul.mubr.f32.gmra.mxu0 %v1075
  %v1198 = vpop.f32.mrf.mxu0
  %v1199 = vadd.f32 0.0, %v1198
  %v1200 = vpop.f32.mrf.mxu0
  %1201 = vmatprep.mubr.f32.mxu0 0.0
  %1202 = vmatmul.mubr.f32.gmra.mxu0 %v1078
  %v1203 = vpop.f32.mrf.mxu0
  %v1204 = vadd.f32 0.0, %v1203
  %v1205 = vpop.f32.mrf.mxu0
  %1206 = vmatprep.mubr.f32.mxu0 0.0
  %1207 = vmatmul.mubr.f32.gmra.mxu0 %v1081
  %v1208 = vpop.f32.mrf.mxu0
  %v1209 = vadd.f32 0.0, %v1208
  %v1210 = vpop.f32.mrf.mxu0
  %1211 = vmatprep.mubr.f32.mxu0 0.0
  %1212 = vmatmul.mubr.f32.gmra.mxu0 %v1084
  %v1213 = vpop.f32.mrf.mxu0
  %v1214 = vadd.f32 0.0, %v1213
  %v1215 = vpop.f32.mrf.mxu0
  %1216 = vmatprep.mubr.f32.mxu0 0.0
  %1217 = vmatmul.mubr.f32.gmra.mxu0 %v1087
  %v1218 = vpop.f32.mrf.mxu0
  %v1219 = vadd.f32 0.0, %v1218
  %v1220 = vpop.f32.mrf.mxu0
  %1221 = vmatprep.mubr.f32.mxu0 0.0
  %1222 = vmatmul.mubr.f32.gmra.mxu0 %v1090
  %v1223 = vpop.f32.mrf.mxu0
  %v1224 = vadd.f32 0.0, %v1223
  %v1225 = vpop.f32.mrf.mxu0
  %1226 = vmatprep.mubr.f32.mxu0 0.0
  %1227 = vmatmul.mubr.f32.gmra.mxu0 %v1093
  %v1228 = vpop.f32.mrf.mxu0
  %v1229 = vadd.f32 0.0, %v1228
  %v1230 = vpop.f32.mrf.mxu0
  %1231 = vmatprep.mubr.f32.mxu0 0.0
  %1232 = vmatmul.mubr.f32.gmra.mxu0 %v1096
  %v1233 = vpop.f32.mrf.mxu0
  %v1234 = vadd.f32 0.0, %v1233
  %v1235 = vpop.f32.mrf.mxu0
  %1236 = vmatprep.mubr.f32.mxu0 0.0
  %1237 = vmatmul.mubr.f32.gmra.mxu0 %v1099
  %v1238 = vpop.f32.mrf.mxu0
  %v1239 = vadd.f32 0.0, %v1238
  %v1240 = vpop.f32.mrf.mxu0
  %1241 = vmatprep.mubr.f32.mxu0 0.0
  %1242 = vmatmul.mubr.f32.gmra.mxu0 %v1102
  %v1243 = vpop.f32.mrf.mxu0
  %v1244 = vadd.f32 0.0, %v1243
  %v1245 = vpop.f32.mrf.mxu0
  %1246 = vmatprep.mubr.f32.mxu0 0.0
  %1247 = vmatmul.mubr.f32.gmra.mxu0 %v1105
  %v1248 = vpop.f32.mrf.mxu0
  %v1249 = vadd.f32 0.0, %v1248
  %v1250 = vpop.f32.mrf.mxu0
  %1251 = vdwg.mxu0
  %v1252 = vadd.f32 %v956, %v1174
  %v1253 = vadd.f32 %v961, %v1179
  %v1254 = vadd.f32 %v966, %v1184
  %v1255 = vadd.f32 %v971, %v1189
  %v1256 = vadd.f32 %v976, %v1194
  %v1257 = vadd.f32 %v981, %v1199
  %v1258 = vadd.f32 %v986, %v1204
  %v1259 = vadd.f32 %v991, %v1209
  %v1260 = vadd.f32 %v996, %v1214
  %v1261 = vadd.f32 %v1001, %v1219
  %v1262 = vadd.f32 %v1006, %v1224
  %v1263 = vadd.f32 %v1011, %v1229
  %v1264 = vadd.f32 %v1016, %v1234
  %v1265 = vadd.f32 %v1021, %v1239
  %v1266 = vadd.f32 %v1026, %v1244
  %v1267 = vadd.f32 %v1031, %v1249
  %v1268 = vld [vmem:[%s11] sm:$0xff]
  %v1269 = vld [vmem:[%s11 + $0x8] sm:$0xff]
  %v1270 = vld [vmem:[%s11 + $0x10] sm:$0xff]
  %v1271 = vld [vmem:[%s11 + $0x18] sm:$0xff]
  %v1272 = vld [vmem:[%s11 + $0x20] sm:$0xff]
  %v1273 = vld [vmem:[%s11 + $0x28] sm:$0xff]
  %v1274 = vld [vmem:[%s11 + $0x30] sm:$0xff]
  %v1275 = vld [vmem:[%s11 + $0x38] sm:$0xff]
  %v1276 = vld [vmem:[%s11 + $0x40] sm:$0xff]
  %v1277 = vld [vmem:[%s11 + $0x48] sm:$0xff]
  %v1278 = vld [vmem:[%s11 + $0x50] sm:$0xff]
  %v1279 = vld [vmem:[%s11 + $0x58] sm:$0xff]
  %v1280 = vld [vmem:[%s11 + $0x60] sm:$0xff]
  %v1281 = vld [vmem:[%s11 + $0x68] sm:$0xff]
  %v1282 = vld [vmem:[%s11 + $0x70] sm:$0xff]
  %v1283 = vld [vmem:[%s11 + $0x78] sm:$0x3]
  %v1284 = vld [vmem:[%s6] sm:$0x1]
  %v1285 = vld [vmem:[%s7] sm:$0x1]
  %1287 = vset.pattern.permute.xlu0 0
  %1288 = vperm.xlu0 %1287, %v1268
  %v1289 = vpop.permute.xlu0 %1288
  %1292 = vset.pattern.permute.xlu0 0
  %1293 = vperm.xlu0 %1292, %v1269
  %v1294 = vpop.permute.xlu0 %1293
  %1297 = vset.pattern.permute.xlu0 0
  %1298 = vperm.xlu0 %1297, %v1270
  %v1299 = vpop.permute.xlu0 %1298
  %1302 = vset.pattern.permute.xlu0 0
  %1303 = vperm.xlu0 %1302, %v1271
  %v1304 = vpop.permute.xlu0 %1303
  %1307 = vset.pattern.permute.xlu0 0
  %1308 = vperm.xlu0 %1307, %v1272
  %v1309 = vpop.permute.xlu0 %1308
  %1312 = vset.pattern.permute.xlu0 0
  %1313 = vperm.xlu0 %1312, %v1273
  %v1314 = vpop.permute.xlu0 %1313
  %1317 = vset.pattern.permute.xlu0 0
  %1318 = vperm.xlu0 %1317, %v1274
  %v1319 = vpop.permute.xlu0 %1318
  %1322 = vset.pattern.permute.xlu0 0
  %1323 = vperm.xlu0 %1322, %v1275
  %v1324 = vpop.permute.xlu0 %1323
  %1327 = vset.pattern.permute.xlu0 0
  %1328 = vperm.xlu0 %1327, %v1276
  %v1329 = vpop.permute.xlu0 %1328
  %1332 = vset.pattern.permute.xlu0 0
  %1333 = vperm.xlu0 %1332, %v1277
  %v1334 = vpop.permute.xlu0 %1333
  %1337 = vset.pattern.permute.xlu0 0
  %1338 = vperm.xlu0 %1337, %v1278
  %v1339 = vpop.permute.xlu0 %1338
  %1342 = vset.pattern.permute.xlu0 0
  %1343 = vperm.xlu0 %1342, %v1279
  %v1344 = vpop.permute.xlu0 %1343
  %1347 = vset.pattern.permute.xlu0 0
  %1348 = vperm.xlu0 %1347, %v1280
  %v1349 = vpop.permute.xlu0 %1348
  %1352 = vset.pattern.permute.xlu0 0
  %1353 = vperm.xlu0 %1352, %v1281
  %v1354 = vpop.permute.xlu0 %1353
  %1357 = vset.pattern.permute.xlu0 0
  %1358 = vperm.xlu0 %1357, %v1282
  %v1359 = vpop.permute.xlu0 %1358
  %1362 = vset.pattern.permute.xlu0 0
  %1363 = vperm.xlu0 %1362, %v1283
  %v1364 = vpop.permute.xlu0 %1363
  %v1366 = vmul.f32 %v1252, %v1289
  %v1367 = vmul.f32 %v1253, %v1294
  %v1368 = vmul.f32 %v1254, %v1299
  %v1369 = vmul.f32 %v1255, %v1304
  %v1370 = vmul.f32 %v1256, %v1309
  %v1371 = vmul.f32 %v1257, %v1314
  %v1372 = vmul.f32 %v1258, %v1319
  %v1373 = vmul.f32 %v1259, %v1324
  %v1374 = vmul.f32 %v1260, %v1329
  %v1375 = vmul.f32 %v1261, %v1334
  %v1376 = vmul.f32 %v1262, %v1339
  %v1377 = vmul.f32 %v1263, %v1344
  %v1378 = vmul.f32 %v1264, %v1349
  %v1379 = vmul.f32 %v1265, %v1354
  %v1380 = vmul.f32 %v1266, %v1359
  %v1381 = vmul.f32 %v1267, %v1364
  %v1382 = vadd.f32 %v1366, %v1367
  %v1383 = vadd.f32 %v1382, %v1368
  %v1384 = vadd.f32 %v1383, %v1369
  %v1385 = vadd.f32 %v1384, %v1370
  %v1386 = vadd.f32 %v1385, %v1371
  %v1387 = vadd.f32 %v1386, %v1372
  %v1388 = vadd.f32 %v1387, %v1373
  %v1389 = vadd.f32 %v1388, %v1374
  %v1390 = vadd.f32 %v1389, %v1375
  %v1391 = vadd.f32 %v1390, %v1376
  %v1392 = vadd.f32 %v1391, %v1377
  %v1393 = vadd.f32 %v1392, %v1378
  %v1394 = vadd.f32 %v1393, %v1379
  %v1395 = vadd.f32 %v1394, %v1380
  %vm1396 = vcmask 1041408
  %v1397 = vsel %vm1396, %v1381, 0.0
  %v1398 = vadd.f32 %v1395, %v1397
  %v1399 = vrot.slane %v1398, 4
  %v1400 = vadd.f32 %v1398, %v1399
  %v1401 = vrot.slane %v1400, 2
  %v1402 = vadd.f32 %v1400, %v1401
  %v1403 = vrot.slane %v1402, 1
  %v1404 = vadd.f32 %v1402, %v1403
  %v1405 = vmul.f32 %v1404, 0.0125
  %v1406 = vsub.f32 %v1252, %v1405
  %v1407 = vsub.f32 %v1253, %v1405
  %v1408 = vsub.f32 %v1254, %v1405
  %v1409 = vsub.f32 %v1255, %v1405
  %v1410 = vsub.f32 %v1256, %v1405
  %v1411 = vsub.f32 %v1257, %v1405
  %v1412 = vsub.f32 %v1258, %v1405
  %v1413 = vsub.f32 %v1259, %v1405
  %v1414 = vsub.f32 %v1260, %v1405
  %v1415 = vsub.f32 %v1261, %v1405
  %v1416 = vsub.f32 %v1262, %v1405
  %v1417 = vsub.f32 %v1263, %v1405
  %v1418 = vsub.f32 %v1264, %v1405
  %v1419 = vsub.f32 %v1265, %v1405
  %v1420 = vsub.f32 %v1266, %v1405
  %v1421 = vsub.f32 %v1267, %v1405
  %v1422 = vmul.f32 %v1406, %v1289
  %v1423 = vmul.f32 %v1407, %v1294
  %v1424 = vmul.f32 %v1408, %v1299
  %v1425 = vmul.f32 %v1409, %v1304
  %v1426 = vmul.f32 %v1410, %v1309
  %v1427 = vmul.f32 %v1411, %v1314
  %v1428 = vmul.f32 %v1412, %v1319
  %v1429 = vmul.f32 %v1413, %v1324
  %v1430 = vmul.f32 %v1414, %v1329
  %v1431 = vmul.f32 %v1415, %v1334
  %v1432 = vmul.f32 %v1416, %v1339
  %v1433 = vmul.f32 %v1417, %v1344
  %v1434 = vmul.f32 %v1418, %v1349
  %v1435 = vmul.f32 %v1419, %v1354
  %v1436 = vmul.f32 %v1420, %v1359
  %v1437 = vmul.f32 %v1421, %v1364
  %v1438 = vmul.f32 %v1422, %v1422
  %v1439 = vmul.f32 %v1423, %v1423
  %v1440 = vmul.f32 %v1424, %v1424
  %v1441 = vmul.f32 %v1425, %v1425
  %v1442 = vmul.f32 %v1426, %v1426
  %v1443 = vmul.f32 %v1427, %v1427
  %v1444 = vmul.f32 %v1428, %v1428
  %v1445 = vmul.f32 %v1429, %v1429
  %v1446 = vmul.f32 %v1430, %v1430
  %v1447 = vmul.f32 %v1431, %v1431
  %v1448 = vmul.f32 %v1432, %v1432
  %v1449 = vmul.f32 %v1433, %v1433
  %v1450 = vmul.f32 %v1434, %v1434
  %v1451 = vmul.f32 %v1435, %v1435
  %v1452 = vmul.f32 %v1436, %v1436
  %v1453 = vmul.f32 %v1437, %v1437
  %v1454 = vadd.f32 %v1438, %v1439
  %v1455 = vadd.f32 %v1454, %v1440
  %v1456 = vadd.f32 %v1455, %v1441
  %v1457 = vadd.f32 %v1456, %v1442
  %v1458 = vadd.f32 %v1457, %v1443
  %v1459 = vadd.f32 %v1458, %v1444
  %v1460 = vadd.f32 %v1459, %v1445
  %v1461 = vadd.f32 %v1460, %v1446
  %v1462 = vadd.f32 %v1461, %v1447
  %v1463 = vadd.f32 %v1462, %v1448
  %v1464 = vadd.f32 %v1463, %v1449
  %v1465 = vadd.f32 %v1464, %v1450
  %v1466 = vadd.f32 %v1465, %v1451
  %v1467 = vadd.f32 %v1466, %v1452
  %v1468 = vsel %vm1396, %v1453, 0.0
  %v1469 = vadd.f32 %v1467, %v1468
  %v1470 = vrot.slane %v1469, 4
  %v1471 = vadd.f32 %v1469, %v1470
  %v1472 = vrot.slane %v1471, 2
  %v1473 = vadd.f32 %v1471, %v1472
  %v1474 = vrot.slane %v1473, 1
  %v1475 = vadd.f32 %v1473, %v1474
  %v1476 = vmul.f32 %v1475, 0.0125
  %v1477 = vadd.f32 %v1476, 0.001
  %v1478 = vrsqrt.pop %v1477
  %v1479 = vmul.f32 %v1284, %v1478
  %v1480 = vmul.f32 %v1405, %v1479
  %v1481 = vsub.f32 %v1285, %v1480
  %v1483 = vlaneseq
  %v1484 = vshrl.u32 %v1483, 7
  %v1485 = vsub.s32 0, %v1484
  %v1486 = vrot.slane %v1479, %v1485
  %v1488 = vmul.f32 %v1252, %v1486
  %v1489 = vmul.f32 %v1253, %v1486
  %v1490 = vmul.f32 %v1254, %v1486
  %v1491 = vmul.f32 %v1255, %v1486
  %v1492 = vmul.f32 %v1256, %v1486
  %v1493 = vmul.f32 %v1257, %v1486
  %v1494 = vmul.f32 %v1258, %v1486
  %v1495 = vmul.f32 %v1259, %v1486
  %v1496 = vmul.f32 %v1260, %v1486
  %v1497 = vmul.f32 %v1261, %v1486
  %v1498 = vmul.f32 %v1262, %v1486
  %v1499 = vmul.f32 %v1263, %v1486
  %v1500 = vmul.f32 %v1264, %v1486
  %v1501 = vmul.f32 %v1265, %v1486
  %v1502 = vmul.f32 %v1266, %v1486
  %v1503 = vmul.f32 %v1267, %v1486
  %v1505 = vlaneseq
  %v1506 = vshrl.u32 %v1505, 7
  %v1507 = vsub.s32 0, %v1506
  %v1508 = vrot.slane %v1481, %v1507
  %v1510 = vadd.f32 %v1488, %v1508
  %v1511 = vadd.f32 %v1489, %v1508
  %v1512 = vadd.f32 %v1490, %v1508
  %v1513 = vadd.f32 %v1491, %v1508
  %v1514 = vadd.f32 %v1492, %v1508
  %v1515 = vadd.f32 %v1493, %v1508
  %v1516 = vadd.f32 %v1494, %v1508
  %v1517 = vadd.f32 %v1495, %v1508
  %v1518 = vadd.f32 %v1496, %v1508
  %v1519 = vadd.f32 %v1497, %v1508
  %v1520 = vadd.f32 %v1498, %v1508
  %v1521 = vadd.f32 %v1499, %v1508
  %v1522 = vadd.f32 %v1500, %v1508
  %v1523 = vadd.f32 %v1501, %v1508
  %v1524 = vadd.f32 %v1502, %v1508
  %v1525 = vadd.f32 %v1503, %v1508
  %v1526 = vmax.f32 %v1510, 0.0
  %v1527 = vmax.f32 %v1511, 0.0
  %v1528 = vmax.f32 %v1512, 0.0
  %v1529 = vmax.f32 %v1513, 0.0
  %v1530 = vmax.f32 %v1514, 0.0
  %v1531 = vmax.f32 %v1515, 0.0
  %v1532 = vmax.f32 %v1516, 0.0
  %v1533 = vmax.f32 %v1517, 0.0
  %v1534 = vmax.f32 %v1518, 0.0
  %v1535 = vmax.f32 %v1519, 0.0
  %v1536 = vmax.f32 %v1520, 0.0
  %v1537 = vmax.f32 %v1521, 0.0
  %v1538 = vmax.f32 %v1522, 0.0
  %v1539 = vmax.f32 %v1523, 0.0
  %v1540 = vmax.f32 %v1524, 0.0
  %v1541 = vmax.f32 %v1525, 0.0
  %v1542 = vmul.f32 %v1526, %v1289
  %v1543 = vmul.f32 %v1527, %v1294
  %v1544 = vmul.f32 %v1528, %v1299
  %v1545 = vmul.f32 %v1529, %v1304
  %v1546 = vmul.f32 %v1530, %v1309
  %v1547 = vmul.f32 %v1531, %v1314
  %v1548 = vmul.f32 %v1532, %v1319
  %v1549 = vmul.f32 %v1533, %v1324
  %v1550 = vmul.f32 %v1534, %v1329
  %v1551 = vmul.f32 %v1535, %v1334
  %v1552 = vmul.f32 %v1536, %v1339
  %v1553 = vmul.f32 %v1537, %v1344
  %v1554 = vmul.f32 %v1538, %v1349
  %v1555 = vmul.f32 %v1539, %v1354
  %v1556 = vmul.f32 %v1540, %v1359
  %v1557 = vmul.f32 %v1541, %v1364
  %1558 = vst [vmem:[#allocation3] sm:$0xff] %v1542
  %1559 = vst [vmem:[#allocation3 + $0x8] sm:$0xff] %v1543
  %1560 = vst [vmem:[#allocation3 + $0x10] sm:$0xff] %v1544
  %1561 = vst [vmem:[#allocation3 + $0x18] sm:$0xff] %v1545
  %1562 = vst [vmem:[#allocation3 + $0x20] sm:$0xff] %v1546
  %1563 = vst [vmem:[#allocation3 + $0x28] sm:$0xff] %v1547
  %1564 = vst [vmem:[#allocation3 + $0x30] sm:$0xff] %v1548
  %1565 = vst [vmem:[#allocation3 + $0x38] sm:$0xff] %v1549
  %1566 = vst [vmem:[#allocation3 + $0x40] sm:$0xff] %v1550
  %1567 = vst [vmem:[#allocation3 + $0x48] sm:$0xff] %v1551
  %1568 = vst [vmem:[#allocation3 + $0x50] sm:$0xff] %v1552
  %1569 = vst [vmem:[#allocation3 + $0x58] sm:$0xff] %v1553
  %1570 = vst [vmem:[#allocation3 + $0x60] sm:$0xff] %v1554
  %1571 = vst [vmem:[#allocation3 + $0x68] sm:$0xff] %v1555
  %1572 = vst [vmem:[#allocation3 + $0x70] sm:$0xff] %v1556
  %1573 = vst [vmem:[#allocation3 + $0x78] sm:$0x3] %v1557
  %v1574 = vld [vmem:[#allocation3] sm:$0xff]
  %v1575 = vld [vmem:[#allocation3 + $0x8] sm:$0xff]
  %v1576 = vld [vmem:[#allocation3 + $0x10] sm:$0xff]
  %v1577 = vld [vmem:[#allocation3 + $0x18] sm:$0xff]
  %v1578 = vld [vmem:[#allocation3 + $0x20] sm:$0xff]
  %v1579 = vld [vmem:[#allocation3 + $0x28] sm:$0xff]
  %v1580 = vld [vmem:[#allocation3 + $0x30] sm:$0xff]
  %v1581 = vld [vmem:[#allocation3 + $0x38] sm:$0xff]
  %v1582 = vld [vmem:[#allocation3 + $0x40] sm:$0xff]
  %v1583 = vld [vmem:[#allocation3 + $0x48] sm:$0xff]
  %v1584 = vld [vmem:[#allocation3 + $0x50] sm:$0xff]
  %v1585 = vld [vmem:[#allocation3 + $0x58] sm:$0xff]
  %v1586 = vld [vmem:[#allocation3 + $0x60] sm:$0xff]
  %v1587 = vld [vmem:[#allocation3 + $0x68] sm:$0xff]
  %v1588 = vld [vmem:[#allocation3 + $0x70] sm:$0xff]
  %v1589 = vld [vmem:[#allocation3 + $0x78] sm:$0x1]
  %v1590 = vld [vmem:[%s3] sm:$0xff]
  %v1591 = vld [vmem:[%s3 + $0x8] sm:$0xff]
  %v1592 = vld [vmem:[%s3 + $0x10] sm:$0xff]
  %v1593 = vld [vmem:[%s3 + $0x18] sm:$0xff]
  %v1594 = vld [vmem:[%s3 + $0x20] sm:$0xff]
  %v1595 = vld [vmem:[%s3 + $0x28] sm:$0xff]
  %v1596 = vld [vmem:[%s3 + $0x30] sm:$0xff]
  %v1597 = vld [vmem:[%s3 + $0x38] sm:$0xff]
  %v1598 = vld [vmem:[%s3 + $0x40] sm:$0xff]
  %v1599 = vld [vmem:[%s3 + $0x48] sm:$0xff]
  %v1600 = vld [vmem:[%s3 + $0x50] sm:$0xff]
  %v1601 = vld [vmem:[%s3 + $0x58] sm:$0xff]
  %v1602 = vld [vmem:[%s3 + $0x60] sm:$0xff]
  %v1603 = vld [vmem:[%s3 + $0x68] sm:$0xff]
  %v1604 = vld [vmem:[%s3 + $0x70] sm:$0xff]
  %v1605 = vld [vmem:[%s3 + $0x78] sm:$0xff]
  %v1606 = vld [vmem:[#allocation3 + $0x1] sm:$0xff]
  %v1607 = vld [vmem:[#allocation3 + $0x9] sm:$0xff]
  %v1608 = vld [vmem:[#allocation3 + $0x11] sm:$0xff]
  %v1609 = vld [vmem:[#allocation3 + $0x19] sm:$0xff]
  %v1610 = vld [vmem:[#allocation3 + $0x21] sm:$0xff]
  %v1611 = vld [vmem:[#allocation3 + $0x29] sm:$0xff]
  %v1612 = vld [vmem:[#allocation3 + $0x31] sm:$0xff]
  %v1613 = vld [vmem:[#allocation3 + $0x39] sm:$0xff]
  %v1614 = vld [vmem:[#allocation3 + $0x41] sm:$0xff]
  %v1615 = vld [vmem:[#allocation3 + $0x49] sm:$0xff]
  %v1616 = vld [vmem:[#allocation3 + $0x51] sm:$0xff]
  %v1617 = vld [vmem:[#allocation3 + $0x59] sm:$0xff]
  %v1618 = vld [vmem:[#allocation3 + $0x61] sm:$0xff]
  %v1619 = vld [vmem:[#allocation3 + $0x69] sm:$0xff]
  %v1620 = vld [vmem:[#allocation3 + $0x71] sm:$0xff]
  %v1621 = vld [vmem:[#allocation3 + $0x79] sm:$0x1]
  %s1622 = scalar_lea.vmem %s3, 128
  %v1623 = vld [vmem:[%s1622] sm:$0xff]
  %v1624 = vld [vmem:[%s1622 + $0x8] sm:$0xff]
  %v1625 = vld [vmem:[%s1622 + $0x10] sm:$0xff]
  %v1626 = vld [vmem:[%s1622 + $0x18] sm:$0xff]
  %v1627 = vld [vmem:[%s1622 + $0x20] sm:$0xff]
  %v1628 = vld [vmem:[%s1622 + $0x28] sm:$0xff]
  %v1629 = vld [vmem:[%s1622 + $0x30] sm:$0xff]
  %v1630 = vld [vmem:[%s1622 + $0x38] sm:$0xff]
  %v1631 = vld [vmem:[%s1622 + $0x40] sm:$0xff]
  %v1632 = vld [vmem:[%s1622 + $0x48] sm:$0xff]
  %v1633 = vld [vmem:[%s1622 + $0x50] sm:$0xff]
  %v1634 = vld [vmem:[%s1622 + $0x58] sm:$0xff]
  %v1635 = vld [vmem:[%s1622 + $0x60] sm:$0xff]
  %v1636 = vld [vmem:[%s1622 + $0x68] sm:$0xff]
  %v1637 = vld [vmem:[%s1622 + $0x70] sm:$0xff]
  %v1638 = vld [vmem:[%s1622 + $0x78] sm:$0xff]
  %1639 = vmatprep.subr.mxu0 0.0
  %1640 = vmatpush1.msra.mxu0 %v1638
  %1641 = vmatprep.subr.mxu0 0.0
  %1642 = vmatpush1.msra.mxu0 %v1637
  %1643 = vmatprep.subr.mxu0 0.0
  %1644 = vmatpush1.msra.mxu0 %v1636
  %1645 = vmatprep.subr.mxu0 0.0
  %1646 = vmatpush1.msra.mxu0 %v1635
  %1647 = vmatprep.subr.mxu0 0.0
  %1648 = vmatpush1.msra.mxu0 %v1634
  %1649 = vmatprep.subr.mxu0 0.0
  %1650 = vmatpush1.msra.mxu0 %v1633
  %1651 = vmatprep.subr.mxu0 0.0
  %1652 = vmatpush1.msra.mxu0 %v1632
  %1653 = vmatprep.subr.mxu0 0.0
  %1654 = vmatpush1.msra.mxu0 %v1631
  %1655 = vmatprep.subr.mxu0 0.0
  %1656 = vmatpush1.msra.mxu0 %v1630
  %1657 = vmatprep.subr.mxu0 0.0
  %1658 = vmatpush1.msra.mxu0 %v1629
  %1659 = vmatprep.subr.mxu0 0.0
  %1660 = vmatpush1.msra.mxu0 %v1628
  %1661 = vmatprep.subr.mxu0 0.0
  %1662 = vmatpush1.msra.mxu0 %v1627
  %1663 = vmatprep.subr.mxu0 0.0
  %1664 = vmatpush1.msra.mxu0 %v1626
  %1665 = vmatprep.subr.mxu0 0.0
  %1666 = vmatpush1.msra.mxu0 %v1625
  %1667 = vmatprep.subr.mxu0 0.0
  %1668 = vmatpush1.msra.mxu0 %v1624
  %1669 = vmatprep.subr.mxu0 0.0
  %1670 = vmatpush1.msra.mxu0 %v1623
  %1671 = vmatprep.subr.mxu0 0.0
  %1672 = vmatpush2.msra.mxu0 0.0
  %1673 = vmatprep.subr.mxu0 0.0
  %1674 = vmatpush2.msra.mxu0 0.0
  %1675 = vmatprep.subr.mxu0 0.0
  %1676 = vmatpush2.msra.mxu0 0.0
  %1677 = vmatprep.subr.mxu0 0.0
  %1678 = vmatpush2.msra.mxu0 0.0
  %1679 = vmatprep.subr.mxu0 0.0
  %1680 = vmatpush2.msra.mxu0 0.0
  %1681 = vmatprep.subr.mxu0 0.0
  %1682 = vmatpush2.msra.mxu0 0.0
  %1683 = vmatprep.subr.mxu0 0.0
  %1684 = vmatpush2.msra.mxu0 0.0
  %1685 = vmatprep.subr.mxu0 0.0
  %1686 = vmatpush2.msra.mxu0 0.0
  %1687 = vmatprep.subr.mxu0 0.0
  %1688 = vmatpush2.msra.mxu0 0.0
  %1689 = vmatprep.subr.mxu0 0.0
  %1690 = vmatpush2.msra.mxu0 0.0
  %1691 = vmatprep.subr.mxu0 0.0
  %1692 = vmatpush2.msra.mxu0 0.0
  %1693 = vmatprep.subr.mxu0 0.0
  %1694 = vmatpush2.msra.mxu0 0.0
  %1695 = vmatprep.subr.mxu0 0.0
  %1696 = vmatpush2.msra.mxu0 0.0
  %1697 = vmatprep.subr.mxu0 0.0
  %1698 = vmatpush2.msra.mxu0 0.0
  %1699 = vmatprep.subr.mxu0 0.0
  %1700 = vmatpush2.msra.mxu0 0.0
  %1701 = vmatprep.subr.mxu0 0.0
  %1702 = vmatpush2.msra.mxu0 0.0
  %1703 = vmatprep.mubr.f32.mxu0 0.0
  %1704 = vmatmul.mubr.f32.gmra.mxu0 %v1606
  %v1705 = vpop.f32.mrf.mxu0
  %v1706 = vadd.f32 0.0, %v1705
  %v1707 = vpop.f32.mrf.mxu0
  %1708 = vmatprep.mubr.f32.mxu0 0.0
  %1709 = vmatmul.mubr.f32.gmra.mxu0 %v1607
  %v1710 = vpop.f32.mrf.mxu0
  %v1711 = vadd.f32 0.0, %v1710
  %v1712 = vpop.f32.mrf.mxu0
  %1713 = vmatprep.mubr.f32.mxu0 0.0
  %1714 = vmatmul.mubr.f32.gmra.mxu0 %v1608
  %v1715 = vpop.f32.mrf.mxu0
  %v1716 = vadd.f32 0.0, %v1715
  %v1717 = vpop.f32.mrf.mxu0
  %1718 = vmatprep.mubr.f32.mxu0 0.0
  %1719 = vmatmul.mubr.f32.gmra.mxu0 %v1609
  %v1720 = vpop.f32.mrf.mxu0
  %v1721 = vadd.f32 0.0, %v1720
  %v1722 = vpop.f32.mrf.mxu0
  %1723 = vmatprep.mubr.f32.mxu0 0.0
  %1724 = vmatmul.mubr.f32.gmra.mxu0 %v1610
  %v1725 = vpop.f32.mrf.mxu0
  %v1726 = vadd.f32 0.0, %v1725
  %v1727 = vpop.f32.mrf.mxu0
  %1728 = vmatprep.mubr.f32.mxu0 0.0
  %1729 = vmatmul.mubr.f32.gmra.mxu0 %v1611
  %v1730 = vpop.f32.mrf.mxu0
  %v1731 = vadd.f32 0.0, %v1730
  %v1732 = vpop.f32.mrf.mxu0
  %1733 = vmatprep.mubr.f32.mxu0 0.0
  %1734 = vmatmul.mubr.f32.gmra.mxu0 %v1612
  %v1735 = vpop.f32.mrf.mxu0
  %v1736 = vadd.f32 0.0, %v1735
  %v1737 = vpop.f32.mrf.mxu0
  %1738 = vmatprep.mubr.f32.mxu0 0.0
  %1739 = vmatmul.mubr.f32.gmra.mxu0 %v1613
  %v1740 = vpop.f32.mrf.mxu0
  %v1741 = vadd.f32 0.0, %v1740
  %v1742 = vpop.f32.mrf.mxu0
  %1743 = vmatprep.mubr.f32.mxu0 0.0
  %1744 = vmatmul.mubr.f32.gmra.mxu0 %v1614
  %v1745 = vpop.f32.mrf.mxu0
  %v1746 = vadd.f32 0.0, %v1745
  %v1747 = vpop.f32.mrf.mxu0
  %1748 = vmatprep.mubr.f32.mxu0 0.0
  %1749 = vmatmul.mubr.f32.gmra.mxu0 %v1615
  %v1750 = vpop.f32.mrf.mxu0
  %v1751 = vadd.f32 0.0, %v1750
  %v1752 = vpop.f32.mrf.mxu0
  %1753 = vmatprep.mubr.f32.mxu0 0.0
  %1754 = vmatmul.mubr.f32.gmra.mxu0 %v1616
  %v1755 = vpop.f32.mrf.mxu0
  %v1756 = vadd.f32 0.0, %v1755
  %v1757 = vpop.f32.mrf.mxu0
  %1758 = vmatprep.mubr.f32.mxu0 0.0
  %1759 = vmatmul.mubr.f32.gmra.mxu0 %v1617
  %v1760 = vpop.f32.mrf.mxu0
  %v1761 = vadd.f32 0.0, %v1760
  %v1762 = vpop.f32.mrf.mxu0
  %1763 = vmatprep.mubr.f32.mxu0 0.0
  %1764 = vmatmul.mubr.f32.gmra.mxu0 %v1618
  %v1765 = vpop.f32.mrf.mxu0
  %v1766 = vadd.f32 0.0, %v1765
  %v1767 = vpop.f32.mrf.mxu0
  %1768 = vmatprep.mubr.f32.mxu0 0.0
  %1769 = vmatmul.mubr.f32.gmra.mxu0 %v1619
  %v1770 = vpop.f32.mrf.mxu0
  %v1771 = vadd.f32 0.0, %v1770
  %v1772 = vpop.f32.mrf.mxu0
  %1773 = vmatprep.mubr.f32.mxu0 0.0
  %1774 = vmatmul.mubr.f32.gmra.mxu0 %v1620
  %v1775 = vpop.f32.mrf.mxu0
  %v1776 = vadd.f32 0.0, %v1775
  %v1777 = vpop.f32.mrf.mxu0
  %1778 = vmatprep.mubr.f32.mxu0 0.0
  %1779 = vmatmul.mubr.f32.gmra.mxu0 %v1621
  %v1780 = vpop.f32.mrf.mxu0
  %v1781 = vadd.f32 0.0, %v1780
  %v1782 = vpop.f32.mrf.mxu0
  %1783 = vdwg.mxu0
  %1784 = vmatprep.subr.mxu0 0.0
  %1785 = vmatpush1.msra.mxu0 %v1605
  %1786 = vmatprep.subr.mxu0 0.0
  %1787 = vmatpush1.msra.mxu0 %v1604
  %1788 = vmatprep.subr.mxu0 0.0
  %1789 = vmatpush1.msra.mxu0 %v1603
  %1790 = vmatprep.subr.mxu0 0.0
  %1791 = vmatpush1.msra.mxu0 %v1602
  %1792 = vmatprep.subr.mxu0 0.0
  %1793 = vmatpush1.msra.mxu0 %v1601
  %1794 = vmatprep.subr.mxu0 0.0
  %1795 = vmatpush1.msra.mxu0 %v1600
  %1796 = vmatprep.subr.mxu0 0.0
  %1797 = vmatpush1.msra.mxu0 %v1599
  %1798 = vmatprep.subr.mxu0 0.0
  %1799 = vmatpush1.msra.mxu0 %v1598
  %1800 = vmatprep.subr.mxu0 0.0
  %1801 = vmatpush1.msra.mxu0 %v1597
  %1802 = vmatprep.subr.mxu0 0.0
  %1803 = vmatpush1.msra.mxu0 %v1596
  %1804 = vmatprep.subr.mxu0 0.0
  %1805 = vmatpush1.msra.mxu0 %v1595
  %1806 = vmatprep.subr.mxu0 0.0
  %1807 = vmatpush1.msra.mxu0 %v1594
  %1808 = vmatprep.subr.mxu0 0.0
  %1809 = vmatpush1.msra.mxu0 %v1593
  %1810 = vmatprep.subr.mxu0 0.0
  %1811 = vmatpush1.msra.mxu0 %v1592
  %1812 = vmatprep.subr.mxu0 0.0
  %1813 = vmatpush1.msra.mxu0 %v1591
  %1814 = vmatprep.subr.mxu0 0.0
  %1815 = vmatpush1.msra.mxu0 %v1590
  %1816 = vmatprep.subr.mxu0 0.0
  %1817 = vmatpush2.msra.mxu0 0.0
  %1818 = vmatprep.subr.mxu0 0.0
  %1819 = vmatpush2.msra.mxu0 0.0
  %1820 = vmatprep.subr.mxu0 0.0
  %1821 = vmatpush2.msra.mxu0 0.0
  %1822 = vmatprep.subr.mxu0 0.0
  %1823 = vmatpush2.msra.mxu0 0.0
  %1824 = vmatprep.subr.mxu0 0.0
  %1825 = vmatpush2.msra.mxu0 0.0
  %1826 = vmatprep.subr.mxu0 0.0
  %1827 = vmatpush2.msra.mxu0 0.0
  %1828 = vmatprep.subr.mxu0 0.0
  %1829 = vmatpush2.msra.mxu0 0.0
  %1830 = vmatprep.subr.mxu0 0.0
  %1831 = vmatpush2.msra.mxu0 0.0
  %1832 = vmatprep.subr.mxu0 0.0
  %1833 = vmatpush2.msra.mxu0 0.0
  %1834 = vmatprep.subr.mxu0 0.0
  %1835 = vmatpush2.msra.mxu0 0.0
  %1836 = vmatprep.subr.mxu0 0.0
  %1837 = vmatpush2.msra.mxu0 0.0
  %1838 = vmatprep.subr.mxu0 0.0
  %1839 = vmatpush2.msra.mxu0 0.0
  %1840 = vmatprep.subr.mxu0 0.0
  %1841 = vmatpush2.msra.mxu0 0.0
  %1842 = vmatprep.subr.mxu0 0.0
  %1843 = vmatpush2.msra.mxu0 0.0
  %1844 = vmatprep.subr.mxu0 0.0
  %1845 = vmatpush2.msra.mxu0 0.0
  %1846 = vmatprep.subr.mxu0 0.0
  %1847 = vmatpush2.msra.mxu0 0.0
  %1848 = vmatprep.mubr.f32.mxu0 0.0
  %1849 = vmatmul.mubr.f32.gmra.mxu0 %v1574
  %v1850 = vpop.f32.mrf.mxu0
  %v1851 = vadd.f32 %v1706, %v1850
  %v1852 = vpop.f32.mrf.mxu0
  %1853 = vmatprep.mubr.f32.mxu0 0.0
  %1854 = vmatmul.mubr.f32.gmra.mxu0 %v1575
  %v1855 = vpop.f32.mrf.mxu0
  %v1856 = vadd.f32 %v1711, %v1855
  %v1857 = vpop.f32.mrf.mxu0
  %1858 = vmatprep.mubr.f32.mxu0 0.0
  %1859 = vmatmul.mubr.f32.gmra.mxu0 %v1576
  %v1860 = vpop.f32.mrf.mxu0
  %v1861 = vadd.f32 %v1716, %v1860
  %v1862 = vpop.f32.mrf.mxu0
  %1863 = vmatprep.mubr.f32.mxu0 0.0
  %1864 = vmatmul.mubr.f32.gmra.mxu0 %v1577
  %v1865 = vpop.f32.mrf.mxu0
  %v1866 = vadd.f32 %v1721, %v1865
  %v1867 = vpop.f32.mrf.mxu0
  %1868 = vmatprep.mubr.f32.mxu0 0.0
  %1869 = vmatmul.mubr.f32.gmra.mxu0 %v1578
  %v1870 = vpop.f32.mrf.mxu0
  %v1871 = vadd.f32 %v1726, %v1870
  %v1872 = vpop.f32.mrf.mxu0
  %1873 = vmatprep.mubr.f32.mxu0 0.0
  %1874 = vmatmul.mubr.f32.gmra.mxu0 %v1579
  %v1875 = vpop.f32.mrf.mxu0
  %v1876 = vadd.f32 %v1731, %v1875
  %v1877 = vpop.f32.mrf.mxu0
  %1878 = vmatprep.mubr.f32.mxu0 0.0
  %1879 = vmatmul.mubr.f32.gmra.mxu0 %v1580
  %v1880 = vpop.f32.mrf.mxu0
  %v1881 = vadd.f32 %v1736, %v1880
  %v1882 = vpop.f32.mrf.mxu0
  %1883 = vmatprep.mubr.f32.mxu0 0.0
  %1884 = vmatmul.mubr.f32.gmra.mxu0 %v1581
  %v1885 = vpop.f32.mrf.mxu0
  %v1886 = vadd.f32 %v1741, %v1885
  %v1887 = vpop.f32.mrf.mxu0
  %1888 = vmatprep.mubr.f32.mxu0 0.0
  %1889 = vmatmul.mubr.f32.gmra.mxu0 %v1582
  %v1890 = vpop.f32.mrf.mxu0
  %v1891 = vadd.f32 %v1746, %v1890
  %v1892 = vpop.f32.mrf.mxu0
  %1893 = vmatprep.mubr.f32.mxu0 0.0
  %1894 = vmatmul.mubr.f32.gmra.mxu0 %v1583
  %v1895 = vpop.f32.mrf.mxu0
  %v1896 = vadd.f32 %v1751, %v1895
  %v1897 = vpop.f32.mrf.mxu0
  %1898 = vmatprep.mubr.f32.mxu0 0.0
  %1899 = vmatmul.mubr.f32.gmra.mxu0 %v1584
  %v1900 = vpop.f32.mrf.mxu0
  %v1901 = vadd.f32 %v1756, %v1900
  %v1902 = vpop.f32.mrf.mxu0
  %1903 = vmatprep.mubr.f32.mxu0 0.0
  %1904 = vmatmul.mubr.f32.gmra.mxu0 %v1585
  %v1905 = vpop.f32.mrf.mxu0
  %v1906 = vadd.f32 %v1761, %v1905
  %v1907 = vpop.f32.mrf.mxu0
  %1908 = vmatprep.mubr.f32.mxu0 0.0
  %1909 = vmatmul.mubr.f32.gmra.mxu0 %v1586
  %v1910 = vpop.f32.mrf.mxu0
  %v1911 = vadd.f32 %v1766, %v1910
  %v1912 = vpop.f32.mrf.mxu0
  %1913 = vmatprep.mubr.f32.mxu0 0.0
  %1914 = vmatmul.mubr.f32.gmra.mxu0 %v1587
  %v1915 = vpop.f32.mrf.mxu0
  %v1916 = vadd.f32 %v1771, %v1915
  %v1917 = vpop.f32.mrf.mxu0
  %1918 = vmatprep.mubr.f32.mxu0 0.0
  %1919 = vmatmul.mubr.f32.gmra.mxu0 %v1588
  %v1920 = vpop.f32.mrf.mxu0
  %v1921 = vadd.f32 %v1776, %v1920
  %v1922 = vpop.f32.mrf.mxu0
  %1923 = vmatprep.mubr.f32.mxu0 0.0
  %1924 = vmatmul.mubr.f32.gmra.mxu0 %v1589
  %v1925 = vpop.f32.mrf.mxu0
  %v1926 = vadd.f32 %v1781, %v1925
  %v1927 = vpop.f32.mrf.mxu0
  %1928 = vdwg.mxu0
  %v1929 = vld [vmem:[%s12] sm:$0xff]
  %v1930 = vld [vmem:[%s12 + $0x8] sm:$0xff]
  %v1931 = vld [vmem:[%s12 + $0x10] sm:$0xff]
  %v1932 = vld [vmem:[%s12 + $0x18] sm:$0xff]
  %v1933 = vld [vmem:[%s12 + $0x20] sm:$0xff]
  %v1934 = vld [vmem:[%s12 + $0x28] sm:$0xff]
  %v1935 = vld [vmem:[%s12 + $0x30] sm:$0xff]
  %v1936 = vld [vmem:[%s12 + $0x38] sm:$0xff]
  %v1937 = vld [vmem:[%s12 + $0x40] sm:$0xff]
  %v1938 = vld [vmem:[%s12 + $0x48] sm:$0xff]
  %v1939 = vld [vmem:[%s12 + $0x50] sm:$0xff]
  %v1940 = vld [vmem:[%s12 + $0x58] sm:$0xff]
  %v1941 = vld [vmem:[%s12 + $0x60] sm:$0xff]
  %v1942 = vld [vmem:[%s12 + $0x68] sm:$0xff]
  %v1943 = vld [vmem:[%s12 + $0x70] sm:$0xff]
  %v1944 = vld [vmem:[%s12 + $0x78] sm:$0x1]
  %v1945 = vld [vmem:[%s8] sm:$0x1]
  %v1946 = vld [vmem:[%s9] sm:$0x1]
  %1948 = vset.pattern.permute.xlu0 0
  %1949 = vperm.xlu0 %1948, %v1929
  %v1950 = vpop.permute.xlu0 %1949
  %1953 = vset.pattern.permute.xlu0 0
  %1954 = vperm.xlu0 %1953, %v1930
  %v1955 = vpop.permute.xlu0 %1954
  %1958 = vset.pattern.permute.xlu0 0
  %1959 = vperm.xlu0 %1958, %v1931
  %v1960 = vpop.permute.xlu0 %1959
  %1963 = vset.pattern.permute.xlu0 0
  %1964 = vperm.xlu0 %1963, %v1932
  %v1965 = vpop.permute.xlu0 %1964
  %1968 = vset.pattern.permute.xlu0 0
  %1969 = vperm.xlu0 %1968, %v1933
  %v1970 = vpop.permute.xlu0 %1969
  %1973 = vset.pattern.permute.xlu0 0
  %1974 = vperm.xlu0 %1973, %v1934
  %v1975 = vpop.permute.xlu0 %1974
  %1978 = vset.pattern.permute.xlu0 0
  %1979 = vperm.xlu0 %1978, %v1935
  %v1980 = vpop.permute.xlu0 %1979
  %1983 = vset.pattern.permute.xlu0 0
  %1984 = vperm.xlu0 %1983, %v1936
  %v1985 = vpop.permute.xlu0 %1984
  %1988 = vset.pattern.permute.xlu0 0
  %1989 = vperm.xlu0 %1988, %v1937
  %v1990 = vpop.permute.xlu0 %1989
  %1993 = vset.pattern.permute.xlu0 0
  %1994 = vperm.xlu0 %1993, %v1938
  %v1995 = vpop.permute.xlu0 %1994
  %1998 = vset.pattern.permute.xlu0 0
  %1999 = vperm.xlu0 %1998, %v1939
  %v2000 = vpop.permute.xlu0 %1999
  %2003 = vset.pattern.permute.xlu0 0
  %2004 = vperm.xlu0 %2003, %v1940
  %v2005 = vpop.permute.xlu0 %2004
  %2008 = vset.pattern.permute.xlu0 0
  %2009 = vperm.xlu0 %2008, %v1941
  %v2010 = vpop.permute.xlu0 %2009
  %2013 = vset.pattern.permute.xlu0 0
  %2014 = vperm.xlu0 %2013, %v1942
  %v2015 = vpop.permute.xlu0 %2014
  %2018 = vset.pattern.permute.xlu0 0
  %2019 = vperm.xlu0 %2018, %v1943
  %v2020 = vpop.permute.xlu0 %2019
  %2023 = vset.pattern.permute.xlu0 0
  %2024 = vperm.xlu0 %2023, %v1944
  %v2025 = vpop.permute.xlu0 %2024
  %v2027 = vmul.f32 %v1851, %v1950
  %v2028 = vmul.f32 %v1856, %v1955
  %v2029 = vmul.f32 %v1861, %v1960
  %v2030 = vmul.f32 %v1866, %v1965
  %v2031 = vmul.f32 %v1871, %v1970
  %v2032 = vmul.f32 %v1876, %v1975
  %v2033 = vmul.f32 %v1881, %v1980
  %v2034 = vmul.f32 %v1886, %v1985
  %v2035 = vmul.f32 %v1891, %v1990
  %v2036 = vmul.f32 %v1896, %v1995
  %v2037 = vmul.f32 %v1901, %v2000
  %v2038 = vmul.f32 %v1906, %v2005
  %v2039 = vmul.f32 %v1911, %v2010
  %v2040 = vmul.f32 %v1916, %v2015
  %v2041 = vmul.f32 %v1921, %v2020
  %v2042 = vmul.f32 %v1926, %v2025
  %v2043 = vsel %vm376, %v2027, 0.0
  %v2044 = vsel %vm376, %v2028, 0.0
  %v2045 = vadd.f32 %v2043, %v2044
  %v2046 = vsel %vm376, %v2029, 0.0
  %v2047 = vadd.f32 %v2045, %v2046
  %v2048 = vsel %vm376, %v2030, 0.0
  %v2049 = vadd.f32 %v2047, %v2048
  %v2050 = vsel %vm376, %v2031, 0.0
  %v2051 = vadd.f32 %v2049, %v2050
  %v2052 = vsel %vm376, %v2032, 0.0
  %v2053 = vadd.f32 %v2051, %v2052
  %v2054 = vsel %vm376, %v2033, 0.0
  %v2055 = vadd.f32 %v2053, %v2054
  %v2056 = vsel %vm376, %v2034, 0.0
  %v2057 = vadd.f32 %v2055, %v2056
  %v2058 = vsel %vm376, %v2035, 0.0
  %v2059 = vadd.f32 %v2057, %v2058
  %v2060 = vsel %vm376, %v2036, 0.0
  %v2061 = vadd.f32 %v2059, %v2060
  %v2062 = vsel %vm376, %v2037, 0.0
  %v2063 = vadd.f32 %v2061, %v2062
  %v2064 = vsel %vm376, %v2038, 0.0
  %v2065 = vadd.f32 %v2063, %v2064
  %v2066 = vsel %vm376, %v2039, 0.0
  %v2067 = vadd.f32 %v2065, %v2066
  %v2068 = vsel %vm376, %v2040, 0.0
  %v2069 = vadd.f32 %v2067, %v2068
  %v2070 = vsel %vm376, %v2041, 0.0
  %v2071 = vadd.f32 %v2069, %v2070
  %vm2072 = vcmask 516096
  %v2073 = vsel %vm2072, %v2042, 0.0
  %v2074 = vadd.f32 %v2071, %v2073
  %v2075 = vrot.slane %v2074, 4
  %v2076 = vadd.f32 %v2074, %v2075
  %v2077 = vrot.slane %v2076, 2
  %v2078 = vadd.f32 %v2076, %v2077
  %v2079 = vrot.slane %v2078, 1
  %v2080 = vadd.f32 %v2078, %v2079
  %v2081 = vmul.f32 %v2080, 0.013888889
  %v2082 = vsub.f32 %v1851, %v2081
  %v2083 = vsub.f32 %v1856, %v2081
  %v2084 = vsub.f32 %v1861, %v2081
  %v2085 = vsub.f32 %v1866, %v2081
  %v2086 = vsub.f32 %v1871, %v2081
  %v2087 = vsub.f32 %v1876, %v2081
  %v2088 = vsub.f32 %v1881, %v2081
  %v2089 = vsub.f32 %v1886, %v2081
  %v2090 = vsub.f32 %v1891, %v2081
  %v2091 = vsub.f32 %v1896, %v2081
  %v2092 = vsub.f32 %v1901, %v2081
  %v2093 = vsub.f32 %v1906, %v2081
  %v2094 = vsub.f32 %v1911, %v2081
  %v2095 = vsub.f32 %v1916, %v2081
  %v2096 = vsub.f32 %v1921, %v2081
  %v2097 = vsub.f32 %v1926, %v2081
  %v2098 = vmul.f32 %v2082, %v1950
  %v2099 = vmul.f32 %v2083, %v1955
  %v2100 = vmul.f32 %v2084, %v1960
  %v2101 = vmul.f32 %v2085, %v1965
  %v2102 = vmul.f32 %v2086, %v1970
  %v2103 = vmul.f32 %v2087, %v1975
  %v2104 = vmul.f32 %v2088, %v1980
  %v2105 = vmul.f32 %v2089, %v1985
  %v2106 = vmul.f32 %v2090, %v1990
  %v2107 = vmul.f32 %v2091, %v1995
  %v2108 = vmul.f32 %v2092, %v2000
  %v2109 = vmul.f32 %v2093, %v2005
  %v2110 = vmul.f32 %v2094, %v2010
  %v2111 = vmul.f32 %v2095, %v2015
  %v2112 = vmul.f32 %v2096, %v2020
  %v2113 = vmul.f32 %v2097, %v2025
  %v2114 = vmul.f32 %v2098, %v2098
  %v2115 = vmul.f32 %v2099, %v2099
  %v2116 = vmul.f32 %v2100, %v2100
  %v2117 = vmul.f32 %v2101, %v2101
  %v2118 = vmul.f32 %v2102, %v2102
  %v2119 = vmul.f32 %v2103, %v2103
  %v2120 = vmul.f32 %v2104, %v2104
  %v2121 = vmul.f32 %v2105, %v2105
  %v2122 = vmul.f32 %v2106, %v2106
  %v2123 = vmul.f32 %v2107, %v2107
  %v2124 = vmul.f32 %v2108, %v2108
  %v2125 = vmul.f32 %v2109, %v2109
  %v2126 = vmul.f32 %v2110, %v2110
  %v2127 = vmul.f32 %v2111, %v2111
  %v2128 = vmul.f32 %v2112, %v2112
  %v2129 = vmul.f32 %v2113, %v2113
  %v2130 = vsel %vm376, %v2114, 0.0
  %v2131 = vsel %vm376, %v2115, 0.0
  %v2132 = vadd.f32 %v2130, %v2131
  %v2133 = vsel %vm376, %v2116, 0.0
  %v2134 = vadd.f32 %v2132, %v2133
  %v2135 = vsel %vm376, %v2117, 0.0
  %v2136 = vadd.f32 %v2134, %v2135
  %v2137 = vsel %vm376, %v2118, 0.0
  %v2138 = vadd.f32 %v2136, %v2137
  %v2139 = vsel %vm376, %v2119, 0.0
  %v2140 = vadd.f32 %v2138, %v2139
  %v2141 = vsel %vm376, %v2120, 0.0
  %v2142 = vadd.f32 %v2140, %v2141
  %v2143 = vsel %vm376, %v2121, 0.0
  %v2144 = vadd.f32 %v2142, %v2143
  %v2145 = vsel %vm376, %v2122, 0.0
  %v2146 = vadd.f32 %v2144, %v2145
  %v2147 = vsel %vm376, %v2123, 0.0
  %v2148 = vadd.f32 %v2146, %v2147
  %v2149 = vsel %vm376, %v2124, 0.0
  %v2150 = vadd.f32 %v2148, %v2149
  %v2151 = vsel %vm376, %v2125, 0.0
  %v2152 = vadd.f32 %v2150, %v2151
  %v2153 = vsel %vm376, %v2126, 0.0
  %v2154 = vadd.f32 %v2152, %v2153
  %v2155 = vsel %vm376, %v2127, 0.0
  %v2156 = vadd.f32 %v2154, %v2155
  %v2157 = vsel %vm376, %v2128, 0.0
  %v2158 = vadd.f32 %v2156, %v2157
  %v2159 = vsel %vm2072, %v2129, 0.0
  %v2160 = vadd.f32 %v2158, %v2159
  %v2161 = vrot.slane %v2160, 4
  %v2162 = vadd.f32 %v2160, %v2161
  %v2163 = vrot.slane %v2162, 2
  %v2164 = vadd.f32 %v2162, %v2163
  %v2165 = vrot.slane %v2164, 1
  %v2166 = vadd.f32 %v2164, %v2165
  %v2167 = vmul.f32 %v2166, 0.013888889
  %v2168 = vadd.f32 %v2167, 0.001
  %v2169 = vrsqrt.pop %v2168
  %v2170 = vmul.f32 %v1945, %v2169
  %v2171 = vmul.f32 %v2081, %v2170
  %v2172 = vsub.f32 %v1946, %v2171
  %v2174 = vlaneseq
  %v2175 = vshrl.u32 %v2174, 7
  %v2176 = vsub.s32 0, %v2175
  %v2177 = vrot.slane %v2170, %v2176
  %v2179 = vmul.f32 %v1851, %v2177
  %v2180 = vmul.f32 %v1856, %v2177
  %v2181 = vmul.f32 %v1861, %v2177
  %v2182 = vmul.f32 %v1866, %v2177
  %v2183 = vmul.f32 %v1871, %v2177
  %v2184 = vmul.f32 %v1876, %v2177
  %v2185 = vmul.f32 %v1881, %v2177
  %v2186 = vmul.f32 %v1886, %v2177
  %v2187 = vmul.f32 %v1891, %v2177
  %v2188 = vmul.f32 %v1896, %v2177
  %v2189 = vmul.f32 %v1901, %v2177
  %v2190 = vmul.f32 %v1906, %v2177
  %v2191 = vmul.f32 %v1911, %v2177
  %v2192 = vmul.f32 %v1916, %v2177
  %v2193 = vmul.f32 %v1921, %v2177
  %v2194 = vmul.f32 %v1926, %v2177
  %v2196 = vlaneseq
  %v2197 = vshrl.u32 %v2196, 7
  %v2198 = vsub.s32 0, %v2197
  %v2199 = vrot.slane %v2172, %v2198
  %v2201 = vadd.f32 %v2179, %v2199
  %v2202 = vadd.f32 %v2180, %v2199
  %v2203 = vadd.f32 %v2181, %v2199
  %v2204 = vadd.f32 %v2182, %v2199
  %v2205 = vadd.f32 %v2183, %v2199
  %v2206 = vadd.f32 %v2184, %v2199
  %v2207 = vadd.f32 %v2185, %v2199
  %v2208 = vadd.f32 %v2186, %v2199
  %v2209 = vadd.f32 %v2187, %v2199
  %v2210 = vadd.f32 %v2188, %v2199
  %v2211 = vadd.f32 %v2189, %v2199
  %v2212 = vadd.f32 %v2190, %v2199
  %v2213 = vadd.f32 %v2191, %v2199
  %v2214 = vadd.f32 %v2192, %v2199
  %v2215 = vadd.f32 %v2193, %v2199
  %v2216 = vadd.f32 %v2194, %v2199
  %v2217 = vmax.f32 %v2201, 0.0
  %v2218 = vmax.f32 %v2202, 0.0
  %v2219 = vmax.f32 %v2203, 0.0
  %v2220 = vmax.f32 %v2204, 0.0
  %v2221 = vmax.f32 %v2205, 0.0
  %v2222 = vmax.f32 %v2206, 0.0
  %v2223 = vmax.f32 %v2207, 0.0
  %v2224 = vmax.f32 %v2208, 0.0
  %v2225 = vmax.f32 %v2209, 0.0
  %v2226 = vmax.f32 %v2210, 0.0
  %v2227 = vmax.f32 %v2211, 0.0
  %v2228 = vmax.f32 %v2212, 0.0
  %v2229 = vmax.f32 %v2213, 0.0
  %v2230 = vmax.f32 %v2214, 0.0
  %v2231 = vmax.f32 %v2215, 0.0
  %v2232 = vmax.f32 %v2216, 0.0
  %v2233 = vmul.f32 %v2217, %v1950
  %v2234 = vmul.f32 %v2218, %v1955
  %v2235 = vmul.f32 %v2219, %v1960
  %v2236 = vmul.f32 %v2220, %v1965
  %v2237 = vmul.f32 %v2221, %v1970
  %v2238 = vmul.f32 %v2222, %v1975
  %v2239 = vmul.f32 %v2223, %v1980
  %v2240 = vmul.f32 %v2224, %v1985
  %v2241 = vmul.f32 %v2225, %v1990
  %v2242 = vmul.f32 %v2226, %v1995
  %v2243 = vmul.f32 %v2227, %v2000
  %v2244 = vmul.f32 %v2228, %v2005
  %v2245 = vmul.f32 %v2229, %v2010
  %v2246 = vmul.f32 %v2230, %v2015
  %v2247 = vmul.f32 %v2231, %v2020
  %v2248 = vmul.f32 %v2232, %v2025
  %v2249 = vld [vmem:[%s13] sm:$0xff]
  %vm2250 = vcmask 990208
  %v2252 = vsel %vm2250, %v2249, 0
  %vm2254 = vcmask 1040384
  %v2256 = vsel %vm2254, %v2248, 0
  %2258 = vmatprep.subr.mxu0 0.0
  %2259 = vmatpush1.msra.mxu0 %v2256
  %2260 = vmatprep.subr.mxu0 0.0
  %2261 = vmatpush1.msra.mxu0 %v2247
  %2262 = vmatprep.subr.mxu0 0.0
  %2263 = vmatpush1.msra.mxu0 %v2246
  %2264 = vmatprep.subr.mxu0 0.0
  %2265 = vmatpush1.msra.mxu0 %v2245
  %2266 = vmatprep.subr.mxu0 0.0
  %2267 = vmatpush1.msra.mxu0 %v2244
  %2268 = vmatprep.subr.mxu0 0.0
  %2269 = vmatpush1.msra.mxu0 %v2243
  %2270 = vmatprep.subr.mxu0 0.0
  %2271 = vmatpush1.msra.mxu0 %v2242
  %2272 = vmatprep.subr.mxu0 0.0
  %2273 = vmatpush1.msra.mxu0 %v2241
  %2274 = vmatprep.subr.mxu0 0.0
  %2275 = vmatpush1.msra.mxu0 %v2240
  %2276 = vmatprep.subr.mxu0 0.0
  %2277 = vmatpush1.msra.mxu0 %v2239
  %2278 = vmatprep.subr.mxu0 0.0
  %2279 = vmatpush1.msra.mxu0 %v2238
  %2280 = vmatprep.subr.mxu0 0.0
  %2281 = vmatpush1.msra.mxu0 %v2237
  %2282 = vmatprep.subr.mxu0 0.0
  %2283 = vmatpush1.msra.mxu0 %v2236
  %2284 = vmatprep.subr.mxu0 0.0
  %2285 = vmatpush1.msra.mxu0 %v2235
  %2286 = vmatprep.subr.mxu0 0.0
  %2287 = vmatpush1.msra.mxu0 %v2234
  %2288 = vmatprep.subr.mxu0 0.0
  %2289 = vmatpush1.msra.mxu0 %v2233
  %2290 = vmatprep.subr.mxu0 0.0
  %2291 = vmatpush2.msra.mxu0 0.0
  %2292 = vmatprep.subr.mxu0 0.0
  %2293 = vmatpush2.msra.mxu0 0.0
  %2294 = vmatprep.subr.mxu0 0.0
  %2295 = vmatpush2.msra.mxu0 0.0
  %2296 = vmatprep.subr.mxu0 0.0
  %2297 = vmatpush2.msra.mxu0 0.0
  %2298 = vmatprep.subr.mxu0 0.0
  %2299 = vmatpush2.msra.mxu0 0.0
  %2300 = vmatprep.subr.mxu0 0.0
  %2301 = vmatpush2.msra.mxu0 0.0
  %2302 = vmatprep.subr.mxu0 0.0
  %2303 = vmatpush2.msra.mxu0 0.0
  %2304 = vmatprep.subr.mxu0 0.0
  %2305 = vmatpush2.msra.mxu0 0.0
  %2306 = vmatprep.subr.mxu0 0.0
  %2307 = vmatpush2.msra.mxu0 0.0
  %2308 = vmatprep.subr.mxu0 0.0
  %2309 = vmatpush2.msra.mxu0 0.0
  %2310 = vmatprep.subr.mxu0 0.0
  %2311 = vmatpush2.msra.mxu0 0.0
  %2312 = vmatprep.subr.mxu0 0.0
  %2313 = vmatpush2.msra.mxu0 0.0
  %2314 = vmatprep.subr.mxu0 0.0
  %2315 = vmatpush2.msra.mxu0 0.0
  %2316 = vmatprep.subr.mxu0 0.0
  %2317 = vmatpush2.msra.mxu0 0.0
  %2318 = vmatprep.subr.mxu0 0.0
  %2319 = vmatpush2.msra.mxu0 0.0
  %2320 = vmatprep.subr.mxu0 0.0
  %2321 = vmatpush2.msra.mxu0 0.0
  %2322 = vmatprep.mubr.f32.mxu0 0.0
  %2323 = vmatmul.mubr.f32.gmra.mxu0 %v2252
  %v2324 = vpop.f32.mrf.mxu0
  %v2325 = vadd.f32 0.0, %v2324
  %v2326 = vpop.f32.mrf.mxu0
  %2327 = vdwg.mxu0
  %2328 = vst.msk [vmem:[%s14] sm:$0xff] %vm376, %v2325
  // Predicated region
  $region58: #{lstmfcn_forward.4} parent=0 // pred_check
    _
  $region59: #{lstmfcn_forward.4} parent=0 // pred_check_branch
    %2330 = sbr.rel (0) target = $region61
  $region60: #{lstmfcn_forward.4} parent=0 // pred_region
    _
  $region61: #{lstmfcn_forward.4} parent=0 // pred_fallthru
    _
  // Predicated region
  $region62: #{lstmfcn_forward.4} parent=0 // pred_check
    _
  $region63: #{lstmfcn_forward.4} parent=0 // pred_check_branch
    %2332 = sbr.rel (0) target = $region65
  $region64: #{lstmfcn_forward.4} parent=0 // pred_region
    _
  $region65: #{lstmfcn_forward.4} parent=0 // pred_fallthru
    _

</llo_original>
